<compile_context>
chip_gen: v7x
topology: tpu7x:2x2x1
jax: 0.10.0
libtpu: 0.0.40
codegen_flags: <defaults>
</compile_context>

<pallas_src>
import functools

import jax
import jax.numpy as jnp
from jax.experimental import pallas as pl


# ----------------------------------------------------------------------------
# Fused kernel: on_job_attn + job_attn + machine_fc, whole batch, no grid.
# ----------------------------------------------------------------------------
def _actora_kernel(
    # activations
    wj_ref,        # (Lw, N*E)  wait_job  (batch folded into lanes)
    oj_ref,        # (Lo, N*E)  on_job    (batch folded into lanes)
    wm_ref,        # (N*M, Dm)  wait_machine (batch folded into rows)
    on_mask_ref,   # (N, Lo)    additive key-padding mask (0 / -1e9)
    wj_mask_ref,   # (N, Lw)    additive key-padding mask (0 / -1e9)
    # on_job_attn params (weights stored (in, out): kernel does x @ W)
    a_wq_ref, a_wk_ref, a_wv_ref, a_bq_ref, a_bk_ref, a_bv_ref, a_wo_ref, a_bo_ref,
    # job_attn params
    b_wq_ref, b_wk_ref, b_wv_ref, b_bq_ref, b_bk_ref, b_bv_ref, b_wo_ref, b_bo_ref,
    # machine_fc params
    fc_w_ref, fc_b_ref,
    # outputs
    on_feat_ref,   # (Lw, N*E)
    job_feat_ref,  # (Lw, N*E)
    mach_ref,      # (N*M, H)
    *, num_heads, head_dim, batch,
):
    E = num_heads * head_dim
    scale = 1.0 / (head_dim ** 0.5)

    wj = wj_ref[...]
    oj = oj_ref[...]
    on_mask = on_mask_ref[...]
    wj_mask = wj_mask_ref[...]

    # Hoist weight/bias loads (read once per kernel invocation).
    a_params = (a_wq_ref[...], a_wk_ref[...], a_wv_ref[...],
                a_bq_ref[...], a_bk_ref[...], a_bv_ref[...],
                a_wo_ref[...], a_bo_ref[...])
    b_params = (b_wq_ref[...], b_wk_ref[...], b_wv_ref[...],
                b_bq_ref[...], b_bk_ref[...], b_bv_ref[...],
                b_wo_ref[...], b_bo_ref[...])

    def attend(q, kv, add_mask, params):
        """q: (Lq, E), kv: (Lk, E), add_mask: (1, Lk) -> (Lq, E)."""
        wq, wk, wv, bq, bk, bv, wo, bo = params
        Lq = q.shape[0]
        Q = (jnp.dot(q, wq, preferred_element_type=jnp.float32) + bq) * scale
        K = jnp.dot(kv, wk, preferred_element_type=jnp.float32) + bk
        V = jnp.dot(kv, wv, preferred_element_type=jnp.float32) + bv
        out = jnp.zeros((Lq, E), jnp.float32) + bo
        # Per-head output-projection accumulation (no head concat):
        #   out += softmax(Q_h K_h^T + mask) V_h @ Wo[h*D:(h+1)*D, :]
        for h in range(num_heads):                    # static, unrolled
            sl = slice(h * head_dim, (h + 1) * head_dim)
            s = jnp.dot(Q[:, sl], K[:, sl].T,
                        preferred_element_type=jnp.float32)     # (Lq, Lk)
            s = s + add_mask
            s = s - jnp.max(s, axis=-1, keepdims=True)
            p = jnp.exp(s)
            # divide -> reciprocal (EUP) * multiply
            p = p * pl.reciprocal(jnp.sum(p, axis=-1, keepdims=True),
                                  approx=False)
            ctx_h = jnp.dot(p, V[:, sl], preferred_element_type=jnp.float32)
            out = out + jnp.dot(ctx_h, wo[sl, :],
                                preferred_element_type=jnp.float32)
        return out

    for n in range(batch):                            # static, unrolled (N tiny)
        cols = slice(n * E, (n + 1) * E)
        q_n = wj[:, cols]                             # (Lw, E)
        on_n = oj[:, cols]                            # (Lo, E)
        on_feat_ref[:, cols] = attend(
            q_n, on_n, on_mask[n:n + 1, :], a_params).astype(on_feat_ref.dtype)
        job_feat_ref[:, cols] = attend(
            q_n, q_n, wj_mask[n:n + 1, :], b_params).astype(job_feat_ref.dtype)

    # machine_fc: one matmul over all batch*M rows, one dense store.
    mach_ref[...] = (jnp.dot(wm_ref[...], fc_w_ref[...],
                             preferred_element_type=jnp.float32)
                     + fc_b_ref[...]).astype(mach_ref.dtype)


# ----------------------------------------------------------------------------
# Wrapper: single fused pallas_call, only free reshapes outside the kernel.
# ----------------------------------------------------------------------------
def actora_forward(params, num_heads, wait_job, on_job, wait_machine,
                   on_job_mask=None, wait_job_mask=None):
    Lw, N, E = wait_job.shape
    Lo = on_job.shape[0]
    _, M, Dm = wait_machine.shape
    head_dim = E // num_heads

    a = params["on_job_attn"]
    b = params["job_attn"]
    fc_w, fc_b = params["machine_fc"]      # fc_w: (Dm, H) pre-transposed
    H = fc_w.shape[1]

    def additive(mask, L):
        if mask is None:
            return jnp.zeros((N, L), jnp.float32)
        return jnp.where(mask, -1e9, 0.0).astype(jnp.float32)

    # Free reshapes (no transposes, no copies): fold batch into lanes / rows.
    wj2 = wait_job.astype(jnp.float32).reshape(Lw, N * E)
    oj2 = on_job.astype(jnp.float32).reshape(Lo, N * E)
    wm2 = wait_machine.astype(jnp.float32).reshape(N * M, Dm)

    kernel = functools.partial(_actora_kernel, num_heads=num_heads,
                               head_dim=head_dim, batch=N)

    # Advisory cost hint so XLA schedules this tiny custom call cheaply.
    def attn_flops(Lq, Lk):
        return 2 * E * E * (2 * Lq + 2 * Lk) + 4 * Lq * Lk * E
    flops = int(N * (attn_flops(Lw, Lo) + attn_flops(Lw, Lw))
                + 2 * N * M * Dm * H)
    transcendentals = int(N * num_heads * (Lw * Lo + Lw * Lw)
                          + 2 * N * num_heads * Lw)
    n_elems = (2 * (4 * E * E + 4 * E) + Dm * H + H          # params
               + Lw * N * E + Lo * N * E + N * M * Dm        # activations in
               + N * Lo + N * Lw                             # masks
               + 2 * Lw * N * E + N * M * H)                 # outputs
    cost = pl.CostEstimate(flops=flops, transcendentals=transcendentals,
                           bytes_accessed=4 * n_elems)

    on2, job2, mach2 = pl.pallas_call(
        kernel,
        out_shape=(
            jax.ShapeDtypeStruct((Lw, N * E), jnp.float32),
            jax.ShapeDtypeStruct((Lw, N * E), jnp.float32),
            jax.ShapeDtypeStruct((N * M, H), jnp.float32),
        ),
        cost_estimate=cost,
    )(wj2, oj2, wm2,
      additive(on_job_mask, Lo), additive(wait_job_mask, Lw),
      a[0], a[1], a[2],
      a[3].reshape(1, E), a[4].reshape(1, E), a[5].reshape(1, E),
      a[6], a[7].reshape(1, E),
      b[0], b[1], b[2],
      b[3].reshape(1, E), b[4].reshape(1, E), b[5].reshape(1, E),
      b[6], b[7].reshape(1, E),
      fc_w, fc_b.reshape(1, H))

    # Free reshapes back to PyTorch MHA layout (L, N, E) / (N, M, H).
    return (on2.reshape(Lw, N, E), job2.reshape(Lw, N, E),
            mach2.reshape(N, M, H))


# ----------------------------------------------------------------------------
# Pure-JAX reference (same (in, out) weight-storage convention) for validation
# ----------------------------------------------------------------------------
def _mha_ref(q, k, v, mask, params, num_heads):
    wq, wk, wv, bq, bk, bv, wo, bo = params       # weights: (E_in, E_out)
    Lq, N, E = q.shape
    Lk = k.shape[0]
    D = E // num_heads
    Q = (jnp.einsum("lne,ef->lnf", q, wq) + bq).reshape(Lq, N, num_heads, D)
    K = (jnp.einsum("lne,ef->lnf", k, wk) + bk).reshape(Lk, N, num_heads, D)
    V = (jnp.einsum("lne,ef->lnf", v, wv) + bv).reshape(Lk, N, num_heads, D)
    s = jnp.einsum("qnhd,knhd->nhqk", Q, K) / (D ** 0.5)
    if mask is not None:
        s = s + jnp.where(mask, -1e9, 0.0)[:, None, None, :]
    p = jax.nn.softmax(s, axis=-1)
    ctx = jnp.einsum("nhqk,knhd->qnhd", p, V).reshape(Lq, N, E)
    return jnp.einsum("qne,ef->qnf", ctx, wo) + bo


def _actora_ref(params, num_heads, wait_job, on_job, wait_machine,
                on_job_mask, wait_job_mask):
    a = _mha_ref(wait_job, on_job, on_job, on_job_mask,
                 params["on_job_attn"], num_heads)
    b = _mha_ref(wait_job, wait_job, wait_job, wait_job_mask,
                 params["job_attn"], num_heads)
    fc_w, fc_b = params["machine_fc"]
    m = jnp.einsum("nmd,dh->nmh", wait_machine, fc_w) + fc_b
    return a, b, m


# ----------------------------------------------------------------------------
# Deterministic parameter construction
# ----------------------------------------------------------------------------
def init_params(key, job_input_dim, machine_input_dim, machine_hidden_dim):
    # NOTE: weights are stored pre-transposed as (in_features, out_features) so
    # kernels compute x @ W directly (a PyTorch checkpoint's in_proj_weight /
    # out_proj.weight / Linear.weight would be imported once as W.T).
    def mha_params(k):
        ks = jax.random.split(k, 8)
        E = job_input_dim
        sc = 1.0 / (E ** 0.5)
        return (
            jax.random.normal(ks[0], (E, E), jnp.float32) * sc,   # Wq (in,out)
            jax.random.normal(ks[1], (E, E), jnp.float32) * sc,   # Wk
            jax.random.normal(ks[2], (E, E), jnp.float32) * sc,   # Wv
            jax.random.normal(ks[3], (E,), jnp.float32) * 0.1,    # bq
            jax.random.normal(ks[4], (E,), jnp.float32) * 0.1,    # bk
            jax.random.normal(ks[5], (E,), jnp.float32) * 0.1,    # bv
            jax.random.normal(ks[6], (E, E), jnp.float32) * sc,   # Wo (in,out)
            jax.random.normal(ks[7], (E,), jnp.float32) * 0.1,    # bo
        )

    k1, k2, k3, k4 = jax.random.split(key, 4)
    fc_w = jax.random.normal(k3, (machine_input_dim, machine_hidden_dim),
                             jnp.float32) / (machine_input_dim ** 0.5)
    fc_b = jax.random.normal(k4, (machine_hidden_dim,), jnp.float32) * 0.1
    return {
        "on_job_attn": mha_params(k1),
        "job_attn": mha_params(k2),
        "machine_fc": (fc_w, fc_b),
    }


# ----------------------------------------------------------------------------
# Main
# ----------------------------------------------------------------------------
if __name__ == "__main__":
    job_input_dim = 32        # E (must be divisible by num_heads)
    machine_input_dim = 16
    machine_hidden_dim = 32
    num_heads = 4
    N = 2                     # batch
    L_wait, L_on, M = 8, 8, 8

    key = jax.random.PRNGKey(0)
    kp, kwj, koj, kwm = jax.random.split(key, 4)

    params = init_params(kp, job_input_dim, machine_input_dim,
                         machine_hidden_dim)

    wait_job = jax.random.normal(kwj, (L_wait, N, job_input_dim), jnp.float32)
    on_job = jax.random.normal(koj, (L_on, N, job_input_dim), jnp.float32)
    wait_machine = jax.random.normal(kwm, (N, M, machine_input_dim),
                                     jnp.float32)
    # Deterministic key-padding masks (True = ignore); keep >=1 valid key.
    on_job_mask = jnp.zeros((N, L_on), bool).at[:, -1].set(True)
    wait_job_mask = jnp.zeros((N, L_wait), bool).at[:, -2:].set(True)

    fwd = jax.jit(functools.partial(actora_forward, params, num_heads))
    on_job_feat, job_feat, machine_h = fwd(wait_job, on_job, wait_machine,
                                           on_job_mask, wait_job_mask)
    jax.block_until_ready((on_job_feat, job_feat, machine_h))

    # Validate against pure-JAX reference.
    ra, rb, rm = _actora_ref(params, num_heads, wait_job, on_job,
                             wait_machine, on_job_mask, wait_job_mask)
    assert on_job_feat.shape == (L_wait, N, job_input_dim)
    assert job_feat.shape == (L_wait, N, job_input_dim)
    assert machine_h.shape == (N, M, machine_hidden_dim)
    assert jnp.allclose(on_job_feat, ra, atol=2e-4, rtol=2e-4)
    assert jnp.allclose(job_feat, rb, atol=2e-4, rtol=2e-4)
    assert jnp.allclose(machine_h, rm, atol=2e-4, rtol=2e-4)

    print("KERNEL_OK")
</pallas_src>

<mosaic_0001>
module attributes {stable_mosaic.version = 11 : i64} {
  func.func @_actora_kernel(%arg0: memref<8x64xf32, #tpu.memory_space<vmem>>, %arg1: memref<8x64xf32, #tpu.memory_space<vmem>>, %arg2: memref<16x16xf32, #tpu.memory_space<vmem>>, %arg3: memref<2x8xf32, #tpu.memory_space<vmem>>, %arg4: memref<2x8xf32, #tpu.memory_space<vmem>>, %arg5: memref<32x32xf32, #tpu.memory_space<vmem>>, %arg6: memref<32x32xf32, #tpu.memory_space<vmem>>, %arg7: memref<32x32xf32, #tpu.memory_space<vmem>>, %arg8: memref<1x32xf32, #tpu.memory_space<vmem>>, %arg9: memref<1x32xf32, #tpu.memory_space<vmem>>, %arg10: memref<1x32xf32, #tpu.memory_space<vmem>>, %arg11: memref<32x32xf32, #tpu.memory_space<vmem>>, %arg12: memref<1x32xf32, #tpu.memory_space<vmem>>, %arg13: memref<32x32xf32, #tpu.memory_space<vmem>>, %arg14: memref<32x32xf32, #tpu.memory_space<vmem>>, %arg15: memref<32x32xf32, #tpu.memory_space<vmem>>, %arg16: memref<1x32xf32, #tpu.memory_space<vmem>>, %arg17: memref<1x32xf32, #tpu.memory_space<vmem>>, %arg18: memref<1x32xf32, #tpu.memory_space<vmem>>, %arg19: memref<32x32xf32, #tpu.memory_space<vmem>>, %arg20: memref<1x32xf32, #tpu.memory_space<vmem>>, %arg21: memref<16x32xf32, #tpu.memory_space<vmem>>, %arg22: memref<1x32xf32, #tpu.memory_space<vmem>>, %arg23: memref<8x64xf32, #tpu.memory_space<vmem>>, %arg24: memref<8x64xf32, #tpu.memory_space<vmem>>, %arg25: memref<16x32xf32, #tpu.memory_space<vmem>>) attributes {dimension_semantics = [], scalar_prefetch = 0 : i64, scratch_operands = 0 : i64, tpu.core_type = #tpu.core_type<tc>} {
    %c0 = arith.constant 0 : index
    %c0_0 = arith.constant 0 : index
    %0 = vector.load %arg0[%c0, %c0_0] : memref<8x64xf32, #tpu.memory_space<vmem>>, vector<8x64xf32>
    %c0_1 = arith.constant 0 : index
    %c0_2 = arith.constant 0 : index
    %1 = vector.load %arg1[%c0_1, %c0_2] : memref<8x64xf32, #tpu.memory_space<vmem>>, vector<8x64xf32>
    %c0_3 = arith.constant 0 : index
    %c0_4 = arith.constant 0 : index
    %2 = vector.load %arg3[%c0_3, %c0_4] : memref<2x8xf32, #tpu.memory_space<vmem>>, vector<2x8xf32>
    %c0_5 = arith.constant 0 : index
    %c0_6 = arith.constant 0 : index
    %3 = vector.load %arg4[%c0_5, %c0_6] : memref<2x8xf32, #tpu.memory_space<vmem>>, vector<2x8xf32>
    %c0_7 = arith.constant 0 : index
    %c0_8 = arith.constant 0 : index
    %4 = vector.load %arg5[%c0_7, %c0_8] : memref<32x32xf32, #tpu.memory_space<vmem>>, vector<32x32xf32>
    %c0_9 = arith.constant 0 : index
    %c0_10 = arith.constant 0 : index
    %5 = vector.load %arg6[%c0_9, %c0_10] : memref<32x32xf32, #tpu.memory_space<vmem>>, vector<32x32xf32>
    %c0_11 = arith.constant 0 : index
    %c0_12 = arith.constant 0 : index
    %6 = vector.load %arg7[%c0_11, %c0_12] : memref<32x32xf32, #tpu.memory_space<vmem>>, vector<32x32xf32>
    %c0_13 = arith.constant 0 : index
    %c0_14 = arith.constant 0 : index
    %7 = vector.load %arg8[%c0_13, %c0_14] : memref<1x32xf32, #tpu.memory_space<vmem>>, vector<1x32xf32>
    %c0_15 = arith.constant 0 : index
    %c0_16 = arith.constant 0 : index
    %8 = vector.load %arg9[%c0_15, %c0_16] : memref<1x32xf32, #tpu.memory_space<vmem>>, vector<1x32xf32>
    %c0_17 = arith.constant 0 : index
    %c0_18 = arith.constant 0 : index
    %9 = vector.load %arg10[%c0_17, %c0_18] : memref<1x32xf32, #tpu.memory_space<vmem>>, vector<1x32xf32>
    %c0_19 = arith.constant 0 : index
    %c0_20 = arith.constant 0 : index
    %10 = vector.load %arg11[%c0_19, %c0_20] : memref<32x32xf32, #tpu.memory_space<vmem>>, vector<32x32xf32>
    %c0_21 = arith.constant 0 : index
    %c0_22 = arith.constant 0 : index
    %11 = vector.load %arg12[%c0_21, %c0_22] : memref<1x32xf32, #tpu.memory_space<vmem>>, vector<1x32xf32>
    %c0_23 = arith.constant 0 : index
    %c0_24 = arith.constant 0 : index
    %12 = vector.load %arg13[%c0_23, %c0_24] : memref<32x32xf32, #tpu.memory_space<vmem>>, vector<32x32xf32>
    %c0_25 = arith.constant 0 : index
    %c0_26 = arith.constant 0 : index
    %13 = vector.load %arg14[%c0_25, %c0_26] : memref<32x32xf32, #tpu.memory_space<vmem>>, vector<32x32xf32>
    %c0_27 = arith.constant 0 : index
    %c0_28 = arith.constant 0 : index
    %14 = vector.load %arg15[%c0_27, %c0_28] : memref<32x32xf32, #tpu.memory_space<vmem>>, vector<32x32xf32>
    %c0_29 = arith.constant 0 : index
    %c0_30 = arith.constant 0 : index
    %15 = vector.load %arg16[%c0_29, %c0_30] : memref<1x32xf32, #tpu.memory_space<vmem>>, vector<1x32xf32>
    %c0_31 = arith.constant 0 : index
    %c0_32 = arith.constant 0 : index
    %16 = vector.load %arg17[%c0_31, %c0_32] : memref<1x32xf32, #tpu.memory_space<vmem>>, vector<1x32xf32>
    %c0_33 = arith.constant 0 : index
    %c0_34 = arith.constant 0 : index
    %17 = vector.load %arg18[%c0_33, %c0_34] : memref<1x32xf32, #tpu.memory_space<vmem>>, vector<1x32xf32>
    %c0_35 = arith.constant 0 : index
    %c0_36 = arith.constant 0 : index
    %18 = vector.load %arg19[%c0_35, %c0_36] : memref<32x32xf32, #tpu.memory_space<vmem>>, vector<32x32xf32>
    %c0_37 = arith.constant 0 : index
    %c0_38 = arith.constant 0 : index
    %19 = vector.load %arg20[%c0_37, %c0_38] : memref<1x32xf32, #tpu.memory_space<vmem>>, vector<1x32xf32>
    %20 = vector.extract_strided_slice %0 {offsets = [0, 0], sizes = [8, 32], strides = [1, 1]} : vector<8x64xf32> to vector<8x32xf32>
    %21 = vector.extract_strided_slice %1 {offsets = [0, 0], sizes = [8, 32], strides = [1, 1]} : vector<8x64xf32> to vector<8x32xf32>
    %22 = vector.extract_strided_slice %2 {offsets = [0, 0], sizes = [1, 8], strides = [1, 1]} : vector<2x8xf32> to vector<1x8xf32>
    %cst = arith.constant dense<0.000000e+00> : vector<8x32xf32>
    %23 = tpu.matmul %20, %4, %cst {dimension_numbers = #tpu.dot_dimension_numbers<[1], [0], [0], [1], [0, 0, 1, 1], [], []>} : vector<8x32xf32>, vector<32x32xf32>, vector<8x32xf32> -> vector<8x32xf32>
    %24 = vector.broadcast %7 : vector<1x32xf32> to vector<8x32xf32>
    %25 = arith.addf %23, %24 : vector<8x32xf32>
    %cst_39 = arith.constant 0.353553385 : f32
    %26 = vector.broadcast %cst_39 : f32 to vector<8x32xf32>
    %27 = arith.mulf %25, %26 : vector<8x32xf32>
    %cst_40 = arith.constant dense<0.000000e+00> : vector<8x32xf32>
    %28 = tpu.matmul %21, %5, %cst_40 {dimension_numbers = #tpu.dot_dimension_numbers<[1], [0], [0], [1], [0, 0, 1, 1], [], []>} : vector<8x32xf32>, vector<32x32xf32>, vector<8x32xf32> -> vector<8x32xf32>
    %29 = vector.broadcast %8 : vector<1x32xf32> to vector<8x32xf32>
    %30 = arith.addf %28, %29 : vector<8x32xf32>
    %cst_41 = arith.constant dense<0.000000e+00> : vector<8x32xf32>
    %31 = tpu.matmul %21, %6, %cst_41 {dimension_numbers = #tpu.dot_dimension_numbers<[1], [0], [0], [1], [0, 0, 1, 1], [], []>} : vector<8x32xf32>, vector<32x32xf32>, vector<8x32xf32> -> vector<8x32xf32>
    %32 = vector.broadcast %9 : vector<1x32xf32> to vector<8x32xf32>
    %33 = arith.addf %31, %32 : vector<8x32xf32>
    %cst_42 = arith.constant 0.000000e+00 : f32
    %34 = vector.broadcast %cst_42 : f32 to vector<8x32xf32>
    %35 = vector.broadcast %11 : vector<1x32xf32> to vector<8x32xf32>
    %36 = arith.addf %34, %35 : vector<8x32xf32>
    %37 = vector.extract_strided_slice %27 {offsets = [0, 0], sizes = [8, 8], strides = [1, 1]} : vector<8x32xf32> to vector<8x8xf32>
    %38 = vector.extract_strided_slice %30 {offsets = [0, 0], sizes = [8, 8], strides = [1, 1]} : vector<8x32xf32> to vector<8x8xf32>
    %39 = tpu.transpose %38, [1, 0] : vector<8x8xf32> -> vector<8x8xf32>
    %cst_43 = arith.constant dense<0.000000e+00> : vector<8x8xf32>
    %40 = tpu.matmul %37, %39, %cst_43 {dimension_numbers = #tpu.dot_dimension_numbers<[1], [0], [0], [1], [0, 0, 1, 1], [], []>} : vector<8x8xf32>, vector<8x8xf32>, vector<8x8xf32> -> vector<8x8xf32>
    %41 = vector.broadcast %22 : vector<1x8xf32> to vector<8x8xf32>
    %42 = arith.addf %40, %41 : vector<8x8xf32>
    %cst_44 = arith.constant dense<0xFF800000> : vector<8xf32>
    %43 = vector.multi_reduction <maximumf>, %42, %cst_44 [1] : vector<8x8xf32> to vector<8xf32>
    %44 = vector.shape_cast %43 : vector<8xf32> to vector<8x1xf32>
    %45 = vector.broadcast %44 : vector<8x1xf32> to vector<8x8xf32>
    %46 = arith.subf %42, %45 : vector<8x8xf32>
    %47 = math.exp %46 : vector<8x8xf32>
    %cst_45 = arith.constant dense<0.000000e+00> : vector<8xf32>
    %48 = vector.multi_reduction <add>, %47, %cst_45 [1] : vector<8x8xf32> to vector<8xf32>
    %49 = vector.shape_cast %48 : vector<8xf32> to vector<8x1xf32>
    %50 = tpu.reciprocal %49 : vector<8x1xf32> -> vector<8x1xf32>
    %51 = vector.broadcast %50 : vector<8x1xf32> to vector<8x8xf32>
    %52 = arith.mulf %47, %51 : vector<8x8xf32>
    %53 = vector.extract_strided_slice %33 {offsets = [0, 0], sizes = [8, 8], strides = [1, 1]} : vector<8x32xf32> to vector<8x8xf32>
    %cst_46 = arith.constant dense<0.000000e+00> : vector<8x8xf32>
    %54 = tpu.matmul %52, %53, %cst_46 {dimension_numbers = #tpu.dot_dimension_numbers<[1], [0], [0], [1], [0, 0, 1, 1], [], []>} : vector<8x8xf32>, vector<8x8xf32>, vector<8x8xf32> -> vector<8x8xf32>
    %55 = vector.extract_strided_slice %10 {offsets = [0, 0], sizes = [8, 32], strides = [1, 1]} : vector<32x32xf32> to vector<8x32xf32>
    %cst_47 = arith.constant dense<0.000000e+00> : vector<8x32xf32>
    %56 = tpu.matmul %54, %55, %cst_47 {dimension_numbers = #tpu.dot_dimension_numbers<[1], [0], [0], [1], [0, 0, 1, 1], [], []>} : vector<8x8xf32>, vector<8x32xf32>, vector<8x32xf32> -> vector<8x32xf32>
    %57 = arith.addf %36, %56 : vector<8x32xf32>
    %58 = vector.extract_strided_slice %27 {offsets = [0, 8], sizes = [8, 8], strides = [1, 1]} : vector<8x32xf32> to vector<8x8xf32>
    %59 = vector.extract_strided_slice %30 {offsets = [0, 8], sizes = [8, 8], strides = [1, 1]} : vector<8x32xf32> to vector<8x8xf32>
    %60 = tpu.transpose %59, [1, 0] : vector<8x8xf32> -> vector<8x8xf32>
    %cst_48 = arith.constant dense<0.000000e+00> : vector<8x8xf32>
    %61 = tpu.matmul %58, %60, %cst_48 {dimension_numbers = #tpu.dot_dimension_numbers<[1], [0], [0], [1], [0, 0, 1, 1], [], []>} : vector<8x8xf32>, vector<8x8xf32>, vector<8x8xf32> -> vector<8x8xf32>
    %62 = vector.broadcast %22 : vector<1x8xf32> to vector<8x8xf32>
    %63 = arith.addf %61, %62 : vector<8x8xf32>
    %cst_49 = arith.constant dense<0xFF800000> : vector<8xf32>
    %64 = vector.multi_reduction <maximumf>, %63, %cst_49 [1] : vector<8x8xf32> to vector<8xf32>
    %65 = vector.shape_cast %64 : vector<8xf32> to vector<8x1xf32>
    %66 = vector.broadcast %65 : vector<8x1xf32> to vector<8x8xf32>
    %67 = arith.subf %63, %66 : vector<8x8xf32>
    %68 = math.exp %67 : vector<8x8xf32>
    %cst_50 = arith.constant dense<0.000000e+00> : vector<8xf32>
    %69 = vector.multi_reduction <add>, %68, %cst_50 [1] : vector<8x8xf32> to vector<8xf32>
    %70 = vector.shape_cast %69 : vector<8xf32> to vector<8x1xf32>
    %71 = tpu.reciprocal %70 : vector<8x1xf32> -> vector<8x1xf32>
    %72 = vector.broadcast %71 : vector<8x1xf32> to vector<8x8xf32>
    %73 = arith.mulf %68, %72 : vector<8x8xf32>
    %74 = vector.extract_strided_slice %33 {offsets = [0, 8], sizes = [8, 8], strides = [1, 1]} : vector<8x32xf32> to vector<8x8xf32>
    %cst_51 = arith.constant dense<0.000000e+00> : vector<8x8xf32>
    %75 = tpu.matmul %73, %74, %cst_51 {dimension_numbers = #tpu.dot_dimension_numbers<[1], [0], [0], [1], [0, 0, 1, 1], [], []>} : vector<8x8xf32>, vector<8x8xf32>, vector<8x8xf32> -> vector<8x8xf32>
    %76 = vector.extract_strided_slice %10 {offsets = [8, 0], sizes = [8, 32], strides = [1, 1]} : vector<32x32xf32> to vector<8x32xf32>
    %cst_52 = arith.constant dense<0.000000e+00> : vector<8x32xf32>
    %77 = tpu.matmul %75, %76, %cst_52 {dimension_numbers = #tpu.dot_dimension_numbers<[1], [0], [0], [1], [0, 0, 1, 1], [], []>} : vector<8x8xf32>, vector<8x32xf32>, vector<8x32xf32> -> vector<8x32xf32>
    %78 = arith.addf %57, %77 : vector<8x32xf32>
    %79 = vector.extract_strided_slice %27 {offsets = [0, 16], sizes = [8, 8], strides = [1, 1]} : vector<8x32xf32> to vector<8x8xf32>
    %80 = vector.extract_strided_slice %30 {offsets = [0, 16], sizes = [8, 8], strides = [1, 1]} : vector<8x32xf32> to vector<8x8xf32>
    %81 = tpu.transpose %80, [1, 0] : vector<8x8xf32> -> vector<8x8xf32>
    %cst_53 = arith.constant dense<0.000000e+00> : vector<8x8xf32>
    %82 = tpu.matmul %79, %81, %cst_53 {dimension_numbers = #tpu.dot_dimension_numbers<[1], [0], [0], [1], [0, 0, 1, 1], [], []>} : vector<8x8xf32>, vector<8x8xf32>, vector<8x8xf32> -> vector<8x8xf32>
    %83 = vector.broadcast %22 : vector<1x8xf32> to vector<8x8xf32>
    %84 = arith.addf %82, %83 : vector<8x8xf32>
    %cst_54 = arith.constant dense<0xFF800000> : vector<8xf32>
    %85 = vector.multi_reduction <maximumf>, %84, %cst_54 [1] : vector<8x8xf32> to vector<8xf32>
    %86 = vector.shape_cast %85 : vector<8xf32> to vector<8x1xf32>
    %87 = vector.broadcast %86 : vector<8x1xf32> to vector<8x8xf32>
    %88 = arith.subf %84, %87 : vector<8x8xf32>
    %89 = math.exp %88 : vector<8x8xf32>
    %cst_55 = arith.constant dense<0.000000e+00> : vector<8xf32>
    %90 = vector.multi_reduction <add>, %89, %cst_55 [1] : vector<8x8xf32> to vector<8xf32>
    %91 = vector.shape_cast %90 : vector<8xf32> to vector<8x1xf32>
    %92 = tpu.reciprocal %91 : vector<8x1xf32> -> vector<8x1xf32>
    %93 = vector.broadcast %92 : vector<8x1xf32> to vector<8x8xf32>
    %94 = arith.mulf %89, %93 : vector<8x8xf32>
    %95 = vector.extract_strided_slice %33 {offsets = [0, 16], sizes = [8, 8], strides = [1, 1]} : vector<8x32xf32> to vector<8x8xf32>
    %cst_56 = arith.constant dense<0.000000e+00> : vector<8x8xf32>
    %96 = tpu.matmul %94, %95, %cst_56 {dimension_numbers = #tpu.dot_dimension_numbers<[1], [0], [0], [1], [0, 0, 1, 1], [], []>} : vector<8x8xf32>, vector<8x8xf32>, vector<8x8xf32> -> vector<8x8xf32>
    %97 = vector.extract_strided_slice %10 {offsets = [16, 0], sizes = [8, 32], strides = [1, 1]} : vector<32x32xf32> to vector<8x32xf32>
    %cst_57 = arith.constant dense<0.000000e+00> : vector<8x32xf32>
    %98 = tpu.matmul %96, %97, %cst_57 {dimension_numbers = #tpu.dot_dimension_numbers<[1], [0], [0], [1], [0, 0, 1, 1], [], []>} : vector<8x8xf32>, vector<8x32xf32>, vector<8x32xf32> -> vector<8x32xf32>
    %99 = arith.addf %78, %98 : vector<8x32xf32>
    %100 = vector.extract_strided_slice %27 {offsets = [0, 24], sizes = [8, 8], strides = [1, 1]} : vector<8x32xf32> to vector<8x8xf32>
    %101 = vector.extract_strided_slice %30 {offsets = [0, 24], sizes = [8, 8], strides = [1, 1]} : vector<8x32xf32> to vector<8x8xf32>
    %102 = tpu.transpose %101, [1, 0] : vector<8x8xf32> -> vector<8x8xf32>
    %cst_58 = arith.constant dense<0.000000e+00> : vector<8x8xf32>
    %103 = tpu.matmul %100, %102, %cst_58 {dimension_numbers = #tpu.dot_dimension_numbers<[1], [0], [0], [1], [0, 0, 1, 1], [], []>} : vector<8x8xf32>, vector<8x8xf32>, vector<8x8xf32> -> vector<8x8xf32>
    %104 = vector.broadcast %22 : vector<1x8xf32> to vector<8x8xf32>
    %105 = arith.addf %103, %104 : vector<8x8xf32>
    %cst_59 = arith.constant dense<0xFF800000> : vector<8xf32>
    %106 = vector.multi_reduction <maximumf>, %105, %cst_59 [1] : vector<8x8xf32> to vector<8xf32>
    %107 = vector.shape_cast %106 : vector<8xf32> to vector<8x1xf32>
    %108 = vector.broadcast %107 : vector<8x1xf32> to vector<8x8xf32>
    %109 = arith.subf %105, %108 : vector<8x8xf32>
    %110 = math.exp %109 : vector<8x8xf32>
    %cst_60 = arith.constant dense<0.000000e+00> : vector<8xf32>
    %111 = vector.multi_reduction <add>, %110, %cst_60 [1] : vector<8x8xf32> to vector<8xf32>
    %112 = vector.shape_cast %111 : vector<8xf32> to vector<8x1xf32>
    %113 = tpu.reciprocal %112 : vector<8x1xf32> -> vector<8x1xf32>
    %114 = vector.broadcast %113 : vector<8x1xf32> to vector<8x8xf32>
    %115 = arith.mulf %110, %114 : vector<8x8xf32>
    %116 = vector.extract_strided_slice %33 {offsets = [0, 24], sizes = [8, 8], strides = [1, 1]} : vector<8x32xf32> to vector<8x8xf32>
    %cst_61 = arith.constant dense<0.000000e+00> : vector<8x8xf32>
    %117 = tpu.matmul %115, %116, %cst_61 {dimension_numbers = #tpu.dot_dimension_numbers<[1], [0], [0], [1], [0, 0, 1, 1], [], []>} : vector<8x8xf32>, vector<8x8xf32>, vector<8x8xf32> -> vector<8x8xf32>
    %118 = vector.extract_strided_slice %10 {offsets = [24, 0], sizes = [8, 32], strides = [1, 1]} : vector<32x32xf32> to vector<8x32xf32>
    %cst_62 = arith.constant dense<0.000000e+00> : vector<8x32xf32>
    %119 = tpu.matmul %117, %118, %cst_62 {dimension_numbers = #tpu.dot_dimension_numbers<[1], [0], [0], [1], [0, 0, 1, 1], [], []>} : vector<8x8xf32>, vector<8x32xf32>, vector<8x32xf32> -> vector<8x32xf32>
    %120 = arith.addf %99, %119 : vector<8x32xf32>
    %c0_63 = arith.constant 0 : index
    %c0_64 = arith.constant 0 : index
    %121 = vector.load %arg23[%c0_63, %c0_64] : memref<8x64xf32, #tpu.memory_space<vmem>>, vector<8x32xf32>
    tpu.vector_store %arg23[%c0_63, %c0_64], %120 {strides = array<i32>} : memref<8x64xf32, #tpu.memory_space<vmem>>, vector<8x32xf32>,
    %122 = vector.extract_strided_slice %3 {offsets = [0, 0], sizes = [1, 8], strides = [1, 1]} : vector<2x8xf32> to vector<1x8xf32>
    %cst_65 = arith.constant dense<0.000000e+00> : vector<8x32xf32>
    %123 = tpu.matmul %20, %12, %cst_65 {dimension_numbers = #tpu.dot_dimension_numbers<[1], [0], [0], [1], [0, 0, 1, 1], [], []>} : vector<8x32xf32>, vector<32x32xf32>, vector<8x32xf32> -> vector<8x32xf32>
    %124 = vector.broadcast %15 : vector<1x32xf32> to vector<8x32xf32>
    %125 = arith.addf %123, %124 : vector<8x32xf32>
    %cst_66 = arith.constant 0.353553385 : f32
    %126 = vector.broadcast %cst_66 : f32 to vector<8x32xf32>
    %127 = arith.mulf %125, %126 : vector<8x32xf32>
    %cst_67 = arith.constant dense<0.000000e+00> : vector<8x32xf32>
    %128 = tpu.matmul %20, %13, %cst_67 {dimension_numbers = #tpu.dot_dimension_numbers<[1], [0], [0], [1], [0, 0, 1, 1], [], []>} : vector<8x32xf32>, vector<32x32xf32>, vector<8x32xf32> -> vector<8x32xf32>
    %129 = vector.broadcast %16 : vector<1x32xf32> to vector<8x32xf32>
    %130 = arith.addf %128, %129 : vector<8x32xf32>
    %cst_68 = arith.constant dense<0.000000e+00> : vector<8x32xf32>
    %131 = tpu.matmul %20, %14, %cst_68 {dimension_numbers = #tpu.dot_dimension_numbers<[1], [0], [0], [1], [0, 0, 1, 1], [], []>} : vector<8x32xf32>, vector<32x32xf32>, vector<8x32xf32> -> vector<8x32xf32>
    %132 = vector.broadcast %17 : vector<1x32xf32> to vector<8x32xf32>
    %133 = arith.addf %131, %132 : vector<8x32xf32>
    %cst_69 = arith.constant 0.000000e+00 : f32
    %134 = vector.broadcast %cst_69 : f32 to vector<8x32xf32>
    %135 = vector.broadcast %19 : vector<1x32xf32> to vector<8x32xf32>
    %136 = arith.addf %134, %135 : vector<8x32xf32>
    %137 = vector.extract_strided_slice %127 {offsets = [0, 0], sizes = [8, 8], strides = [1, 1]} : vector<8x32xf32> to vector<8x8xf32>
    %138 = vector.extract_strided_slice %130 {offsets = [0, 0], sizes = [8, 8], strides = [1, 1]} : vector<8x32xf32> to vector<8x8xf32>
    %139 = tpu.transpose %138, [1, 0] : vector<8x8xf32> -> vector<8x8xf32>
    %cst_70 = arith.constant dense<0.000000e+00> : vector<8x8xf32>
    %140 = tpu.matmul %137, %139, %cst_70 {dimension_numbers = #tpu.dot_dimension_numbers<[1], [0], [0], [1], [0, 0, 1, 1], [], []>} : vector<8x8xf32>, vector<8x8xf32>, vector<8x8xf32> -> vector<8x8xf32>
    %141 = vector.broadcast %122 : vector<1x8xf32> to vector<8x8xf32>
    %142 = arith.addf %140, %141 : vector<8x8xf32>
    %cst_71 = arith.constant dense<0xFF800000> : vector<8xf32>
    %143 = vector.multi_reduction <maximumf>, %142, %cst_71 [1] : vector<8x8xf32> to vector<8xf32>
    %144 = vector.shape_cast %143 : vector<8xf32> to vector<8x1xf32>
    %145 = vector.broadcast %144 : vector<8x1xf32> to vector<8x8xf32>
    %146 = arith.subf %142, %145 : vector<8x8xf32>
    %147 = math.exp %146 : vector<8x8xf32>
    %cst_72 = arith.constant dense<0.000000e+00> : vector<8xf32>
    %148 = vector.multi_reduction <add>, %147, %cst_72 [1] : vector<8x8xf32> to vector<8xf32>
    %149 = vector.shape_cast %148 : vector<8xf32> to vector<8x1xf32>
    %150 = tpu.reciprocal %149 : vector<8x1xf32> -> vector<8x1xf32>
    %151 = vector.broadcast %150 : vector<8x1xf32> to vector<8x8xf32>
    %152 = arith.mulf %147, %151 : vector<8x8xf32>
    %153 = vector.extract_strided_slice %133 {offsets = [0, 0], sizes = [8, 8], strides = [1, 1]} : vector<8x32xf32> to vector<8x8xf32>
    %cst_73 = arith.constant dense<0.000000e+00> : vector<8x8xf32>
    %154 = tpu.matmul %152, %153, %cst_73 {dimension_numbers = #tpu.dot_dimension_numbers<[1], [0], [0], [1], [0, 0, 1, 1], [], []>} : vector<8x8xf32>, vector<8x8xf32>, vector<8x8xf32> -> vector<8x8xf32>
    %155 = vector.extract_strided_slice %18 {offsets = [0, 0], sizes = [8, 32], strides = [1, 1]} : vector<32x32xf32> to vector<8x32xf32>
    %cst_74 = arith.constant dense<0.000000e+00> : vector<8x32xf32>
    %156 = tpu.matmul %154, %155, %cst_74 {dimension_numbers = #tpu.dot_dimension_numbers<[1], [0], [0], [1], [0, 0, 1, 1], [], []>} : vector<8x8xf32>, vector<8x32xf32>, vector<8x32xf32> -> vector<8x32xf32>
    %157 = arith.addf %136, %156 : vector<8x32xf32>
    %158 = vector.extract_strided_slice %127 {offsets = [0, 8], sizes = [8, 8], strides = [1, 1]} : vector<8x32xf32> to vector<8x8xf32>
    %159 = vector.extract_strided_slice %130 {offsets = [0, 8], sizes = [8, 8], strides = [1, 1]} : vector<8x32xf32> to vector<8x8xf32>
    %160 = tpu.transpose %159, [1, 0] : vector<8x8xf32> -> vector<8x8xf32>
    %cst_75 = arith.constant dense<0.000000e+00> : vector<8x8xf32>
    %161 = tpu.matmul %158, %160, %cst_75 {dimension_numbers = #tpu.dot_dimension_numbers<[1], [0], [0], [1], [0, 0, 1, 1], [], []>} : vector<8x8xf32>, vector<8x8xf32>, vector<8x8xf32> -> vector<8x8xf32>
    %162 = vector.broadcast %122 : vector<1x8xf32> to vector<8x8xf32>
    %163 = arith.addf %161, %162 : vector<8x8xf32>
    %cst_76 = arith.constant dense<0xFF800000> : vector<8xf32>
    %164 = vector.multi_reduction <maximumf>, %163, %cst_76 [1] : vector<8x8xf32> to vector<8xf32>
    %165 = vector.shape_cast %164 : vector<8xf32> to vector<8x1xf32>
    %166 = vector.broadcast %165 : vector<8x1xf32> to vector<8x8xf32>
    %167 = arith.subf %163, %166 : vector<8x8xf32>
    %168 = math.exp %167 : vector<8x8xf32>
    %cst_77 = arith.constant dense<0.000000e+00> : vector<8xf32>
    %169 = vector.multi_reduction <add>, %168, %cst_77 [1] : vector<8x8xf32> to vector<8xf32>
    %170 = vector.shape_cast %169 : vector<8xf32> to vector<8x1xf32>
    %171 = tpu.reciprocal %170 : vector<8x1xf32> -> vector<8x1xf32>
    %172 = vector.broadcast %171 : vector<8x1xf32> to vector<8x8xf32>
    %173 = arith.mulf %168, %172 : vector<8x8xf32>
    %174 = vector.extract_strided_slice %133 {offsets = [0, 8], sizes = [8, 8], strides = [1, 1]} : vector<8x32xf32> to vector<8x8xf32>
    %cst_78 = arith.constant dense<0.000000e+00> : vector<8x8xf32>
    %175 = tpu.matmul %173, %174, %cst_78 {dimension_numbers = #tpu.dot_dimension_numbers<[1], [0], [0], [1], [0, 0, 1, 1], [], []>} : vector<8x8xf32>, vector<8x8xf32>, vector<8x8xf32> -> vector<8x8xf32>
    %176 = vector.extract_strided_slice %18 {offsets = [8, 0], sizes = [8, 32], strides = [1, 1]} : vector<32x32xf32> to vector<8x32xf32>
    %cst_79 = arith.constant dense<0.000000e+00> : vector<8x32xf32>
    %177 = tpu.matmul %175, %176, %cst_79 {dimension_numbers = #tpu.dot_dimension_numbers<[1], [0], [0], [1], [0, 0, 1, 1], [], []>} : vector<8x8xf32>, vector<8x32xf32>, vector<8x32xf32> -> vector<8x32xf32>
    %178 = arith.addf %157, %177 : vector<8x32xf32>
    %179 = vector.extract_strided_slice %127 {offsets = [0, 16], sizes = [8, 8], strides = [1, 1]} : vector<8x32xf32> to vector<8x8xf32>
    %180 = vector.extract_strided_slice %130 {offsets = [0, 16], sizes = [8, 8], strides = [1, 1]} : vector<8x32xf32> to vector<8x8xf32>
    %181 = tpu.transpose %180, [1, 0] : vector<8x8xf32> -> vector<8x8xf32>
    %cst_80 = arith.constant dense<0.000000e+00> : vector<8x8xf32>
    %182 = tpu.matmul %179, %181, %cst_80 {dimension_numbers = #tpu.dot_dimension_numbers<[1], [0], [0], [1], [0, 0, 1, 1], [], []>} : vector<8x8xf32>, vector<8x8xf32>, vector<8x8xf32> -> vector<8x8xf32>
    %183 = vector.broadcast %122 : vector<1x8xf32> to vector<8x8xf32>
    %184 = arith.addf %182, %183 : vector<8x8xf32>
    %cst_81 = arith.constant dense<0xFF800000> : vector<8xf32>
    %185 = vector.multi_reduction <maximumf>, %184, %cst_81 [1] : vector<8x8xf32> to vector<8xf32>
    %186 = vector.shape_cast %185 : vector<8xf32> to vector<8x1xf32>
    %187 = vector.broadcast %186 : vector<8x1xf32> to vector<8x8xf32>
    %188 = arith.subf %184, %187 : vector<8x8xf32>
    %189 = math.exp %188 : vector<8x8xf32>
    %cst_82 = arith.constant dense<0.000000e+00> : vector<8xf32>
    %190 = vector.multi_reduction <add>, %189, %cst_82 [1] : vector<8x8xf32> to vector<8xf32>
    %191 = vector.shape_cast %190 : vector<8xf32> to vector<8x1xf32>
    %192 = tpu.reciprocal %191 : vector<8x1xf32> -> vector<8x1xf32>
    %193 = vector.broadcast %192 : vector<8x1xf32> to vector<8x8xf32>
    %194 = arith.mulf %189, %193 : vector<8x8xf32>
    %195 = vector.extract_strided_slice %133 {offsets = [0, 16], sizes = [8, 8], strides = [1, 1]} : vector<8x32xf32> to vector<8x8xf32>
    %cst_83 = arith.constant dense<0.000000e+00> : vector<8x8xf32>
    %196 = tpu.matmul %194, %195, %cst_83 {dimension_numbers = #tpu.dot_dimension_numbers<[1], [0], [0], [1], [0, 0, 1, 1], [], []>} : vector<8x8xf32>, vector<8x8xf32>, vector<8x8xf32> -> vector<8x8xf32>
    %197 = vector.extract_strided_slice %18 {offsets = [16, 0], sizes = [8, 32], strides = [1, 1]} : vector<32x32xf32> to vector<8x32xf32>
    %cst_84 = arith.constant dense<0.000000e+00> : vector<8x32xf32>
    %198 = tpu.matmul %196, %197, %cst_84 {dimension_numbers = #tpu.dot_dimension_numbers<[1], [0], [0], [1], [0, 0, 1, 1], [], []>} : vector<8x8xf32>, vector<8x32xf32>, vector<8x32xf32> -> vector<8x32xf32>
    %199 = arith.addf %178, %198 : vector<8x32xf32>
    %200 = vector.extract_strided_slice %127 {offsets = [0, 24], sizes = [8, 8], strides = [1, 1]} : vector<8x32xf32> to vector<8x8xf32>
    %201 = vector.extract_strided_slice %130 {offsets = [0, 24], sizes = [8, 8], strides = [1, 1]} : vector<8x32xf32> to vector<8x8xf32>
    %202 = tpu.transpose %201, [1, 0] : vector<8x8xf32> -> vector<8x8xf32>
    %cst_85 = arith.constant dense<0.000000e+00> : vector<8x8xf32>
    %203 = tpu.matmul %200, %202, %cst_85 {dimension_numbers = #tpu.dot_dimension_numbers<[1], [0], [0], [1], [0, 0, 1, 1], [], []>} : vector<8x8xf32>, vector<8x8xf32>, vector<8x8xf32> -> vector<8x8xf32>
    %204 = vector.broadcast %122 : vector<1x8xf32> to vector<8x8xf32>
    %205 = arith.addf %203, %204 : vector<8x8xf32>
    %cst_86 = arith.constant dense<0xFF800000> : vector<8xf32>
    %206 = vector.multi_reduction <maximumf>, %205, %cst_86 [1] : vector<8x8xf32> to vector<8xf32>
    %207 = vector.shape_cast %206 : vector<8xf32> to vector<8x1xf32>
    %208 = vector.broadcast %207 : vector<8x1xf32> to vector<8x8xf32>
    %209 = arith.subf %205, %208 : vector<8x8xf32>
    %210 = math.exp %209 : vector<8x8xf32>
    %cst_87 = arith.constant dense<0.000000e+00> : vector<8xf32>
    %211 = vector.multi_reduction <add>, %210, %cst_87 [1] : vector<8x8xf32> to vector<8xf32>
    %212 = vector.shape_cast %211 : vector<8xf32> to vector<8x1xf32>
    %213 = tpu.reciprocal %212 : vector<8x1xf32> -> vector<8x1xf32>
    %214 = vector.broadcast %213 : vector<8x1xf32> to vector<8x8xf32>
    %215 = arith.mulf %210, %214 : vector<8x8xf32>
    %216 = vector.extract_strided_slice %133 {offsets = [0, 24], sizes = [8, 8], strides = [1, 1]} : vector<8x32xf32> to vector<8x8xf32>
    %cst_88 = arith.constant dense<0.000000e+00> : vector<8x8xf32>
    %217 = tpu.matmul %215, %216, %cst_88 {dimension_numbers = #tpu.dot_dimension_numbers<[1], [0], [0], [1], [0, 0, 1, 1], [], []>} : vector<8x8xf32>, vector<8x8xf32>, vector<8x8xf32> -> vector<8x8xf32>
    %218 = vector.extract_strided_slice %18 {offsets = [24, 0], sizes = [8, 32], strides = [1, 1]} : vector<32x32xf32> to vector<8x32xf32>
    %cst_89 = arith.constant dense<0.000000e+00> : vector<8x32xf32>
    %219 = tpu.matmul %217, %218, %cst_89 {dimension_numbers = #tpu.dot_dimension_numbers<[1], [0], [0], [1], [0, 0, 1, 1], [], []>} : vector<8x8xf32>, vector<8x32xf32>, vector<8x32xf32> -> vector<8x32xf32>
    %220 = arith.addf %199, %219 : vector<8x32xf32>
    %c0_90 = arith.constant 0 : index
    %c0_91 = arith.constant 0 : index
    %221 = vector.load %arg24[%c0_90, %c0_91] : memref<8x64xf32, #tpu.memory_space<vmem>>, vector<8x32xf32>
    tpu.vector_store %arg24[%c0_90, %c0_91], %220 {strides = array<i32>} : memref<8x64xf32, #tpu.memory_space<vmem>>, vector<8x32xf32>,
    %222 = vector.extract_strided_slice %0 {offsets = [0, 32], sizes = [8, 32], strides = [1, 1]} : vector<8x64xf32> to vector<8x32xf32>
    %223 = vector.extract_strided_slice %1 {offsets = [0, 32], sizes = [8, 32], strides = [1, 1]} : vector<8x64xf32> to vector<8x32xf32>
    %224 = vector.extract_strided_slice %2 {offsets = [1, 0], sizes = [1, 8], strides = [1, 1]} : vector<2x8xf32> to vector<1x8xf32>
    %cst_92 = arith.constant dense<0.000000e+00> : vector<8x32xf32>
    %225 = tpu.matmul %222, %4, %cst_92 {dimension_numbers = #tpu.dot_dimension_numbers<[1], [0], [0], [1], [0, 0, 1, 1], [], []>} : vector<8x32xf32>, vector<32x32xf32>, vector<8x32xf32> -> vector<8x32xf32>
    %226 = vector.broadcast %7 : vector<1x32xf32> to vector<8x32xf32>
    %227 = arith.addf %225, %226 : vector<8x32xf32>
    %cst_93 = arith.constant 0.353553385 : f32
    %228 = vector.broadcast %cst_93 : f32 to vector<8x32xf32>
    %229 = arith.mulf %227, %228 : vector<8x32xf32>
    %cst_94 = arith.constant dense<0.000000e+00> : vector<8x32xf32>
    %230 = tpu.matmul %223, %5, %cst_94 {dimension_numbers = #tpu.dot_dimension_numbers<[1], [0], [0], [1], [0, 0, 1, 1], [], []>} : vector<8x32xf32>, vector<32x32xf32>, vector<8x32xf32> -> vector<8x32xf32>
    %231 = vector.broadcast %8 : vector<1x32xf32> to vector<8x32xf32>
    %232 = arith.addf %230, %231 : vector<8x32xf32>
    %cst_95 = arith.constant dense<0.000000e+00> : vector<8x32xf32>
    %233 = tpu.matmul %223, %6, %cst_95 {dimension_numbers = #tpu.dot_dimension_numbers<[1], [0], [0], [1], [0, 0, 1, 1], [], []>} : vector<8x32xf32>, vector<32x32xf32>, vector<8x32xf32> -> vector<8x32xf32>
    %234 = vector.broadcast %9 : vector<1x32xf32> to vector<8x32xf32>
    %235 = arith.addf %233, %234 : vector<8x32xf32>
    %cst_96 = arith.constant 0.000000e+00 : f32
    %236 = vector.broadcast %cst_96 : f32 to vector<8x32xf32>
    %237 = vector.broadcast %11 : vector<1x32xf32> to vector<8x32xf32>
    %238 = arith.addf %236, %237 : vector<8x32xf32>
    %239 = vector.extract_strided_slice %229 {offsets = [0, 0], sizes = [8, 8], strides = [1, 1]} : vector<8x32xf32> to vector<8x8xf32>
    %240 = vector.extract_strided_slice %232 {offsets = [0, 0], sizes = [8, 8], strides = [1, 1]} : vector<8x32xf32> to vector<8x8xf32>
    %241 = tpu.transpose %240, [1, 0] : vector<8x8xf32> -> vector<8x8xf32>
    %cst_97 = arith.constant dense<0.000000e+00> : vector<8x8xf32>
    %242 = tpu.matmul %239, %241, %cst_97 {dimension_numbers = #tpu.dot_dimension_numbers<[1], [0], [0], [1], [0, 0, 1, 1], [], []>} : vector<8x8xf32>, vector<8x8xf32>, vector<8x8xf32> -> vector<8x8xf32>
    %243 = vector.broadcast %224 : vector<1x8xf32> to vector<8x8xf32>
    %244 = arith.addf %242, %243 : vector<8x8xf32>
    %cst_98 = arith.constant dense<0xFF800000> : vector<8xf32>
    %245 = vector.multi_reduction <maximumf>, %244, %cst_98 [1] : vector<8x8xf32> to vector<8xf32>
    %246 = vector.shape_cast %245 : vector<8xf32> to vector<8x1xf32>
    %247 = vector.broadcast %246 : vector<8x1xf32> to vector<8x8xf32>
    %248 = arith.subf %244, %247 : vector<8x8xf32>
    %249 = math.exp %248 : vector<8x8xf32>
    %cst_99 = arith.constant dense<0.000000e+00> : vector<8xf32>
    %250 = vector.multi_reduction <add>, %249, %cst_99 [1] : vector<8x8xf32> to vector<8xf32>
    %251 = vector.shape_cast %250 : vector<8xf32> to vector<8x1xf32>
    %252 = tpu.reciprocal %251 : vector<8x1xf32> -> vector<8x1xf32>
    %253 = vector.broadcast %252 : vector<8x1xf32> to vector<8x8xf32>
    %254 = arith.mulf %249, %253 : vector<8x8xf32>
    %255 = vector.extract_strided_slice %235 {offsets = [0, 0], sizes = [8, 8], strides = [1, 1]} : vector<8x32xf32> to vector<8x8xf32>
    %cst_100 = arith.constant dense<0.000000e+00> : vector<8x8xf32>
    %256 = tpu.matmul %254, %255, %cst_100 {dimension_numbers = #tpu.dot_dimension_numbers<[1], [0], [0], [1], [0, 0, 1, 1], [], []>} : vector<8x8xf32>, vector<8x8xf32>, vector<8x8xf32> -> vector<8x8xf32>
    %257 = vector.extract_strided_slice %10 {offsets = [0, 0], sizes = [8, 32], strides = [1, 1]} : vector<32x32xf32> to vector<8x32xf32>
    %cst_101 = arith.constant dense<0.000000e+00> : vector<8x32xf32>
    %258 = tpu.matmul %256, %257, %cst_101 {dimension_numbers = #tpu.dot_dimension_numbers<[1], [0], [0], [1], [0, 0, 1, 1], [], []>} : vector<8x8xf32>, vector<8x32xf32>, vector<8x32xf32> -> vector<8x32xf32>
    %259 = arith.addf %238, %258 : vector<8x32xf32>
    %260 = vector.extract_strided_slice %229 {offsets = [0, 8], sizes = [8, 8], strides = [1, 1]} : vector<8x32xf32> to vector<8x8xf32>
    %261 = vector.extract_strided_slice %232 {offsets = [0, 8], sizes = [8, 8], strides = [1, 1]} : vector<8x32xf32> to vector<8x8xf32>
    %262 = tpu.transpose %261, [1, 0] : vector<8x8xf32> -> vector<8x8xf32>
    %cst_102 = arith.constant dense<0.000000e+00> : vector<8x8xf32>
    %263 = tpu.matmul %260, %262, %cst_102 {dimension_numbers = #tpu.dot_dimension_numbers<[1], [0], [0], [1], [0, 0, 1, 1], [], []>} : vector<8x8xf32>, vector<8x8xf32>, vector<8x8xf32> -> vector<8x8xf32>
    %264 = vector.broadcast %224 : vector<1x8xf32> to vector<8x8xf32>
    %265 = arith.addf %263, %264 : vector<8x8xf32>
    %cst_103 = arith.constant dense<0xFF800000> : vector<8xf32>
    %266 = vector.multi_reduction <maximumf>, %265, %cst_103 [1] : vector<8x8xf32> to vector<8xf32>
    %267 = vector.shape_cast %266 : vector<8xf32> to vector<8x1xf32>
    %268 = vector.broadcast %267 : vector<8x1xf32> to vector<8x8xf32>
    %269 = arith.subf %265, %268 : vector<8x8xf32>
    %270 = math.exp %269 : vector<8x8xf32>
    %cst_104 = arith.constant dense<0.000000e+00> : vector<8xf32>
    %271 = vector.multi_reduction <add>, %270, %cst_104 [1] : vector<8x8xf32> to vector<8xf32>
    %272 = vector.shape_cast %271 : vector<8xf32> to vector<8x1xf32>
    %273 = tpu.reciprocal %272 : vector<8x1xf32> -> vector<8x1xf32>
    %274 = vector.broadcast %273 : vector<8x1xf32> to vector<8x8xf32>
    %275 = arith.mulf %270, %274 : vector<8x8xf32>
    %276 = vector.extract_strided_slice %235 {offsets = [0, 8], sizes = [8, 8], strides = [1, 1]} : vector<8x32xf32> to vector<8x8xf32>
    %cst_105 = arith.constant dense<0.000000e+00> : vector<8x8xf32>
    %277 = tpu.matmul %275, %276, %cst_105 {dimension_numbers = #tpu.dot_dimension_numbers<[1], [0], [0], [1], [0, 0, 1, 1], [], []>} : vector<8x8xf32>, vector<8x8xf32>, vector<8x8xf32> -> vector<8x8xf32>
    %278 = vector.extract_strided_slice %10 {offsets = [8, 0], sizes = [8, 32], strides = [1, 1]} : vector<32x32xf32> to vector<8x32xf32>
    %cst_106 = arith.constant dense<0.000000e+00> : vector<8x32xf32>
    %279 = tpu.matmul %277, %278, %cst_106 {dimension_numbers = #tpu.dot_dimension_numbers<[1], [0], [0], [1], [0, 0, 1, 1], [], []>} : vector<8x8xf32>, vector<8x32xf32>, vector<8x32xf32> -> vector<8x32xf32>
    %280 = arith.addf %259, %279 : vector<8x32xf32>
    %281 = vector.extract_strided_slice %229 {offsets = [0, 16], sizes = [8, 8], strides = [1, 1]} : vector<8x32xf32> to vector<8x8xf32>
    %282 = vector.extract_strided_slice %232 {offsets = [0, 16], sizes = [8, 8], strides = [1, 1]} : vector<8x32xf32> to vector<8x8xf32>
    %283 = tpu.transpose %282, [1, 0] : vector<8x8xf32> -> vector<8x8xf32>
    %cst_107 = arith.constant dense<0.000000e+00> : vector<8x8xf32>
    %284 = tpu.matmul %281, %283, %cst_107 {dimension_numbers = #tpu.dot_dimension_numbers<[1], [0], [0], [1], [0, 0, 1, 1], [], []>} : vector<8x8xf32>, vector<8x8xf32>, vector<8x8xf32> -> vector<8x8xf32>
    %285 = vector.broadcast %224 : vector<1x8xf32> to vector<8x8xf32>
    %286 = arith.addf %284, %285 : vector<8x8xf32>
    %cst_108 = arith.constant dense<0xFF800000> : vector<8xf32>
    %287 = vector.multi_reduction <maximumf>, %286, %cst_108 [1] : vector<8x8xf32> to vector<8xf32>
    %288 = vector.shape_cast %287 : vector<8xf32> to vector<8x1xf32>
    %289 = vector.broadcast %288 : vector<8x1xf32> to vector<8x8xf32>
    %290 = arith.subf %286, %289 : vector<8x8xf32>
    %291 = math.exp %290 : vector<8x8xf32>
    %cst_109 = arith.constant dense<0.000000e+00> : vector<8xf32>
    %292 = vector.multi_reduction <add>, %291, %cst_109 [1] : vector<8x8xf32> to vector<8xf32>
    %293 = vector.shape_cast %292 : vector<8xf32> to vector<8x1xf32>
    %294 = tpu.reciprocal %293 : vector<8x1xf32> -> vector<8x1xf32>
    %295 = vector.broadcast %294 : vector<8x1xf32> to vector<8x8xf32>
    %296 = arith.mulf %291, %295 : vector<8x8xf32>
    %297 = vector.extract_strided_slice %235 {offsets = [0, 16], sizes = [8, 8], strides = [1, 1]} : vector<8x32xf32> to vector<8x8xf32>
    %cst_110 = arith.constant dense<0.000000e+00> : vector<8x8xf32>
    %298 = tpu.matmul %296, %297, %cst_110 {dimension_numbers = #tpu.dot_dimension_numbers<[1], [0], [0], [1], [0, 0, 1, 1], [], []>} : vector<8x8xf32>, vector<8x8xf32>, vector<8x8xf32> -> vector<8x8xf32>
    %299 = vector.extract_strided_slice %10 {offsets = [16, 0], sizes = [8, 32], strides = [1, 1]} : vector<32x32xf32> to vector<8x32xf32>
    %cst_111 = arith.constant dense<0.000000e+00> : vector<8x32xf32>
    %300 = tpu.matmul %298, %299, %cst_111 {dimension_numbers = #tpu.dot_dimension_numbers<[1], [0], [0], [1], [0, 0, 1, 1], [], []>} : vector<8x8xf32>, vector<8x32xf32>, vector<8x32xf32> -> vector<8x32xf32>
    %301 = arith.addf %280, %300 : vector<8x32xf32>
    %302 = vector.extract_strided_slice %229 {offsets = [0, 24], sizes = [8, 8], strides = [1, 1]} : vector<8x32xf32> to vector<8x8xf32>
    %303 = vector.extract_strided_slice %232 {offsets = [0, 24], sizes = [8, 8], strides = [1, 1]} : vector<8x32xf32> to vector<8x8xf32>
    %304 = tpu.transpose %303, [1, 0] : vector<8x8xf32> -> vector<8x8xf32>
    %cst_112 = arith.constant dense<0.000000e+00> : vector<8x8xf32>
    %305 = tpu.matmul %302, %304, %cst_112 {dimension_numbers = #tpu.dot_dimension_numbers<[1], [0], [0], [1], [0, 0, 1, 1], [], []>} : vector<8x8xf32>, vector<8x8xf32>, vector<8x8xf32> -> vector<8x8xf32>
    %306 = vector.broadcast %224 : vector<1x8xf32> to vector<8x8xf32>
    %307 = arith.addf %305, %306 : vector<8x8xf32>
    %cst_113 = arith.constant dense<0xFF800000> : vector<8xf32>
    %308 = vector.multi_reduction <maximumf>, %307, %cst_113 [1] : vector<8x8xf32> to vector<8xf32>
    %309 = vector.shape_cast %308 : vector<8xf32> to vector<8x1xf32>
    %310 = vector.broadcast %309 : vector<8x1xf32> to vector<8x8xf32>
    %311 = arith.subf %307, %310 : vector<8x8xf32>
    %312 = math.exp %311 : vector<8x8xf32>
    %cst_114 = arith.constant dense<0.000000e+00> : vector<8xf32>
    %313 = vector.multi_reduction <add>, %312, %cst_114 [1] : vector<8x8xf32> to vector<8xf32>
    %314 = vector.shape_cast %313 : vector<8xf32> to vector<8x1xf32>
    %315 = tpu.reciprocal %314 : vector<8x1xf32> -> vector<8x1xf32>
    %316 = vector.broadcast %315 : vector<8x1xf32> to vector<8x8xf32>
    %317 = arith.mulf %312, %316 : vector<8x8xf32>
    %318 = vector.extract_strided_slice %235 {offsets = [0, 24], sizes = [8, 8], strides = [1, 1]} : vector<8x32xf32> to vector<8x8xf32>
    %cst_115 = arith.constant dense<0.000000e+00> : vector<8x8xf32>
    %319 = tpu.matmul %317, %318, %cst_115 {dimension_numbers = #tpu.dot_dimension_numbers<[1], [0], [0], [1], [0, 0, 1, 1], [], []>} : vector<8x8xf32>, vector<8x8xf32>, vector<8x8xf32> -> vector<8x8xf32>
    %320 = vector.extract_strided_slice %10 {offsets = [24, 0], sizes = [8, 32], strides = [1, 1]} : vector<32x32xf32> to vector<8x32xf32>
    %cst_116 = arith.constant dense<0.000000e+00> : vector<8x32xf32>
    %321 = tpu.matmul %319, %320, %cst_116 {dimension_numbers = #tpu.dot_dimension_numbers<[1], [0], [0], [1], [0, 0, 1, 1], [], []>} : vector<8x8xf32>, vector<8x32xf32>, vector<8x32xf32> -> vector<8x32xf32>
    %322 = arith.addf %301, %321 : vector<8x32xf32>
    %c0_117 = arith.constant 0 : index
    %c32 = arith.constant 32 : index
    %323 = vector.load %arg23[%c0_117, %c32] : memref<8x64xf32, #tpu.memory_space<vmem>>, vector<8x32xf32>
    tpu.vector_store %arg23[%c0_117, %c32], %322 {strides = array<i32>} : memref<8x64xf32, #tpu.memory_space<vmem>>, vector<8x32xf32>,
    %324 = vector.extract_strided_slice %3 {offsets = [1, 0], sizes = [1, 8], strides = [1, 1]} : vector<2x8xf32> to vector<1x8xf32>
    %cst_118 = arith.constant dense<0.000000e+00> : vector<8x32xf32>
    %325 = tpu.matmul %222, %12, %cst_118 {dimension_numbers = #tpu.dot_dimension_numbers<[1], [0], [0], [1], [0, 0, 1, 1], [], []>} : vector<8x32xf32>, vector<32x32xf32>, vector<8x32xf32> -> vector<8x32xf32>
    %326 = vector.broadcast %15 : vector<1x32xf32> to vector<8x32xf32>
    %327 = arith.addf %325, %326 : vector<8x32xf32>
    %cst_119 = arith.constant 0.353553385 : f32
    %328 = vector.broadcast %cst_119 : f32 to vector<8x32xf32>
    %329 = arith.mulf %327, %328 : vector<8x32xf32>
    %cst_120 = arith.constant dense<0.000000e+00> : vector<8x32xf32>
    %330 = tpu.matmul %222, %13, %cst_120 {dimension_numbers = #tpu.dot_dimension_numbers<[1], [0], [0], [1], [0, 0, 1, 1], [], []>} : vector<8x32xf32>, vector<32x32xf32>, vector<8x32xf32> -> vector<8x32xf32>
    %331 = vector.broadcast %16 : vector<1x32xf32> to vector<8x32xf32>
    %332 = arith.addf %330, %331 : vector<8x32xf32>
    %cst_121 = arith.constant dense<0.000000e+00> : vector<8x32xf32>
    %333 = tpu.matmul %222, %14, %cst_121 {dimension_numbers = #tpu.dot_dimension_numbers<[1], [0], [0], [1], [0, 0, 1, 1], [], []>} : vector<8x32xf32>, vector<32x32xf32>, vector<8x32xf32> -> vector<8x32xf32>
    %334 = vector.broadcast %17 : vector<1x32xf32> to vector<8x32xf32>
    %335 = arith.addf %333, %334 : vector<8x32xf32>
    %cst_122 = arith.constant 0.000000e+00 : f32
    %336 = vector.broadcast %cst_122 : f32 to vector<8x32xf32>
    %337 = vector.broadcast %19 : vector<1x32xf32> to vector<8x32xf32>
    %338 = arith.addf %336, %337 : vector<8x32xf32>
    %339 = vector.extract_strided_slice %329 {offsets = [0, 0], sizes = [8, 8], strides = [1, 1]} : vector<8x32xf32> to vector<8x8xf32>
    %340 = vector.extract_strided_slice %332 {offsets = [0, 0], sizes = [8, 8], strides = [1, 1]} : vector<8x32xf32> to vector<8x8xf32>
    %341 = tpu.transpose %340, [1, 0] : vector<8x8xf32> -> vector<8x8xf32>
    %cst_123 = arith.constant dense<0.000000e+00> : vector<8x8xf32>
    %342 = tpu.matmul %339, %341, %cst_123 {dimension_numbers = #tpu.dot_dimension_numbers<[1], [0], [0], [1], [0, 0, 1, 1], [], []>} : vector<8x8xf32>, vector<8x8xf32>, vector<8x8xf32> -> vector<8x8xf32>
    %343 = vector.broadcast %324 : vector<1x8xf32> to vector<8x8xf32>
    %344 = arith.addf %342, %343 : vector<8x8xf32>
    %cst_124 = arith.constant dense<0xFF800000> : vector<8xf32>
    %345 = vector.multi_reduction <maximumf>, %344, %cst_124 [1] : vector<8x8xf32> to vector<8xf32>
    %346 = vector.shape_cast %345 : vector<8xf32> to vector<8x1xf32>
    %347 = vector.broadcast %346 : vector<8x1xf32> to vector<8x8xf32>
    %348 = arith.subf %344, %347 : vector<8x8xf32>
    %349 = math.exp %348 : vector<8x8xf32>
    %cst_125 = arith.constant dense<0.000000e+00> : vector<8xf32>
    %350 = vector.multi_reduction <add>, %349, %cst_125 [1] : vector<8x8xf32> to vector<8xf32>
    %351 = vector.shape_cast %350 : vector<8xf32> to vector<8x1xf32>
    %352 = tpu.reciprocal %351 : vector<8x1xf32> -> vector<8x1xf32>
    %353 = vector.broadcast %352 : vector<8x1xf32> to vector<8x8xf32>
    %354 = arith.mulf %349, %353 : vector<8x8xf32>
    %355 = vector.extract_strided_slice %335 {offsets = [0, 0], sizes = [8, 8], strides = [1, 1]} : vector<8x32xf32> to vector<8x8xf32>
    %cst_126 = arith.constant dense<0.000000e+00> : vector<8x8xf32>
    %356 = tpu.matmul %354, %355, %cst_126 {dimension_numbers = #tpu.dot_dimension_numbers<[1], [0], [0], [1], [0, 0, 1, 1], [], []>} : vector<8x8xf32>, vector<8x8xf32>, vector<8x8xf32> -> vector<8x8xf32>
    %357 = vector.extract_strided_slice %18 {offsets = [0, 0], sizes = [8, 32], strides = [1, 1]} : vector<32x32xf32> to vector<8x32xf32>
    %cst_127 = arith.constant dense<0.000000e+00> : vector<8x32xf32>
    %358 = tpu.matmul %356, %357, %cst_127 {dimension_numbers = #tpu.dot_dimension_numbers<[1], [0], [0], [1], [0, 0, 1, 1], [], []>} : vector<8x8xf32>, vector<8x32xf32>, vector<8x32xf32> -> vector<8x32xf32>
    %359 = arith.addf %338, %358 : vector<8x32xf32>
    %360 = vector.extract_strided_slice %329 {offsets = [0, 8], sizes = [8, 8], strides = [1, 1]} : vector<8x32xf32> to vector<8x8xf32>
    %361 = vector.extract_strided_slice %332 {offsets = [0, 8], sizes = [8, 8], strides = [1, 1]} : vector<8x32xf32> to vector<8x8xf32>
    %362 = tpu.transpose %361, [1, 0] : vector<8x8xf32> -> vector<8x8xf32>
    %cst_128 = arith.constant dense<0.000000e+00> : vector<8x8xf32>
    %363 = tpu.matmul %360, %362, %cst_128 {dimension_numbers = #tpu.dot_dimension_numbers<[1], [0], [0], [1], [0, 0, 1, 1], [], []>} : vector<8x8xf32>, vector<8x8xf32>, vector<8x8xf32> -> vector<8x8xf32>
    %364 = vector.broadcast %324 : vector<1x8xf32> to vector<8x8xf32>
    %365 = arith.addf %363, %364 : vector<8x8xf32>
    %cst_129 = arith.constant dense<0xFF800000> : vector<8xf32>
    %366 = vector.multi_reduction <maximumf>, %365, %cst_129 [1] : vector<8x8xf32> to vector<8xf32>
    %367 = vector.shape_cast %366 : vector<8xf32> to vector<8x1xf32>
    %368 = vector.broadcast %367 : vector<8x1xf32> to vector<8x8xf32>
    %369 = arith.subf %365, %368 : vector<8x8xf32>
    %370 = math.exp %369 : vector<8x8xf32>
    %cst_130 = arith.constant dense<0.000000e+00> : vector<8xf32>
    %371 = vector.multi_reduction <add>, %370, %cst_130 [1] : vector<8x8xf32> to vector<8xf32>
    %372 = vector.shape_cast %371 : vector<8xf32> to vector<8x1xf32>
    %373 = tpu.reciprocal %372 : vector<8x1xf32> -> vector<8x1xf32>
    %374 = vector.broadcast %373 : vector<8x1xf32> to vector<8x8xf32>
    %375 = arith.mulf %370, %374 : vector<8x8xf32>
    %376 = vector.extract_strided_slice %335 {offsets = [0, 8], sizes = [8, 8], strides = [1, 1]} : vector<8x32xf32> to vector<8x8xf32>
    %cst_131 = arith.constant dense<0.000000e+00> : vector<8x8xf32>
    %377 = tpu.matmul %375, %376, %cst_131 {dimension_numbers = #tpu.dot_dimension_numbers<[1], [0], [0], [1], [0, 0, 1, 1], [], []>} : vector<8x8xf32>, vector<8x8xf32>, vector<8x8xf32> -> vector<8x8xf32>
    %378 = vector.extract_strided_slice %18 {offsets = [8, 0], sizes = [8, 32], strides = [1, 1]} : vector<32x32xf32> to vector<8x32xf32>
    %cst_132 = arith.constant dense<0.000000e+00> : vector<8x32xf32>
    %379 = tpu.matmul %377, %378, %cst_132 {dimension_numbers = #tpu.dot_dimension_numbers<[1], [0], [0], [1], [0, 0, 1, 1], [], []>} : vector<8x8xf32>, vector<8x32xf32>, vector<8x32xf32> -> vector<8x32xf32>
    %380 = arith.addf %359, %379 : vector<8x32xf32>
    %381 = vector.extract_strided_slice %329 {offsets = [0, 16], sizes = [8, 8], strides = [1, 1]} : vector<8x32xf32> to vector<8x8xf32>
    %382 = vector.extract_strided_slice %332 {offsets = [0, 16], sizes = [8, 8], strides = [1, 1]} : vector<8x32xf32> to vector<8x8xf32>
    %383 = tpu.transpose %382, [1, 0] : vector<8x8xf32> -> vector<8x8xf32>
    %cst_133 = arith.constant dense<0.000000e+00> : vector<8x8xf32>
    %384 = tpu.matmul %381, %383, %cst_133 {dimension_numbers = #tpu.dot_dimension_numbers<[1], [0], [0], [1], [0, 0, 1, 1], [], []>} : vector<8x8xf32>, vector<8x8xf32>, vector<8x8xf32> -> vector<8x8xf32>
    %385 = vector.broadcast %324 : vector<1x8xf32> to vector<8x8xf32>
    %386 = arith.addf %384, %385 : vector<8x8xf32>
    %cst_134 = arith.constant dense<0xFF800000> : vector<8xf32>
    %387 = vector.multi_reduction <maximumf>, %386, %cst_134 [1] : vector<8x8xf32> to vector<8xf32>
    %388 = vector.shape_cast %387 : vector<8xf32> to vector<8x1xf32>
    %389 = vector.broadcast %388 : vector<8x1xf32> to vector<8x8xf32>
    %390 = arith.subf %386, %389 : vector<8x8xf32>
    %391 = math.exp %390 : vector<8x8xf32>
    %cst_135 = arith.constant dense<0.000000e+00> : vector<8xf32>
    %392 = vector.multi_reduction <add>, %391, %cst_135 [1] : vector<8x8xf32> to vector<8xf32>
    %393 = vector.shape_cast %392 : vector<8xf32> to vector<8x1xf32>
    %394 = tpu.reciprocal %393 : vector<8x1xf32> -> vector<8x1xf32>
    %395 = vector.broadcast %394 : vector<8x1xf32> to vector<8x8xf32>
    %396 = arith.mulf %391, %395 : vector<8x8xf32>
    %397 = vector.extract_strided_slice %335 {offsets = [0, 16], sizes = [8, 8], strides = [1, 1]} : vector<8x32xf32> to vector<8x8xf32>
    %cst_136 = arith.constant dense<0.000000e+00> : vector<8x8xf32>
    %398 = tpu.matmul %396, %397, %cst_136 {dimension_numbers = #tpu.dot_dimension_numbers<[1], [0], [0], [1], [0, 0, 1, 1], [], []>} : vector<8x8xf32>, vector<8x8xf32>, vector<8x8xf32> -> vector<8x8xf32>
    %399 = vector.extract_strided_slice %18 {offsets = [16, 0], sizes = [8, 32], strides = [1, 1]} : vector<32x32xf32> to vector<8x32xf32>
    %cst_137 = arith.constant dense<0.000000e+00> : vector<8x32xf32>
    %400 = tpu.matmul %398, %399, %cst_137 {dimension_numbers = #tpu.dot_dimension_numbers<[1], [0], [0], [1], [0, 0, 1, 1], [], []>} : vector<8x8xf32>, vector<8x32xf32>, vector<8x32xf32> -> vector<8x32xf32>
    %401 = arith.addf %380, %400 : vector<8x32xf32>
    %402 = vector.extract_strided_slice %329 {offsets = [0, 24], sizes = [8, 8], strides = [1, 1]} : vector<8x32xf32> to vector<8x8xf32>
    %403 = vector.extract_strided_slice %332 {offsets = [0, 24], sizes = [8, 8], strides = [1, 1]} : vector<8x32xf32> to vector<8x8xf32>
    %404 = tpu.transpose %403, [1, 0] : vector<8x8xf32> -> vector<8x8xf32>
    %cst_138 = arith.constant dense<0.000000e+00> : vector<8x8xf32>
    %405 = tpu.matmul %402, %404, %cst_138 {dimension_numbers = #tpu.dot_dimension_numbers<[1], [0], [0], [1], [0, 0, 1, 1], [], []>} : vector<8x8xf32>, vector<8x8xf32>, vector<8x8xf32> -> vector<8x8xf32>
    %406 = vector.broadcast %324 : vector<1x8xf32> to vector<8x8xf32>
    %407 = arith.addf %405, %406 : vector<8x8xf32>
    %cst_139 = arith.constant dense<0xFF800000> : vector<8xf32>
    %408 = vector.multi_reduction <maximumf>, %407, %cst_139 [1] : vector<8x8xf32> to vector<8xf32>
    %409 = vector.shape_cast %408 : vector<8xf32> to vector<8x1xf32>
    %410 = vector.broadcast %409 : vector<8x1xf32> to vector<8x8xf32>
    %411 = arith.subf %407, %410 : vector<8x8xf32>
    %412 = math.exp %411 : vector<8x8xf32>
    %cst_140 = arith.constant dense<0.000000e+00> : vector<8xf32>
    %413 = vector.multi_reduction <add>, %412, %cst_140 [1] : vector<8x8xf32> to vector<8xf32>
    %414 = vector.shape_cast %413 : vector<8xf32> to vector<8x1xf32>
    %415 = tpu.reciprocal %414 : vector<8x1xf32> -> vector<8x1xf32>
    %416 = vector.broadcast %415 : vector<8x1xf32> to vector<8x8xf32>
    %417 = arith.mulf %412, %416 : vector<8x8xf32>
    %418 = vector.extract_strided_slice %335 {offsets = [0, 24], sizes = [8, 8], strides = [1, 1]} : vector<8x32xf32> to vector<8x8xf32>
    %cst_141 = arith.constant dense<0.000000e+00> : vector<8x8xf32>
    %419 = tpu.matmul %417, %418, %cst_141 {dimension_numbers = #tpu.dot_dimension_numbers<[1], [0], [0], [1], [0, 0, 1, 1], [], []>} : vector<8x8xf32>, vector<8x8xf32>, vector<8x8xf32> -> vector<8x8xf32>
    %420 = vector.extract_strided_slice %18 {offsets = [24, 0], sizes = [8, 32], strides = [1, 1]} : vector<32x32xf32> to vector<8x32xf32>
    %cst_142 = arith.constant dense<0.000000e+00> : vector<8x32xf32>
    %421 = tpu.matmul %419, %420, %cst_142 {dimension_numbers = #tpu.dot_dimension_numbers<[1], [0], [0], [1], [0, 0, 1, 1], [], []>} : vector<8x8xf32>, vector<8x32xf32>, vector<8x32xf32> -> vector<8x32xf32>
    %422 = arith.addf %401, %421 : vector<8x32xf32>
    %c0_143 = arith.constant 0 : index
    %c32_144 = arith.constant 32 : index
    %423 = vector.load %arg24[%c0_143, %c32_144] : memref<8x64xf32, #tpu.memory_space<vmem>>, vector<8x32xf32>
    tpu.vector_store %arg24[%c0_143, %c32_144], %422 {strides = array<i32>} : memref<8x64xf32, #tpu.memory_space<vmem>>, vector<8x32xf32>,
    %c0_145 = arith.constant 0 : index
    %c0_146 = arith.constant 0 : index
    %424 = vector.load %arg2[%c0_145, %c0_146] : memref<16x16xf32, #tpu.memory_space<vmem>>, vector<16x16xf32>
    %c0_147 = arith.constant 0 : index
    %c0_148 = arith.constant 0 : index
    %425 = vector.load %arg21[%c0_147, %c0_148] : memref<16x32xf32, #tpu.memory_space<vmem>>, vector<16x32xf32>
    %cst_149 = arith.constant dense<0.000000e+00> : vector<16x32xf32>
    %426 = tpu.matmul %424, %425, %cst_149 {dimension_numbers = #tpu.dot_dimension_numbers<[1], [0], [0], [1], [0, 0, 1, 1], [], []>} : vector<16x16xf32>, vector<16x32xf32>, vector<16x32xf32> -> vector<16x32xf32>
    %c0_150 = arith.constant 0 : index
    %c0_151 = arith.constant 0 : index
    %427 = vector.load %arg22[%c0_150, %c0_151] : memref<1x32xf32, #tpu.memory_space<vmem>>, vector<1x32xf32>
    %428 = vector.broadcast %427 : vector<1x32xf32> to vector<16x32xf32>
    %429 = arith.addf %426, %428 : vector<16x32xf32>
    %c0_152 = arith.constant 0 : index
    %c0_153 = arith.constant 0 : index
    %430 = vector.load %arg25[%c0_152, %c0_153] : memref<16x32xf32, #tpu.memory_space<vmem>>, vector<16x32xf32>
    tpu.vector_store %arg25[%c0_152, %c0_153], %429 {strides = array<i32>} : memref<16x32xf32, #tpu.memory_space<vmem>>, vector<16x32xf32>,
    return
  }
}

</mosaic_0001>

<llo_original>
// kernel: actora_forward.1
$region0: #{actora_forward.1}
  #allocation0 [shape = 'u32[]', space=smem, size = 0x4, offset = 0x4, fixed_abs, tag = 'smem constant byte address 0x4 - core index']
  #allocation1 [shape = 'u32[144,128]{1,0:T(1,128)}', space=vmem, size = 0x12000, scoped, tag = 'internal scratch']
  %s0 = inlined_call_operand.vmem [shape: f32[8,64], index: 0, kind: input, shape index: {}]
  %s1 = inlined_call_operand.vmem [shape: f32[8,64], index: 1, kind: input, shape index: {}]
  %s2 = inlined_call_operand.hbm [shape: f32[16,16], index: 2, kind: input, shape index: {}]
  %s3 = inlined_call_operand.vmem [shape: f32[2,8], index: 3, kind: input, shape index: {}]
  %s4 = inlined_call_operand.vmem [shape: f32[2,8], index: 4, kind: input, shape index: {}]
  %s5 = inlined_call_operand.hbm [shape: f32[32,32], index: 5, kind: input, shape index: {}]
  %s6 = inlined_call_operand.hbm [shape: f32[32,32], index: 6, kind: input, shape index: {}]
  %s7 = inlined_call_operand.hbm [shape: f32[32,32], index: 7, kind: input, shape index: {}]
  %s8 = inlined_call_operand.hbm [shape: f32[1,32], index: 8, kind: input, shape index: {}]
  %s9 = inlined_call_operand.hbm [shape: f32[1,32], index: 9, kind: input, shape index: {}]
  %s10 = inlined_call_operand.hbm [shape: f32[1,32], index: 10, kind: input, shape index: {}]
  %s11 = inlined_call_operand.hbm [shape: f32[32,32], index: 11, kind: input, shape index: {}]
  %s12 = inlined_call_operand.hbm [shape: f32[1,32], index: 12, kind: input, shape index: {}]
  %s13 = inlined_call_operand.vmem [shape: f32[32,32], index: 13, kind: input, shape index: {}]
  %s14 = inlined_call_operand.vmem [shape: f32[32,32], index: 14, kind: input, shape index: {}]
  %s15 = inlined_call_operand.vmem [shape: f32[32,32], index: 15, kind: input, shape index: {}]
  %s16 = inlined_call_operand.hbm [shape: f32[1,32], index: 16, kind: input, shape index: {}]
  %s17 = inlined_call_operand.hbm [shape: f32[1,32], index: 17, kind: input, shape index: {}]
  %s18 = inlined_call_operand.hbm [shape: f32[1,32], index: 18, kind: input, shape index: {}]
  %s19 = inlined_call_operand.vmem [shape: f32[32,32], index: 19, kind: input, shape index: {}]
  %s20 = inlined_call_operand.hbm [shape: f32[1,32], index: 20, kind: input, shape index: {}]
  %s21 = inlined_call_operand.vmem [shape: f32[16,32], index: 21, kind: input, shape index: {}]
  %s22 = inlined_call_operand.hbm [shape: f32[1,32], index: 22, kind: input, shape index: {}]
  %s23 = inlined_call_operand.vmem [shape: f32[8,64], index: 23, kind: output, shape index: {0}]
  %s24 = inlined_call_operand.vmem [shape: f32[8,64], index: 24, kind: output, shape index: {1}]
  %s25 = inlined_call_operand.hbm [shape: f32[16,32], index: 25, kind: output, shape index: {2}]
  %26 = xla_tuple %s23, %s24, %s25
  %s27 = sld [smem:[#allocation0]]
  $region174: #{actora_forward.1} parent=0
    _
  %s29 = ssub.s32 1, %s27
  %s30 = scalar_select 0, %s29, %s27
  $region1: #{actora_forward.1} parent=0
    #allocation2 [shape = 'u8[8192]{0}', space=vmem, size = 0x2000, scoped, tag = 'input window, operand 2, single buffered']
    #allocation3 [shape = 's32[1]{0}', space=sflag, size = 0x4, scoped, tag = 'scoped memory for actora_forward.1']
    #allocation4 [shape = 's32[1]{0}', space=sflag, size = 0x4, scoped, tag = 'scoped memory for actora_forward.1']
    #allocation5 [shape = 'u8[16384]{0}', space=vmem, size = 0x4000, scoped, tag = 'input window, operand 5, single buffered']
    #allocation6 [shape = 's32[1]{0}', space=sflag, size = 0x4, scoped, tag = 'scoped memory for actora_forward.1']
    #allocation7 [shape = 'u8[16384]{0}', space=vmem, size = 0x4000, scoped, tag = 'input window, operand 6, single buffered']
    #allocation8 [shape = 'u8[16384]{0}', space=vmem, size = 0x4000, scoped, tag = 'input window, operand 7, single buffered']
    #allocation9 [shape = 's32[1]{0}', space=sflag, size = 0x4, scoped, tag = 'scoped memory for actora_forward.1']
    #allocation10 [shape = 'u8[512]{0}', space=vmem, size = 0x400, scoped, tag = 'input window, operand 8, single buffered']
    #allocation11 [shape = 'u8[512]{0}', space=vmem, size = 0x400, scoped, tag = 'input window, operand 9, single buffered']
    #allocation12 [shape = 's32[1]{0}', space=sflag, size = 0x4, scoped, tag = 'scoped memory for actora_forward.1']
    #allocation13 [shape = 'u8[512]{0}', space=vmem, size = 0x400, scoped, tag = 'input window, operand 10, single buffered']
    #allocation14 [shape = 'u8[16384]{0}', space=vmem, size = 0x4000, scoped, tag = 'input window, operand 11, single buffered']
    #allocation15 [shape = 's32[1]{0}', space=sflag, size = 0x4, scoped, tag = 'scoped memory for actora_forward.1']
    #allocation16 [shape = 'u8[512]{0}', space=vmem, size = 0x400, scoped, tag = 'input window, operand 12, single buffered']
    #allocation17 [shape = 'u8[512]{0}', space=vmem, size = 0x400, scoped, tag = 'input window, operand 16, single buffered']
    #allocation18 [shape = 's32[1]{0}', space=sflag, size = 0x4, scoped, tag = 'scoped memory for actora_forward.1']
    #allocation19 [shape = 'u8[512]{0}', space=vmem, size = 0x400, scoped, tag = 'input window, operand 17, single buffered']
    #allocation20 [shape = 'u8[512]{0}', space=vmem, size = 0x400, scoped, tag = 'input window, operand 18, single buffered']
    #allocation21 [shape = 's32[1]{0}', space=sflag, size = 0x4, scoped, tag = 'scoped memory for actora_forward.1']
    #allocation22 [shape = 'u8[512]{0}', space=vmem, size = 0x400, scoped, tag = 'input window, operand 20, single buffered']
    #allocation23 [shape = 'u8[512]{0}', space=vmem, size = 0x400, scoped, tag = 'input window, operand 22, single buffered']
    #allocation24 [shape = 's32[1]{0}', space=sflag, size = 0x4, scoped, tag = 'scoped memory for actora_forward.1']
    #allocation25 [shape = 'u8[8192]{0}', space=vmem, size = 0x2000, scoped, tag = 'output window, operand 2, single buffered']
    %31 = vsyncpa [#allocation3], 0
    %32 = vsyncpa [#allocation6], 0
    %33 = vsyncpa [#allocation9], 0
    %34 = vsyncpa [#allocation12], 0
    %35 = vsyncpa [#allocation15], 0
    %36 = vsyncpa [#allocation18], 0
    %37 = vsyncpa [#allocation21], 0
    %38 = vsyncpa [#allocation24], 0
    %39 = vsyncpa [#allocation4], 0
    // Predicated region
    $region2: #{actora_forward.1} parent=1 // pred_check
      _
    $region3: #{actora_forward.1} parent=1 // pred_check_branch
      %41 = sbr.rel (0) target = $region5
    $region4: #{actora_forward.1} parent=1 // pred_region
      _
    $region5: #{actora_forward.1} parent=1 // pred_fallthru
      _
    // Predicated region
    $region6: #{actora_forward.1} parent=1 // pred_check
      _
    $region7: #{actora_forward.1} parent=1 // pred_check_branch
      %43 = sbr.rel (0) target = $region9
    $region8: #{actora_forward.1} parent=1 // pred_region
      _
    $region9: #{actora_forward.1} parent=1 // pred_fallthru
      _
    // Predicated region
    $region10: #{actora_forward.1} parent=1 // pred_check
      _
    $region11: #{actora_forward.1} parent=1 // pred_check_branch
      %45 = sbr.rel (0) target = $region13
    $region12: #{actora_forward.1} parent=1 // pred_region
      %s47 = ssub.s32 256, 256
      %48 = vsyncadd [#allocation3], %s47
      %s49 = sshll.u32 [#allocation2], 4
      %s50 = int_to_ptr.vmem [resolvable:$true] %s49
      %55 = dma.hbm_to_vmem [thread:$0]  %s2, 256, %s50, [#allocation3], 128, 128, 8
    $region13: #{actora_forward.1} parent=1 // pred_fallthru
      _
    // Predicated region
    $region14: #{actora_forward.1} parent=1 // pred_check
      _
    $region15: #{actora_forward.1} parent=1 // pred_check_branch
      %57 = sbr.rel (0) target = $region17
    $region16: #{actora_forward.1} parent=1 // pred_region
      _
    $region17: #{actora_forward.1} parent=1 // pred_fallthru
      _
    // Predicated region
    $region18: #{actora_forward.1} parent=1 // pred_check
      _
    $region19: #{actora_forward.1} parent=1 // pred_check_branch
      %59 = sbr.rel (0) target = $region21
    $region20: #{actora_forward.1} parent=1 // pred_region
      _
    $region21: #{actora_forward.1} parent=1 // pred_fallthru
      _
    // Predicated region
    $region22: #{actora_forward.1} parent=1 // pred_check
      _
    $region23: #{actora_forward.1} parent=1 // pred_check_branch
      %61 = sbr.rel (0) target = $region25
    $region24: #{actora_forward.1} parent=1 // pred_region
      %s63 = ssub.s32 512, 512
      %64 = vsyncadd [#allocation6], %s63
      %s65 = sshll.u32 [#allocation5], 4
      %s66 = int_to_ptr.vmem [resolvable:$true] %s65
      %71 = dma.hbm_to_vmem [thread:$0]  %s5, 512, %s66, [#allocation6], 128, 128, 8
    $region25: #{actora_forward.1} parent=1 // pred_fallthru
      _
    // Predicated region
    $region26: #{actora_forward.1} parent=1 // pred_check
      _
    $region27: #{actora_forward.1} parent=1 // pred_check_branch
      %73 = sbr.rel (0) target = $region29
    $region28: #{actora_forward.1} parent=1 // pred_region
      %s75 = ssub.s32 512, 512
      %76 = vsyncadd [#allocation6], %s75
      %s77 = sshll.u32 [#allocation7], 4
      %s78 = int_to_ptr.vmem [resolvable:$true] %s77
      %83 = dma.hbm_to_vmem [thread:$0]  %s6, 512, %s78, [#allocation6], 128, 128, 8
    $region29: #{actora_forward.1} parent=1 // pred_fallthru
      _
    // Predicated region
    $region30: #{actora_forward.1} parent=1 // pred_check
      _
    $region31: #{actora_forward.1} parent=1 // pred_check_branch
      %85 = sbr.rel (0) target = $region33
    $region32: #{actora_forward.1} parent=1 // pred_region
      %s87 = ssub.s32 512, 512
      %88 = vsyncadd [#allocation9], %s87
      %s89 = sshll.u32 [#allocation8], 4
      %s90 = int_to_ptr.vmem [resolvable:$true] %s89
      %95 = dma.hbm_to_vmem [thread:$0]  %s7, 512, %s90, [#allocation9], 128, 128, 8
    $region33: #{actora_forward.1} parent=1 // pred_fallthru
      _
    // Predicated region
    $region34: #{actora_forward.1} parent=1 // pred_check
      _
    $region35: #{actora_forward.1} parent=1 // pred_check_branch
      %97 = sbr.rel (0) target = $region37
    $region36: #{actora_forward.1} parent=1 // pred_region
      %s99 = ssub.s32 16, 16
      %100 = vsyncadd [#allocation9], %s99
      %s102 = sshll.u32 [#allocation10], 4
      %s103 = int_to_ptr.vmem [resolvable:$true] %s102
      %105 = dma.hbm_to_vmem [thread:$0]  %s8, 16, %s103, [#allocation9]
    $region37: #{actora_forward.1} parent=1 // pred_fallthru
      _
    // Predicated region
    $region38: #{actora_forward.1} parent=1 // pred_check
      _
    $region39: #{actora_forward.1} parent=1 // pred_check_branch
      %107 = sbr.rel (0) target = $region41
    $region40: #{actora_forward.1} parent=1 // pred_region
      %s109 = ssub.s32 16, 16
      %110 = vsyncadd [#allocation12], %s109
      %s112 = sshll.u32 [#allocation11], 4
      %s113 = int_to_ptr.vmem [resolvable:$true] %s112
      %115 = dma.hbm_to_vmem [thread:$0]  %s9, 16, %s113, [#allocation12]
    $region41: #{actora_forward.1} parent=1 // pred_fallthru
      _
    // Predicated region
    $region42: #{actora_forward.1} parent=1 // pred_check
      _
    $region43: #{actora_forward.1} parent=1 // pred_check_branch
      %117 = sbr.rel (0) target = $region45
    $region44: #{actora_forward.1} parent=1 // pred_region
      %s119 = ssub.s32 16, 16
      %120 = vsyncadd [#allocation12], %s119
      %s122 = sshll.u32 [#allocation13], 4
      %s123 = int_to_ptr.vmem [resolvable:$true] %s122
      %125 = dma.hbm_to_vmem [thread:$0]  %s10, 16, %s123, [#allocation12]
    $region45: #{actora_forward.1} parent=1 // pred_fallthru
      _
    // Predicated region
    $region46: #{actora_forward.1} parent=1 // pred_check
      _
    $region47: #{actora_forward.1} parent=1 // pred_check_branch
      %127 = sbr.rel (0) target = $region49
    $region48: #{actora_forward.1} parent=1 // pred_region
      %s129 = ssub.s32 512, 512
      %130 = vsyncadd [#allocation15], %s129
      %s131 = sshll.u32 [#allocation14], 4
      %s132 = int_to_ptr.vmem [resolvable:$true] %s131
      %137 = dma.hbm_to_vmem [thread:$0]  %s11, 512, %s132, [#allocation15], 128, 128, 8
    $region49: #{actora_forward.1} parent=1 // pred_fallthru
      _
    // Predicated region
    $region50: #{actora_forward.1} parent=1 // pred_check
      _
    $region51: #{actora_forward.1} parent=1 // pred_check_branch
      %139 = sbr.rel (0) target = $region53
    $region52: #{actora_forward.1} parent=1 // pred_region
      %s141 = ssub.s32 16, 16
      %142 = vsyncadd [#allocation15], %s141
      %s144 = sshll.u32 [#allocation16], 4
      %s145 = int_to_ptr.vmem [resolvable:$true] %s144
      %147 = dma.hbm_to_vmem [thread:$0]  %s12, 16, %s145, [#allocation15]
    $region53: #{actora_forward.1} parent=1 // pred_fallthru
      _
    // Predicated region
    $region54: #{actora_forward.1} parent=1 // pred_check
      _
    $region55: #{actora_forward.1} parent=1 // pred_check_branch
      %149 = sbr.rel (0) target = $region57
    $region56: #{actora_forward.1} parent=1 // pred_region
      _
    $region57: #{actora_forward.1} parent=1 // pred_fallthru
      _
    // Predicated region
    $region58: #{actora_forward.1} parent=1 // pred_check
      _
    $region59: #{actora_forward.1} parent=1 // pred_check_branch
      %151 = sbr.rel (0) target = $region61
    $region60: #{actora_forward.1} parent=1 // pred_region
      _
    $region61: #{actora_forward.1} parent=1 // pred_fallthru
      _
    // Predicated region
    $region62: #{actora_forward.1} parent=1 // pred_check
      _
    $region63: #{actora_forward.1} parent=1 // pred_check_branch
      %153 = sbr.rel (0) target = $region65
    $region64: #{actora_forward.1} parent=1 // pred_region
      _
    $region65: #{actora_forward.1} parent=1 // pred_fallthru
      _
    // Predicated region
    $region66: #{actora_forward.1} parent=1 // pred_check
      _
    $region67: #{actora_forward.1} parent=1 // pred_check_branch
      %155 = sbr.rel (0) target = $region69
    $region68: #{actora_forward.1} parent=1 // pred_region
      %s157 = ssub.s32 16, 16
      %158 = vsyncadd [#allocation18], %s157
      %s160 = sshll.u32 [#allocation17], 4
      %s161 = int_to_ptr.vmem [resolvable:$true] %s160
      %163 = dma.hbm_to_vmem [thread:$0]  %s16, 16, %s161, [#allocation18]
    $region69: #{actora_forward.1} parent=1 // pred_fallthru
      _
    // Predicated region
    $region70: #{actora_forward.1} parent=1 // pred_check
      _
    $region71: #{actora_forward.1} parent=1 // pred_check_branch
      %165 = sbr.rel (0) target = $region73
    $region72: #{actora_forward.1} parent=1 // pred_region
      %s167 = ssub.s32 16, 16
      %168 = vsyncadd [#allocation18], %s167
      %s170 = sshll.u32 [#allocation19], 4
      %s171 = int_to_ptr.vmem [resolvable:$true] %s170
      %173 = dma.hbm_to_vmem [thread:$0]  %s17, 16, %s171, [#allocation18]
    $region73: #{actora_forward.1} parent=1 // pred_fallthru
      _
    // Predicated region
    $region74: #{actora_forward.1} parent=1 // pred_check
      _
    $region75: #{actora_forward.1} parent=1 // pred_check_branch
      %175 = sbr.rel (0) target = $region77
    $region76: #{actora_forward.1} parent=1 // pred_region
      %s177 = ssub.s32 16, 16
      %178 = vsyncadd [#allocation21], %s177
      %s180 = sshll.u32 [#allocation20], 4
      %s181 = int_to_ptr.vmem [resolvable:$true] %s180
      %183 = dma.hbm_to_vmem [thread:$0]  %s18, 16, %s181, [#allocation21]
    $region77: #{actora_forward.1} parent=1 // pred_fallthru
      _
    // Predicated region
    $region78: #{actora_forward.1} parent=1 // pred_check
      _
    $region79: #{actora_forward.1} parent=1 // pred_check_branch
      %185 = sbr.rel (0) target = $region81
    $region80: #{actora_forward.1} parent=1 // pred_region
      _
    $region81: #{actora_forward.1} parent=1 // pred_fallthru
      _
    // Predicated region
    $region82: #{actora_forward.1} parent=1 // pred_check
      _
    $region83: #{actora_forward.1} parent=1 // pred_check_branch
      %187 = sbr.rel (0) target = $region85
    $region84: #{actora_forward.1} parent=1 // pred_region
      %s189 = ssub.s32 16, 16
      %190 = vsyncadd [#allocation21], %s189
      %s192 = sshll.u32 [#allocation22], 4
      %s193 = int_to_ptr.vmem [resolvable:$true] %s192
      %195 = dma.hbm_to_vmem [thread:$0]  %s20, 16, %s193, [#allocation21]
    $region85: #{actora_forward.1} parent=1 // pred_fallthru
      _
    // Predicated region
    $region86: #{actora_forward.1} parent=1 // pred_check
      _
    $region87: #{actora_forward.1} parent=1 // pred_check_branch
      %197 = sbr.rel (0) target = $region89
    $region88: #{actora_forward.1} parent=1 // pred_region
      _
    $region89: #{actora_forward.1} parent=1 // pred_fallthru
      _
    // Predicated region
    $region90: #{actora_forward.1} parent=1 // pred_check
      _
    $region91: #{actora_forward.1} parent=1 // pred_check_branch
      %199 = sbr.rel (0) target = $region93
    $region92: #{actora_forward.1} parent=1 // pred_region
      %s201 = ssub.s32 16, 16
      %202 = vsyncadd [#allocation24], %s201
      %s204 = sshll.u32 [#allocation23], 4
      %s205 = int_to_ptr.vmem [resolvable:$true] %s204
      %207 = dma.hbm_to_vmem [thread:$0]  %s22, 16, %s205, [#allocation24]
    $region93: #{actora_forward.1} parent=1 // pred_fallthru
      _
    // Predicated region
    $region94: #{actora_forward.1} parent=1 // pred_check
      _
    $region95: #{actora_forward.1} parent=1 // pred_check_branch
      %209 = sbr.rel (0) target = $region97
    $region96: #{actora_forward.1} parent=1 // pred_region
      %210 = dma.done [#allocation3], 256
    $region97: #{actora_forward.1} parent=1 // pred_fallthru
      _
    // Predicated region
    $region98: #{actora_forward.1} parent=1 // pred_check
      _
    $region99: #{actora_forward.1} parent=1 // pred_check_branch
      %212 = sbr.rel (0) target = $region101
    $region100: #{actora_forward.1} parent=1 // pred_region
      %213 = dma.done [#allocation6], 512
    $region101: #{actora_forward.1} parent=1 // pred_fallthru
      _
    // Predicated region
    $region102: #{actora_forward.1} parent=1 // pred_check
      _
    $region103: #{actora_forward.1} parent=1 // pred_check_branch
      %215 = sbr.rel (0) target = $region105
    $region104: #{actora_forward.1} parent=1 // pred_region
      %216 = dma.done [#allocation6], 512
    $region105: #{actora_forward.1} parent=1 // pred_fallthru
      _
    // Predicated region
    $region106: #{actora_forward.1} parent=1 // pred_check
      _
    $region107: #{actora_forward.1} parent=1 // pred_check_branch
      %218 = sbr.rel (0) target = $region109
    $region108: #{actora_forward.1} parent=1 // pred_region
      %219 = dma.done [#allocation9], 512
    $region109: #{actora_forward.1} parent=1 // pred_fallthru
      _
    // Predicated region
    $region110: #{actora_forward.1} parent=1 // pred_check
      _
    $region111: #{actora_forward.1} parent=1 // pred_check_branch
      %221 = sbr.rel (0) target = $region113
    $region112: #{actora_forward.1} parent=1 // pred_region
      %222 = dma.done [#allocation9], 16
    $region113: #{actora_forward.1} parent=1 // pred_fallthru
      _
    // Predicated region
    $region114: #{actora_forward.1} parent=1 // pred_check
      _
    $region115: #{actora_forward.1} parent=1 // pred_check_branch
      %224 = sbr.rel (0) target = $region117
    $region116: #{actora_forward.1} parent=1 // pred_region
      %225 = dma.done [#allocation12], 16
    $region117: #{actora_forward.1} parent=1 // pred_fallthru
      _
    // Predicated region
    $region118: #{actora_forward.1} parent=1 // pred_check
      _
    $region119: #{actora_forward.1} parent=1 // pred_check_branch
      %227 = sbr.rel (0) target = $region121
    $region120: #{actora_forward.1} parent=1 // pred_region
      %228 = dma.done [#allocation12], 16
    $region121: #{actora_forward.1} parent=1 // pred_fallthru
      _
    // Predicated region
    $region122: #{actora_forward.1} parent=1 // pred_check
      _
    $region123: #{actora_forward.1} parent=1 // pred_check_branch
      %230 = sbr.rel (0) target = $region125
    $region124: #{actora_forward.1} parent=1 // pred_region
      %231 = dma.done [#allocation15], 512
    $region125: #{actora_forward.1} parent=1 // pred_fallthru
      _
    // Predicated region
    $region126: #{actora_forward.1} parent=1 // pred_check
      _
    $region127: #{actora_forward.1} parent=1 // pred_check_branch
      %233 = sbr.rel (0) target = $region129
    $region128: #{actora_forward.1} parent=1 // pred_region
      %234 = dma.done [#allocation15], 16
    $region129: #{actora_forward.1} parent=1 // pred_fallthru
      _
    // Predicated region
    $region130: #{actora_forward.1} parent=1 // pred_check
      _
    $region131: #{actora_forward.1} parent=1 // pred_check_branch
      %236 = sbr.rel (0) target = $region133
    $region132: #{actora_forward.1} parent=1 // pred_region
      %237 = dma.done [#allocation18], 16
    $region133: #{actora_forward.1} parent=1 // pred_fallthru
      _
    // Predicated region
    $region134: #{actora_forward.1} parent=1 // pred_check
      _
    $region135: #{actora_forward.1} parent=1 // pred_check_branch
      %239 = sbr.rel (0) target = $region137
    $region136: #{actora_forward.1} parent=1 // pred_region
      %240 = dma.done [#allocation18], 16
    $region137: #{actora_forward.1} parent=1 // pred_fallthru
      _
    // Predicated region
    $region138: #{actora_forward.1} parent=1 // pred_check
      _
    $region139: #{actora_forward.1} parent=1 // pred_check_branch
      %242 = sbr.rel (0) target = $region141
    $region140: #{actora_forward.1} parent=1 // pred_region
      %243 = dma.done [#allocation21], 16
    $region141: #{actora_forward.1} parent=1 // pred_fallthru
      _
    // Predicated region
    $region142: #{actora_forward.1} parent=1 // pred_check
      _
    $region143: #{actora_forward.1} parent=1 // pred_check_branch
      %245 = sbr.rel (0) target = $region145
    $region144: #{actora_forward.1} parent=1 // pred_region
      %246 = dma.done [#allocation21], 16
    $region145: #{actora_forward.1} parent=1 // pred_fallthru
      _
    // Predicated region
    $region146: #{actora_forward.1} parent=1 // pred_check
      _
    $region147: #{actora_forward.1} parent=1 // pred_check_branch
      %248 = sbr.rel (0) target = $region149
    $region148: #{actora_forward.1} parent=1 // pred_region
      %249 = dma.done [#allocation24], 16
    $region149: #{actora_forward.1} parent=1 // pred_fallthru
      _
    %v250 = vld [vmem:[%s0] sm:$0xff]
    %v251 = vld [vmem:[%s1] sm:$0xff]
    %v252 = vld [vmem:[%s3] sm:$0x3]
    %v253 = vld [vmem:[%s4] sm:$0x3]
    %v254 = vld [vmem:[#allocation5] sm:$0xff]
    %v255 = vld [vmem:[#allocation5 + $0x8] sm:$0xff]
    %v256 = vld [vmem:[#allocation5 + $0x10] sm:$0xff]
    %v257 = vld [vmem:[#allocation5 + $0x18] sm:$0xff]
    %v258 = vld [vmem:[#allocation7] sm:$0xff]
    %v259 = vld [vmem:[#allocation7 + $0x8] sm:$0xff]
    %v260 = vld [vmem:[#allocation7 + $0x10] sm:$0xff]
    %v261 = vld [vmem:[#allocation7 + $0x18] sm:$0xff]
    %v262 = vld [vmem:[#allocation8] sm:$0xff]
    %v263 = vld [vmem:[#allocation8 + $0x8] sm:$0xff]
    %v264 = vld [vmem:[#allocation8 + $0x10] sm:$0xff]
    %v265 = vld [vmem:[#allocation8 + $0x18] sm:$0xff]
    %v266 = vld [vmem:[#allocation10] sm:$0x1]
    %v267 = vld [vmem:[#allocation11] sm:$0x1]
    %v268 = vld [vmem:[#allocation13] sm:$0x1]
    %v269 = vld [vmem:[#allocation14] sm:$0xff]
    %v270 = vld [vmem:[#allocation14 + $0x8] sm:$0xff]
    %v271 = vld [vmem:[#allocation14 + $0x10] sm:$0xff]
    %v272 = vld [vmem:[#allocation14 + $0x18] sm:$0xff]
    %v273 = vld [vmem:[#allocation16] sm:$0x1]
    %v274 = vld [vmem:[%s13] sm:$0xff]
    %v275 = vld [vmem:[%s13 + $0x8] sm:$0xff]
    %v276 = vld [vmem:[%s13 + $0x10] sm:$0xff]
    %v277 = vld [vmem:[%s13 + $0x18] sm:$0xff]
    %v278 = vld [vmem:[%s14] sm:$0xff]
    %v279 = vld [vmem:[%s14 + $0x8] sm:$0xff]
    %v280 = vld [vmem:[%s14 + $0x10] sm:$0xff]
    %v281 = vld [vmem:[%s14 + $0x18] sm:$0xff]
    %v282 = vld [vmem:[%s15] sm:$0xff]
    %v283 = vld [vmem:[%s15 + $0x8] sm:$0xff]
    %v284 = vld [vmem:[%s15 + $0x10] sm:$0xff]
    %v285 = vld [vmem:[%s15 + $0x18] sm:$0xff]
    %v286 = vld [vmem:[#allocation17] sm:$0x1]
    %v287 = vld [vmem:[#allocation19] sm:$0x1]
    %v288 = vld [vmem:[#allocation20] sm:$0x1]
    %v289 = vld [vmem:[%s19] sm:$0xff]
    %v290 = vld [vmem:[%s19 + $0x8] sm:$0xff]
    %v291 = vld [vmem:[%s19 + $0x10] sm:$0xff]
    %v292 = vld [vmem:[%s19 + $0x18] sm:$0xff]
    %v293 = vld [vmem:[#allocation22] sm:$0x1]
    %v295 = vlaneseq
    %v296 = vshrl.u32 %v295, 7
    %v297 = vsub.s32 0, %v296
    %v298 = vrot.slane %v266, %v297
    %vm300 = vcmask 261120
    %v302 = vsel %vm300, %v250, 0
    %304 = vmatprep.subr.mxu0 0.0
    %305 = vmatpush1.msra.mxu0 %v254
    %306 = vmatprep.subr.mxu0 0.0
    %307 = vmatpush1.msra.mxu0 %v255
    %308 = vmatprep.subr.mxu0 0.0
    %309 = vmatpush1.msra.mxu0 %v256
    %310 = vmatprep.subr.mxu0 0.0
    %311 = vmatpush1.msra.mxu0 %v257
    %312 = vmatprep.subr.mxu0 0.0
    %313 = vmatpush1.msra.mxu0 0.0
    %314 = vmatprep.subr.mxu0 0.0
    %315 = vmatpush1.msra.mxu0 0.0
    %316 = vmatprep.subr.mxu0 0.0
    %317 = vmatpush1.msra.mxu0 0.0
    %318 = vmatprep.subr.mxu0 0.0
    %319 = vmatpush1.msra.mxu0 0.0
    %320 = vmatprep.subr.mxu0 0.0
    %321 = vmatpush1.msra.mxu0 0.0
    %322 = vmatprep.subr.mxu0 0.0
    %323 = vmatpush1.msra.mxu0 0.0
    %324 = vmatprep.subr.mxu0 0.0
    %325 = vmatpush1.msra.mxu0 0.0
    %326 = vmatprep.subr.mxu0 0.0
    %327 = vmatpush1.msra.mxu0 0.0
    %328 = vmatprep.subr.mxu0 0.0
    %329 = vmatpush1.msra.mxu0 0.0
    %330 = vmatprep.subr.mxu0 0.0
    %331 = vmatpush1.msra.mxu0 0.0
    %332 = vmatprep.subr.mxu0 0.0
    %333 = vmatpush1.msra.mxu0 0.0
    %334 = vmatprep.subr.mxu0 0.0
    %335 = vmatpush1.msra.mxu0 0.0
    %336 = vmatprep.subr.mxu0 0.0
    %337 = vmatpush1.msra.mxu0 0.0
    %338 = vmatprep.subr.mxu0 0.0
    %339 = vmatpush1.msra.mxu0 0.0
    %340 = vmatprep.subr.mxu0 0.0
    %341 = vmatpush1.msra.mxu0 0.0
    %342 = vmatprep.subr.mxu0 0.0
    %343 = vmatpush1.msra.mxu0 0.0
    %344 = vmatprep.subr.mxu0 0.0
    %345 = vmatpush1.msra.mxu0 0.0
    %346 = vmatprep.subr.mxu0 0.0
    %347 = vmatpush1.msra.mxu0 0.0
    %348 = vmatprep.subr.mxu0 0.0
    %349 = vmatpush1.msra.mxu0 0.0
    %350 = vmatprep.subr.mxu0 0.0
    %351 = vmatpush1.msra.mxu0 0.0
    %352 = vmatprep.subr.mxu0 0.0
    %353 = vmatpush1.msra.mxu0 0.0
    %354 = vmatprep.subr.mxu0 0.0
    %355 = vmatpush1.msra.mxu0 0.0
    %356 = vmatprep.subr.mxu0 0.0
    %357 = vmatpush1.msra.mxu0 0.0
    %358 = vmatprep.subr.mxu0 0.0
    %359 = vmatpush1.msra.mxu0 0.0
    %360 = vmatprep.subr.mxu0 0.0
    %361 = vmatpush1.msra.mxu0 0.0
    %362 = vmatprep.subr.mxu0 0.0
    %363 = vmatpush1.msra.mxu0 0.0
    %364 = vmatprep.subr.mxu0 0.0
    %365 = vmatpush1.msra.mxu0 0.0
    %366 = vmatprep.subr.mxu0 0.0
    %367 = vmatpush1.msra.mxu0 0.0
    %368 = vmatprep.mubr.f32.mxu0 0.0
    %369 = vmatmul.mubr.f32.gmra.mrb[0].mxu0 %v302
    %v370 = vpop.f32.mrb[0].mxu0
    %v371 = vadd.f32 %v298, %v370
    %v372 = vpop.f32.mrb[0].mxu0
    %373 = vdwg.mxu0
    %v374 = vmul.f32 %v371, 0.35355338
    %v376 = vlaneseq
    %v377 = vshrl.u32 %v376, 7
    %v378 = vsub.s32 0, %v377
    %v379 = vrot.slane %v267, %v378
    %v382 = vsel %vm300, %v251, 0
    %384 = vmatprep.subr.mxu0 0.0
    %385 = vmatpush1.msra.mxu0 %v258
    %386 = vmatprep.subr.mxu0 0.0
    %387 = vmatpush1.msra.mxu0 %v259
    %388 = vmatprep.subr.mxu0 0.0
    %389 = vmatpush1.msra.mxu0 %v260
    %390 = vmatprep.subr.mxu0 0.0
    %391 = vmatpush1.msra.mxu0 %v261
    %392 = vmatprep.subr.mxu0 0.0
    %393 = vmatpush1.msra.mxu0 0.0
    %394 = vmatprep.subr.mxu0 0.0
    %395 = vmatpush1.msra.mxu0 0.0
    %396 = vmatprep.subr.mxu0 0.0
    %397 = vmatpush1.msra.mxu0 0.0
    %398 = vmatprep.subr.mxu0 0.0
    %399 = vmatpush1.msra.mxu0 0.0
    %400 = vmatprep.subr.mxu0 0.0
    %401 = vmatpush1.msra.mxu0 0.0
    %402 = vmatprep.subr.mxu0 0.0
    %403 = vmatpush1.msra.mxu0 0.0
    %404 = vmatprep.subr.mxu0 0.0
    %405 = vmatpush1.msra.mxu0 0.0
    %406 = vmatprep.subr.mxu0 0.0
    %407 = vmatpush1.msra.mxu0 0.0
    %408 = vmatprep.subr.mxu0 0.0
    %409 = vmatpush1.msra.mxu0 0.0
    %410 = vmatprep.subr.mxu0 0.0
    %411 = vmatpush1.msra.mxu0 0.0
    %412 = vmatprep.subr.mxu0 0.0
    %413 = vmatpush1.msra.mxu0 0.0
    %414 = vmatprep.subr.mxu0 0.0
    %415 = vmatpush1.msra.mxu0 0.0
    %416 = vmatprep.subr.mxu0 0.0
    %417 = vmatpush1.msra.mxu0 0.0
    %418 = vmatprep.subr.mxu0 0.0
    %419 = vmatpush1.msra.mxu0 0.0
    %420 = vmatprep.subr.mxu0 0.0
    %421 = vmatpush1.msra.mxu0 0.0
    %422 = vmatprep.subr.mxu0 0.0
    %423 = vmatpush1.msra.mxu0 0.0
    %424 = vmatprep.subr.mxu0 0.0
    %425 = vmatpush1.msra.mxu0 0.0
    %426 = vmatprep.subr.mxu0 0.0
    %427 = vmatpush1.msra.mxu0 0.0
    %428 = vmatprep.subr.mxu0 0.0
    %429 = vmatpush1.msra.mxu0 0.0
    %430 = vmatprep.subr.mxu0 0.0
    %431 = vmatpush1.msra.mxu0 0.0
    %432 = vmatprep.subr.mxu0 0.0
    %433 = vmatpush1.msra.mxu0 0.0
    %434 = vmatprep.subr.mxu0 0.0
    %435 = vmatpush1.msra.mxu0 0.0
    %436 = vmatprep.subr.mxu0 0.0
    %437 = vmatpush1.msra.mxu0 0.0
    %438 = vmatprep.subr.mxu0 0.0
    %439 = vmatpush1.msra.mxu0 0.0
    %440 = vmatprep.subr.mxu0 0.0
    %441 = vmatpush1.msra.mxu0 0.0
    %442 = vmatprep.subr.mxu0 0.0
    %443 = vmatpush1.msra.mxu0 0.0
    %444 = vmatprep.subr.mxu0 0.0
    %445 = vmatpush1.msra.mxu0 0.0
    %446 = vmatprep.subr.mxu0 0.0
    %447 = vmatpush1.msra.mxu0 0.0
    %448 = vmatprep.mubr.f32.mxu0 0.0
    %449 = vmatmul.mubr.f32.gmra.mrb[0].mxu0 %v382
    %v450 = vpop.f32.mrb[0].mxu0
    %v451 = vadd.f32 %v379, %v450
    %v452 = vpop.f32.mrb[0].mxu0
    %453 = vdwg.mxu0
    %v455 = vlaneseq
    %v456 = vshrl.u32 %v455, 7
    %v457 = vsub.s32 0, %v456
    %v458 = vrot.slane %v268, %v457
    %460 = vmatprep.subr.mxu0 0.0
    %461 = vmatpush1.msra.mxu0 %v262
    %462 = vmatprep.subr.mxu0 0.0
    %463 = vmatpush1.msra.mxu0 %v263
    %464 = vmatprep.subr.mxu0 0.0
    %465 = vmatpush1.msra.mxu0 %v264
    %466 = vmatprep.subr.mxu0 0.0
    %467 = vmatpush1.msra.mxu0 %v265
    %468 = vmatprep.subr.mxu0 0.0
    %469 = vmatpush1.msra.mxu0 0.0
    %470 = vmatprep.subr.mxu0 0.0
    %471 = vmatpush1.msra.mxu0 0.0
    %472 = vmatprep.subr.mxu0 0.0
    %473 = vmatpush1.msra.mxu0 0.0
    %474 = vmatprep.subr.mxu0 0.0
    %475 = vmatpush1.msra.mxu0 0.0
    %476 = vmatprep.subr.mxu0 0.0
    %477 = vmatpush1.msra.mxu0 0.0
    %478 = vmatprep.subr.mxu0 0.0
    %479 = vmatpush1.msra.mxu0 0.0
    %480 = vmatprep.subr.mxu0 0.0
    %481 = vmatpush1.msra.mxu0 0.0
    %482 = vmatprep.subr.mxu0 0.0
    %483 = vmatpush1.msra.mxu0 0.0
    %484 = vmatprep.subr.mxu0 0.0
    %485 = vmatpush1.msra.mxu0 0.0
    %486 = vmatprep.subr.mxu0 0.0
    %487 = vmatpush1.msra.mxu0 0.0
    %488 = vmatprep.subr.mxu0 0.0
    %489 = vmatpush1.msra.mxu0 0.0
    %490 = vmatprep.subr.mxu0 0.0
    %491 = vmatpush1.msra.mxu0 0.0
    %492 = vmatprep.subr.mxu0 0.0
    %493 = vmatpush1.msra.mxu0 0.0
    %494 = vmatprep.subr.mxu0 0.0
    %495 = vmatpush1.msra.mxu0 0.0
    %496 = vmatprep.subr.mxu0 0.0
    %497 = vmatpush1.msra.mxu0 0.0
    %498 = vmatprep.subr.mxu0 0.0
    %499 = vmatpush1.msra.mxu0 0.0
    %500 = vmatprep.subr.mxu0 0.0
    %501 = vmatpush1.msra.mxu0 0.0
    %502 = vmatprep.subr.mxu0 0.0
    %503 = vmatpush1.msra.mxu0 0.0
    %504 = vmatprep.subr.mxu0 0.0
    %505 = vmatpush1.msra.mxu0 0.0
    %506 = vmatprep.subr.mxu0 0.0
    %507 = vmatpush1.msra.mxu0 0.0
    %508 = vmatprep.subr.mxu0 0.0
    %509 = vmatpush1.msra.mxu0 0.0
    %510 = vmatprep.subr.mxu0 0.0
    %511 = vmatpush1.msra.mxu0 0.0
    %512 = vmatprep.subr.mxu0 0.0
    %513 = vmatpush1.msra.mxu0 0.0
    %514 = vmatprep.subr.mxu0 0.0
    %515 = vmatpush1.msra.mxu0 0.0
    %516 = vmatprep.subr.mxu0 0.0
    %517 = vmatpush1.msra.mxu0 0.0
    %518 = vmatprep.subr.mxu0 0.0
    %519 = vmatpush1.msra.mxu0 0.0
    %520 = vmatprep.subr.mxu0 0.0
    %521 = vmatpush1.msra.mxu0 0.0
    %522 = vmatprep.subr.mxu0 0.0
    %523 = vmatpush1.msra.mxu0 0.0
    %524 = vmatprep.mubr.f32.mxu0 0.0
    %525 = vmatmul.mubr.f32.gmra.mrb[0].mxu0 %v382
    %v526 = vpop.f32.mrb[0].mxu0
    %v527 = vadd.f32 %v458, %v526
    %v528 = vpop.f32.mrb[0].mxu0
    %529 = vdwg.mxu0
    %v531 = vlaneseq
    %v532 = vshrl.u32 %v531, 7
    %v533 = vsub.s32 0, %v532
    %v534 = vrot.slane %v273, %v533
    %v536 = vadd.f32 %v534, 0.0
    %v537 = vlaneseq
    %v538 = vshrl.u32 %v537, 7
    %v539 = vsub.s32 0, %v538
    %v540 = vrot.slane %v252, %v539
    %vm541 = vcmask 64512
    %v543 = vsel %vm541, %v374, 0
    %v546 = vsel %vm541, %v451, 0
    %548 = vmatprep.subr.mxu0 0.0
    %549 = vmatpush1.xpose.msra.mxu0 %v546
    %550 = vmatprep.subr.mxu0 0.0
    %551 = vmatpush1.xpose.msra.mxu0 0.0
    %552 = vmatprep.subr.mxu0 0.0
    %553 = vmatpush1.xpose.msra.mxu0 0.0
    %554 = vmatprep.subr.mxu0 0.0
    %555 = vmatpush1.xpose.msra.mxu0 0.0
    %556 = vmatprep.subr.mxu0 0.0
    %557 = vmatpush1.xpose.msra.mxu0 0.0
    %558 = vmatprep.subr.mxu0 0.0
    %559 = vmatpush1.xpose.msra.mxu0 0.0
    %560 = vmatprep.subr.mxu0 0.0
    %561 = vmatpush1.xpose.msra.mxu0 0.0
    %562 = vmatprep.subr.mxu0 0.0
    %563 = vmatpush1.xpose.msra.mxu0 0.0
    %564 = vmatprep.subr.mxu0 0.0
    %565 = vmatpush1.xpose.msra.mxu0 0.0
    %566 = vmatprep.subr.mxu0 0.0
    %567 = vmatpush1.xpose.msra.mxu0 0.0
    %568 = vmatprep.subr.mxu0 0.0
    %569 = vmatpush1.xpose.msra.mxu0 0.0
    %570 = vmatprep.subr.mxu0 0.0
    %571 = vmatpush1.xpose.msra.mxu0 0.0
    %572 = vmatprep.subr.mxu0 0.0
    %573 = vmatpush1.xpose.msra.mxu0 0.0
    %574 = vmatprep.subr.mxu0 0.0
    %575 = vmatpush1.xpose.msra.mxu0 0.0
    %576 = vmatprep.subr.mxu0 0.0
    %577 = vmatpush1.xpose.msra.mxu0 0.0
    %578 = vmatprep.subr.mxu0 0.0
    %579 = vmatpush1.xpose.msra.mxu0 0.0
    %580 = vmatprep.subr.mxu0 0.0
    %581 = vmatpush1.xpose.msra.mxu0 0.0
    %582 = vmatprep.subr.mxu0 0.0
    %583 = vmatpush1.xpose.msra.mxu0 0.0
    %584 = vmatprep.subr.mxu0 0.0
    %585 = vmatpush1.xpose.msra.mxu0 0.0
    %586 = vmatprep.subr.mxu0 0.0
    %587 = vmatpush1.xpose.msra.mxu0 0.0
    %588 = vmatprep.subr.mxu0 0.0
    %589 = vmatpush1.xpose.msra.mxu0 0.0
    %590 = vmatprep.subr.mxu0 0.0
    %591 = vmatpush1.xpose.msra.mxu0 0.0
    %592 = vmatprep.subr.mxu0 0.0
    %593 = vmatpush1.xpose.msra.mxu0 0.0
    %594 = vmatprep.subr.mxu0 0.0
    %595 = vmatpush1.xpose.msra.mxu0 0.0
    %596 = vmatprep.subr.mxu0 0.0
    %597 = vmatpush1.xpose.msra.mxu0 0.0
    %598 = vmatprep.subr.mxu0 0.0
    %599 = vmatpush1.xpose.msra.mxu0 0.0
    %600 = vmatprep.subr.mxu0 0.0
    %601 = vmatpush1.xpose.msra.mxu0 0.0
    %602 = vmatprep.subr.mxu0 0.0
    %603 = vmatpush1.xpose.msra.mxu0 0.0
    %604 = vmatprep.subr.mxu0 0.0
    %605 = vmatpush1.xpose.msra.mxu0 0.0
    %606 = vmatprep.subr.mxu0 0.0
    %607 = vmatpush1.xpose.msra.mxu0 0.0
    %608 = vmatprep.subr.mxu0 0.0
    %609 = vmatpush1.xpose.msra.mxu0 0.0
    %610 = vmatprep.subr.mxu0 0.0
    %611 = vmatpush1.xpose.msra.mxu0 0.0
    %612 = vmatprep.mubr.f32.mxu0 0.0
    %613 = vmatmul.mubr.f32.gmra.mrb[0].mxu0 %v543
    %v614 = vpop.f32.mrb[0].mxu0
    %v615 = vadd.f32 %v540, %v614
    %v616 = vpop.f32.mrb[0].mxu0
    %617 = vdwg.mxu0
    %v618 = vsel %vm541, %v615, -inf
    %619 = vmax.xlane.f32.xlu0 %v618
    %v620 = vpop.xlane.xlu0 %619
    %v621 = vsub.f32 %v615, %v620
    %v622 = vmul.f32 %v621, 1.442695
    %v623 = vpow.pop %v622
    %v624 = vsel %vm541, %v623, 0.0
    %625 = vadd.xlane.f32.xlu0 %v624
    %v626 = vpop.xlane.xlu0 %625
    %v627 = vrcp.pop %v626
    %v628 = vmul.f32 %v623, %v627
    %v630 = vsel %vm541, %v628, 0
    %632 = vmatprep.subr.mxu0 0.0
    %633 = vmatpush1.msra.mxu0 %v527
    %634 = vmatprep.subr.mxu0 0.0
    %635 = vmatpush1.msra.mxu0 0.0
    %636 = vmatprep.subr.mxu0 0.0
    %637 = vmatpush1.msra.mxu0 0.0
    %638 = vmatprep.subr.mxu0 0.0
    %639 = vmatpush1.msra.mxu0 0.0
    %640 = vmatprep.subr.mxu0 0.0
    %641 = vmatpush1.msra.mxu0 0.0
    %642 = vmatprep.subr.mxu0 0.0
    %643 = vmatpush1.msra.mxu0 0.0
    %644 = vmatprep.subr.mxu0 0.0
    %645 = vmatpush1.msra.mxu0 0.0
    %646 = vmatprep.subr.mxu0 0.0
    %647 = vmatpush1.msra.mxu0 0.0
    %648 = vmatprep.subr.mxu0 0.0
    %649 = vmatpush1.msra.mxu0 0.0
    %650 = vmatprep.subr.mxu0 0.0
    %651 = vmatpush1.msra.mxu0 0.0
    %652 = vmatprep.subr.mxu0 0.0
    %653 = vmatpush1.msra.mxu0 0.0
    %654 = vmatprep.subr.mxu0 0.0
    %655 = vmatpush1.msra.mxu0 0.0
    %656 = vmatprep.subr.mxu0 0.0
    %657 = vmatpush1.msra.mxu0 0.0
    %658 = vmatprep.subr.mxu0 0.0
    %659 = vmatpush1.msra.mxu0 0.0
    %660 = vmatprep.subr.mxu0 0.0
    %661 = vmatpush1.msra.mxu0 0.0
    %662 = vmatprep.subr.mxu0 0.0
    %663 = vmatpush1.msra.mxu0 0.0
    %664 = vmatprep.subr.mxu0 0.0
    %665 = vmatpush1.msra.mxu0 0.0
    %666 = vmatprep.subr.mxu0 0.0
    %667 = vmatpush1.msra.mxu0 0.0
    %668 = vmatprep.subr.mxu0 0.0
    %669 = vmatpush1.msra.mxu0 0.0
    %670 = vmatprep.subr.mxu0 0.0
    %671 = vmatpush1.msra.mxu0 0.0
    %672 = vmatprep.subr.mxu0 0.0
    %673 = vmatpush1.msra.mxu0 0.0
    %674 = vmatprep.subr.mxu0 0.0
    %675 = vmatpush1.msra.mxu0 0.0
    %676 = vmatprep.subr.mxu0 0.0
    %677 = vmatpush1.msra.mxu0 0.0
    %678 = vmatprep.subr.mxu0 0.0
    %679 = vmatpush1.msra.mxu0 0.0
    %680 = vmatprep.subr.mxu0 0.0
    %681 = vmatpush1.msra.mxu0 0.0
    %682 = vmatprep.subr.mxu0 0.0
    %683 = vmatpush1.msra.mxu0 0.0
    %684 = vmatprep.subr.mxu0 0.0
    %685 = vmatpush1.msra.mxu0 0.0
    %686 = vmatprep.subr.mxu0 0.0
    %687 = vmatpush1.msra.mxu0 0.0
    %688 = vmatprep.subr.mxu0 0.0
    %689 = vmatpush1.msra.mxu0 0.0
    %690 = vmatprep.subr.mxu0 0.0
    %691 = vmatpush1.msra.mxu0 0.0
    %692 = vmatprep.subr.mxu0 0.0
    %693 = vmatpush1.msra.mxu0 0.0
    %694 = vmatprep.subr.mxu0 0.0
    %695 = vmatpush1.msra.mxu0 0.0
    %696 = vmatprep.mubr.f32.mxu0 0.0
    %697 = vmatmul.mubr.f32.gmra.mrb[0].mxu0 %v630
    %v698 = vpop.f32.mrb[0].mxu0
    %v699 = vadd.f32 0.0, %v698
    %v700 = vpop.f32.mrb[0].mxu0
    %701 = vdwg.mxu0
    %v703 = vsel %vm541, %v699, 0
    %705 = vmatprep.subr.mxu0 0.0
    %706 = vmatpush1.msra.mxu0 %v269
    %707 = vmatprep.subr.mxu0 0.0
    %708 = vmatpush1.msra.mxu0 0.0
    %709 = vmatprep.subr.mxu0 0.0
    %710 = vmatpush1.msra.mxu0 0.0
    %711 = vmatprep.subr.mxu0 0.0
    %712 = vmatpush1.msra.mxu0 0.0
    %713 = vmatprep.subr.mxu0 0.0
    %714 = vmatpush1.msra.mxu0 0.0
    %715 = vmatprep.subr.mxu0 0.0
    %716 = vmatpush1.msra.mxu0 0.0
    %717 = vmatprep.subr.mxu0 0.0
    %718 = vmatpush1.msra.mxu0 0.0
    %719 = vmatprep.subr.mxu0 0.0
    %720 = vmatpush1.msra.mxu0 0.0
    %721 = vmatprep.subr.mxu0 0.0
    %722 = vmatpush1.msra.mxu0 0.0
    %723 = vmatprep.subr.mxu0 0.0
    %724 = vmatpush1.msra.mxu0 0.0
    %725 = vmatprep.subr.mxu0 0.0
    %726 = vmatpush1.msra.mxu0 0.0
    %727 = vmatprep.subr.mxu0 0.0
    %728 = vmatpush1.msra.mxu0 0.0
    %729 = vmatprep.subr.mxu0 0.0
    %730 = vmatpush1.msra.mxu0 0.0
    %731 = vmatprep.subr.mxu0 0.0
    %732 = vmatpush1.msra.mxu0 0.0
    %733 = vmatprep.subr.mxu0 0.0
    %734 = vmatpush1.msra.mxu0 0.0
    %735 = vmatprep.subr.mxu0 0.0
    %736 = vmatpush1.msra.mxu0 0.0
    %737 = vmatprep.subr.mxu0 0.0
    %738 = vmatpush1.msra.mxu0 0.0
    %739 = vmatprep.subr.mxu0 0.0
    %740 = vmatpush1.msra.mxu0 0.0
    %741 = vmatprep.subr.mxu0 0.0
    %742 = vmatpush1.msra.mxu0 0.0
    %743 = vmatprep.subr.mxu0 0.0
    %744 = vmatpush1.msra.mxu0 0.0
    %745 = vmatprep.subr.mxu0 0.0
    %746 = vmatpush1.msra.mxu0 0.0
    %747 = vmatprep.subr.mxu0 0.0
    %748 = vmatpush1.msra.mxu0 0.0
    %749 = vmatprep.subr.mxu0 0.0
    %750 = vmatpush1.msra.mxu0 0.0
    %751 = vmatprep.subr.mxu0 0.0
    %752 = vmatpush1.msra.mxu0 0.0
    %753 = vmatprep.subr.mxu0 0.0
    %754 = vmatpush1.msra.mxu0 0.0
    %755 = vmatprep.subr.mxu0 0.0
    %756 = vmatpush1.msra.mxu0 0.0
    %757 = vmatprep.subr.mxu0 0.0
    %758 = vmatpush1.msra.mxu0 0.0
    %759 = vmatprep.subr.mxu0 0.0
    %760 = vmatpush1.msra.mxu0 0.0
    %761 = vmatprep.subr.mxu0 0.0
    %762 = vmatpush1.msra.mxu0 0.0
    %763 = vmatprep.subr.mxu0 0.0
    %764 = vmatpush1.msra.mxu0 0.0
    %765 = vmatprep.subr.mxu0 0.0
    %766 = vmatpush1.msra.mxu0 0.0
    %767 = vmatprep.subr.mxu0 0.0
    %768 = vmatpush1.msra.mxu0 0.0
    %769 = vmatprep.mubr.f32.mxu0 0.0
    %770 = vmatmul.mubr.f32.gmra.mrb[0].mxu0 %v703
    %v771 = vpop.f32.mrb[0].mxu0
    %v772 = vadd.f32 0.0, %v771
    %v773 = vpop.f32.mrb[0].mxu0
    %774 = vdwg.mxu0
    %v775 = vadd.f32 %v536, %v772
    %776 = vrot.lane.b32.xlu0 %v374, 120
    %v777 = vpop.permute.xlu0 %776
    %778 = vrot.lane.b32.xlu0 %v451, 120
    %v779 = vpop.permute.xlu0 %778
    %v780 = vsel %vm541, %v777, 0
    %v782 = vsel %vm541, %v779, 0
    %784 = vmatprep.subr.mxu0 0.0
    %785 = vmatpush1.xpose.msra.mxu0 %v782
    %786 = vmatprep.subr.mxu0 0.0
    %787 = vmatpush1.xpose.msra.mxu0 0.0
    %788 = vmatprep.subr.mxu0 0.0
    %789 = vmatpush1.xpose.msra.mxu0 0.0
    %790 = vmatprep.subr.mxu0 0.0
    %791 = vmatpush1.xpose.msra.mxu0 0.0
    %792 = vmatprep.subr.mxu0 0.0
    %793 = vmatpush1.xpose.msra.mxu0 0.0
    %794 = vmatprep.subr.mxu0 0.0
    %795 = vmatpush1.xpose.msra.mxu0 0.0
    %796 = vmatprep.subr.mxu0 0.0
    %797 = vmatpush1.xpose.msra.mxu0 0.0
    %798 = vmatprep.subr.mxu0 0.0
    %799 = vmatpush1.xpose.msra.mxu0 0.0
    %800 = vmatprep.subr.mxu0 0.0
    %801 = vmatpush1.xpose.msra.mxu0 0.0
    %802 = vmatprep.subr.mxu0 0.0
    %803 = vmatpush1.xpose.msra.mxu0 0.0
    %804 = vmatprep.subr.mxu0 0.0
    %805 = vmatpush1.xpose.msra.mxu0 0.0
    %806 = vmatprep.subr.mxu0 0.0
    %807 = vmatpush1.xpose.msra.mxu0 0.0
    %808 = vmatprep.subr.mxu0 0.0
    %809 = vmatpush1.xpose.msra.mxu0 0.0
    %810 = vmatprep.subr.mxu0 0.0
    %811 = vmatpush1.xpose.msra.mxu0 0.0
    %812 = vmatprep.subr.mxu0 0.0
    %813 = vmatpush1.xpose.msra.mxu0 0.0
    %814 = vmatprep.subr.mxu0 0.0
    %815 = vmatpush1.xpose.msra.mxu0 0.0
    %816 = vmatprep.subr.mxu0 0.0
    %817 = vmatpush1.xpose.msra.mxu0 0.0
    %818 = vmatprep.subr.mxu0 0.0
    %819 = vmatpush1.xpose.msra.mxu0 0.0
    %820 = vmatprep.subr.mxu0 0.0
    %821 = vmatpush1.xpose.msra.mxu0 0.0
    %822 = vmatprep.subr.mxu0 0.0
    %823 = vmatpush1.xpose.msra.mxu0 0.0
    %824 = vmatprep.subr.mxu0 0.0
    %825 = vmatpush1.xpose.msra.mxu0 0.0
    %826 = vmatprep.subr.mxu0 0.0
    %827 = vmatpush1.xpose.msra.mxu0 0.0
    %828 = vmatprep.subr.mxu0 0.0
    %829 = vmatpush1.xpose.msra.mxu0 0.0
    %830 = vmatprep.subr.mxu0 0.0
    %831 = vmatpush1.xpose.msra.mxu0 0.0
    %832 = vmatprep.subr.mxu0 0.0
    %833 = vmatpush1.xpose.msra.mxu0 0.0
    %834 = vmatprep.subr.mxu0 0.0
    %835 = vmatpush1.xpose.msra.mxu0 0.0
    %836 = vmatprep.subr.mxu0 0.0
    %837 = vmatpush1.xpose.msra.mxu0 0.0
    %838 = vmatprep.subr.mxu0 0.0
    %839 = vmatpush1.xpose.msra.mxu0 0.0
    %840 = vmatprep.subr.mxu0 0.0
    %841 = vmatpush1.xpose.msra.mxu0 0.0
    %842 = vmatprep.subr.mxu0 0.0
    %843 = vmatpush1.xpose.msra.mxu0 0.0
    %844 = vmatprep.subr.mxu0 0.0
    %845 = vmatpush1.xpose.msra.mxu0 0.0
    %846 = vmatprep.subr.mxu0 0.0
    %847 = vmatpush1.xpose.msra.mxu0 0.0
    %848 = vmatprep.mubr.f32.mxu0 0.0
    %849 = vmatmul.mubr.f32.gmra.mrb[0].mxu0 %v780
    %v850 = vpop.f32.mrb[0].mxu0
    %v851 = vadd.f32 %v540, %v850
    %v852 = vpop.f32.mrb[0].mxu0
    %853 = vdwg.mxu0
    %v854 = vsel %vm541, %v851, -inf
    %855 = vmax.xlane.f32.xlu0 %v854
    %v856 = vpop.xlane.xlu0 %855
    %v857 = vsub.f32 %v851, %v856
    %v858 = vmul.f32 %v857, 1.442695
    %v859 = vpow.pop %v858
    %v860 = vsel %vm541, %v859, 0.0
    %861 = vadd.xlane.f32.xlu0 %v860
    %v862 = vpop.xlane.xlu0 %861
    %v863 = vrcp.pop %v862
    %v864 = vmul.f32 %v859, %v863
    %866 = vrot.lane.b32.xlu0 %v527, 120
    %v867 = vpop.permute.xlu0 %866
    %v870 = vsel %vm541, %v864, 0
    %872 = vmatprep.subr.mxu0 0.0
    %873 = vmatpush1.msra.mxu0 %v867
    %874 = vmatprep.subr.mxu0 0.0
    %875 = vmatpush1.msra.mxu0 0.0
    %876 = vmatprep.subr.mxu0 0.0
    %877 = vmatpush1.msra.mxu0 0.0
    %878 = vmatprep.subr.mxu0 0.0
    %879 = vmatpush1.msra.mxu0 0.0
    %880 = vmatprep.subr.mxu0 0.0
    %881 = vmatpush1.msra.mxu0 0.0
    %882 = vmatprep.subr.mxu0 0.0
    %883 = vmatpush1.msra.mxu0 0.0
    %884 = vmatprep.subr.mxu0 0.0
    %885 = vmatpush1.msra.mxu0 0.0
    %886 = vmatprep.subr.mxu0 0.0
    %887 = vmatpush1.msra.mxu0 0.0
    %888 = vmatprep.subr.mxu0 0.0
    %889 = vmatpush1.msra.mxu0 0.0
    %890 = vmatprep.subr.mxu0 0.0
    %891 = vmatpush1.msra.mxu0 0.0
    %892 = vmatprep.subr.mxu0 0.0
    %893 = vmatpush1.msra.mxu0 0.0
    %894 = vmatprep.subr.mxu0 0.0
    %895 = vmatpush1.msra.mxu0 0.0
    %896 = vmatprep.subr.mxu0 0.0
    %897 = vmatpush1.msra.mxu0 0.0
    %898 = vmatprep.subr.mxu0 0.0
    %899 = vmatpush1.msra.mxu0 0.0
    %900 = vmatprep.subr.mxu0 0.0
    %901 = vmatpush1.msra.mxu0 0.0
    %902 = vmatprep.subr.mxu0 0.0
    %903 = vmatpush1.msra.mxu0 0.0
    %904 = vmatprep.subr.mxu0 0.0
    %905 = vmatpush1.msra.mxu0 0.0
    %906 = vmatprep.subr.mxu0 0.0
    %907 = vmatpush1.msra.mxu0 0.0
    %908 = vmatprep.subr.mxu0 0.0
    %909 = vmatpush1.msra.mxu0 0.0
    %910 = vmatprep.subr.mxu0 0.0
    %911 = vmatpush1.msra.mxu0 0.0
    %912 = vmatprep.subr.mxu0 0.0
    %913 = vmatpush1.msra.mxu0 0.0
    %914 = vmatprep.subr.mxu0 0.0
    %915 = vmatpush1.msra.mxu0 0.0
    %916 = vmatprep.subr.mxu0 0.0
    %917 = vmatpush1.msra.mxu0 0.0
    %918 = vmatprep.subr.mxu0 0.0
    %919 = vmatpush1.msra.mxu0 0.0
    %920 = vmatprep.subr.mxu0 0.0
    %921 = vmatpush1.msra.mxu0 0.0
    %922 = vmatprep.subr.mxu0 0.0
    %923 = vmatpush1.msra.mxu0 0.0
    %924 = vmatprep.subr.mxu0 0.0
    %925 = vmatpush1.msra.mxu0 0.0
    %926 = vmatprep.subr.mxu0 0.0
    %927 = vmatpush1.msra.mxu0 0.0
    %928 = vmatprep.subr.mxu0 0.0
    %929 = vmatpush1.msra.mxu0 0.0
    %930 = vmatprep.subr.mxu0 0.0
    %931 = vmatpush1.msra.mxu0 0.0
    %932 = vmatprep.subr.mxu0 0.0
    %933 = vmatpush1.msra.mxu0 0.0
    %934 = vmatprep.subr.mxu0 0.0
    %935 = vmatpush1.msra.mxu0 0.0
    %936 = vmatprep.mubr.f32.mxu0 0.0
    %937 = vmatmul.mubr.f32.gmra.mrb[0].mxu0 %v870
    %v938 = vpop.f32.mrb[0].mxu0
    %v939 = vadd.f32 0.0, %v938
    %v940 = vpop.f32.mrb[0].mxu0
    %941 = vdwg.mxu0
    %v943 = vsel %vm541, %v939, 0
    %945 = vmatprep.subr.mxu0 0.0
    %946 = vmatpush1.msra.mxu0 %v270
    %947 = vmatprep.subr.mxu0 0.0
    %948 = vmatpush1.msra.mxu0 0.0
    %949 = vmatprep.subr.mxu0 0.0
    %950 = vmatpush1.msra.mxu0 0.0
    %951 = vmatprep.subr.mxu0 0.0
    %952 = vmatpush1.msra.mxu0 0.0
    %953 = vmatprep.subr.mxu0 0.0
    %954 = vmatpush1.msra.mxu0 0.0
    %955 = vmatprep.subr.mxu0 0.0
    %956 = vmatpush1.msra.mxu0 0.0
    %957 = vmatprep.subr.mxu0 0.0
    %958 = vmatpush1.msra.mxu0 0.0
    %959 = vmatprep.subr.mxu0 0.0
    %960 = vmatpush1.msra.mxu0 0.0
    %961 = vmatprep.subr.mxu0 0.0
    %962 = vmatpush1.msra.mxu0 0.0
    %963 = vmatprep.subr.mxu0 0.0
    %964 = vmatpush1.msra.mxu0 0.0
    %965 = vmatprep.subr.mxu0 0.0
    %966 = vmatpush1.msra.mxu0 0.0
    %967 = vmatprep.subr.mxu0 0.0
    %968 = vmatpush1.msra.mxu0 0.0
    %969 = vmatprep.subr.mxu0 0.0
    %970 = vmatpush1.msra.mxu0 0.0
    %971 = vmatprep.subr.mxu0 0.0
    %972 = vmatpush1.msra.mxu0 0.0
    %973 = vmatprep.subr.mxu0 0.0
    %974 = vmatpush1.msra.mxu0 0.0
    %975 = vmatprep.subr.mxu0 0.0
    %976 = vmatpush1.msra.mxu0 0.0
    %977 = vmatprep.subr.mxu0 0.0
    %978 = vmatpush1.msra.mxu0 0.0
    %979 = vmatprep.subr.mxu0 0.0
    %980 = vmatpush1.msra.mxu0 0.0
    %981 = vmatprep.subr.mxu0 0.0
    %982 = vmatpush1.msra.mxu0 0.0
    %983 = vmatprep.subr.mxu0 0.0
    %984 = vmatpush1.msra.mxu0 0.0
    %985 = vmatprep.subr.mxu0 0.0
    %986 = vmatpush1.msra.mxu0 0.0
    %987 = vmatprep.subr.mxu0 0.0
    %988 = vmatpush1.msra.mxu0 0.0
    %989 = vmatprep.subr.mxu0 0.0
    %990 = vmatpush1.msra.mxu0 0.0
    %991 = vmatprep.subr.mxu0 0.0
    %992 = vmatpush1.msra.mxu0 0.0
    %993 = vmatprep.subr.mxu0 0.0
    %994 = vmatpush1.msra.mxu0 0.0
    %995 = vmatprep.subr.mxu0 0.0
    %996 = vmatpush1.msra.mxu0 0.0
    %997 = vmatprep.subr.mxu0 0.0
    %998 = vmatpush1.msra.mxu0 0.0
    %999 = vmatprep.subr.mxu0 0.0
    %1000 = vmatpush1.msra.mxu0 0.0
    %1001 = vmatprep.subr.mxu0 0.0
    %1002 = vmatpush1.msra.mxu0 0.0
    %1003 = vmatprep.subr.mxu0 0.0
    %1004 = vmatpush1.msra.mxu0 0.0
    %1005 = vmatprep.subr.mxu0 0.0
    %1006 = vmatpush1.msra.mxu0 0.0
    %1007 = vmatprep.subr.mxu0 0.0
    %1008 = vmatpush1.msra.mxu0 0.0
    %1009 = vmatprep.mubr.f32.mxu0 0.0
    %1010 = vmatmul.mubr.f32.gmra.mrb[0].mxu0 %v943
    %v1011 = vpop.f32.mrb[0].mxu0
    %v1012 = vadd.f32 0.0, %v1011
    %v1013 = vpop.f32.mrb[0].mxu0
    %1014 = vdwg.mxu0
    %v1015 = vadd.f32 %v775, %v1012
    %1016 = vrot.lane.b32.xlu0 %v374, 112
    %v1017 = vpop.permute.xlu0 %1016
    %1018 = vrot.lane.b32.xlu0 %v451, 112
    %v1019 = vpop.permute.xlu0 %1018
    %v1020 = vsel %vm541, %v1017, 0
    %v1022 = vsel %vm541, %v1019, 0
    %1024 = vmatprep.subr.mxu0 0.0
    %1025 = vmatpush1.xpose.msra.mxu0 %v1022
    %1026 = vmatprep.subr.mxu0 0.0
    %1027 = vmatpush1.xpose.msra.mxu0 0.0
    %1028 = vmatprep.subr.mxu0 0.0
    %1029 = vmatpush1.xpose.msra.mxu0 0.0
    %1030 = vmatprep.subr.mxu0 0.0
    %1031 = vmatpush1.xpose.msra.mxu0 0.0
    %1032 = vmatprep.subr.mxu0 0.0
    %1033 = vmatpush1.xpose.msra.mxu0 0.0
    %1034 = vmatprep.subr.mxu0 0.0
    %1035 = vmatpush1.xpose.msra.mxu0 0.0
    %1036 = vmatprep.subr.mxu0 0.0
    %1037 = vmatpush1.xpose.msra.mxu0 0.0
    %1038 = vmatprep.subr.mxu0 0.0
    %1039 = vmatpush1.xpose.msra.mxu0 0.0
    %1040 = vmatprep.subr.mxu0 0.0
    %1041 = vmatpush1.xpose.msra.mxu0 0.0
    %1042 = vmatprep.subr.mxu0 0.0
    %1043 = vmatpush1.xpose.msra.mxu0 0.0
    %1044 = vmatprep.subr.mxu0 0.0
    %1045 = vmatpush1.xpose.msra.mxu0 0.0
    %1046 = vmatprep.subr.mxu0 0.0
    %1047 = vmatpush1.xpose.msra.mxu0 0.0
    %1048 = vmatprep.subr.mxu0 0.0
    %1049 = vmatpush1.xpose.msra.mxu0 0.0
    %1050 = vmatprep.subr.mxu0 0.0
    %1051 = vmatpush1.xpose.msra.mxu0 0.0
    %1052 = vmatprep.subr.mxu0 0.0
    %1053 = vmatpush1.xpose.msra.mxu0 0.0
    %1054 = vmatprep.subr.mxu0 0.0
    %1055 = vmatpush1.xpose.msra.mxu0 0.0
    %1056 = vmatprep.subr.mxu0 0.0
    %1057 = vmatpush1.xpose.msra.mxu0 0.0
    %1058 = vmatprep.subr.mxu0 0.0
    %1059 = vmatpush1.xpose.msra.mxu0 0.0
    %1060 = vmatprep.subr.mxu0 0.0
    %1061 = vmatpush1.xpose.msra.mxu0 0.0
    %1062 = vmatprep.subr.mxu0 0.0
    %1063 = vmatpush1.xpose.msra.mxu0 0.0
    %1064 = vmatprep.subr.mxu0 0.0
    %1065 = vmatpush1.xpose.msra.mxu0 0.0
    %1066 = vmatprep.subr.mxu0 0.0
    %1067 = vmatpush1.xpose.msra.mxu0 0.0
    %1068 = vmatprep.subr.mxu0 0.0
    %1069 = vmatpush1.xpose.msra.mxu0 0.0
    %1070 = vmatprep.subr.mxu0 0.0
    %1071 = vmatpush1.xpose.msra.mxu0 0.0
    %1072 = vmatprep.subr.mxu0 0.0
    %1073 = vmatpush1.xpose.msra.mxu0 0.0
    %1074 = vmatprep.subr.mxu0 0.0
    %1075 = vmatpush1.xpose.msra.mxu0 0.0
    %1076 = vmatprep.subr.mxu0 0.0
    %1077 = vmatpush1.xpose.msra.mxu0 0.0
    %1078 = vmatprep.subr.mxu0 0.0
    %1079 = vmatpush1.xpose.msra.mxu0 0.0
    %1080 = vmatprep.subr.mxu0 0.0
    %1081 = vmatpush1.xpose.msra.mxu0 0.0
    %1082 = vmatprep.subr.mxu0 0.0
    %1083 = vmatpush1.xpose.msra.mxu0 0.0
    %1084 = vmatprep.subr.mxu0 0.0
    %1085 = vmatpush1.xpose.msra.mxu0 0.0
    %1086 = vmatprep.subr.mxu0 0.0
    %1087 = vmatpush1.xpose.msra.mxu0 0.0
    %1088 = vmatprep.mubr.f32.mxu0 0.0
    %1089 = vmatmul.mubr.f32.gmra.mrb[0].mxu0 %v1020
    %v1090 = vpop.f32.mrb[0].mxu0
    %v1091 = vadd.f32 %v540, %v1090
    %v1092 = vpop.f32.mrb[0].mxu0
    %1093 = vdwg.mxu0
    %v1094 = vsel %vm541, %v1091, -inf
    %1095 = vmax.xlane.f32.xlu0 %v1094
    %v1096 = vpop.xlane.xlu0 %1095
    %v1097 = vsub.f32 %v1091, %v1096
    %v1098 = vmul.f32 %v1097, 1.442695
    %v1099 = vpow.pop %v1098
    %v1100 = vsel %vm541, %v1099, 0.0
    %1101 = vadd.xlane.f32.xlu0 %v1100
    %v1102 = vpop.xlane.xlu0 %1101
    %v1103 = vrcp.pop %v1102
    %v1104 = vmul.f32 %v1099, %v1103
    %1105 = vrot.lane.b32.xlu0 %v527, 112
    %v1106 = vpop.permute.xlu0 %1105
    %v1109 = vsel %vm541, %v1104, 0
    %1111 = vmatprep.subr.mxu0 0.0
    %1112 = vmatpush1.msra.mxu0 %v1106
    %1113 = vmatprep.subr.mxu0 0.0
    %1114 = vmatpush1.msra.mxu0 0.0
    %1115 = vmatprep.subr.mxu0 0.0
    %1116 = vmatpush1.msra.mxu0 0.0
    %1117 = vmatprep.subr.mxu0 0.0
    %1118 = vmatpush1.msra.mxu0 0.0
    %1119 = vmatprep.subr.mxu0 0.0
    %1120 = vmatpush1.msra.mxu0 0.0
    %1121 = vmatprep.subr.mxu0 0.0
    %1122 = vmatpush1.msra.mxu0 0.0
    %1123 = vmatprep.subr.mxu0 0.0
    %1124 = vmatpush1.msra.mxu0 0.0
    %1125 = vmatprep.subr.mxu0 0.0
    %1126 = vmatpush1.msra.mxu0 0.0
    %1127 = vmatprep.subr.mxu0 0.0
    %1128 = vmatpush1.msra.mxu0 0.0
    %1129 = vmatprep.subr.mxu0 0.0
    %1130 = vmatpush1.msra.mxu0 0.0
    %1131 = vmatprep.subr.mxu0 0.0
    %1132 = vmatpush1.msra.mxu0 0.0
    %1133 = vmatprep.subr.mxu0 0.0
    %1134 = vmatpush1.msra.mxu0 0.0
    %1135 = vmatprep.subr.mxu0 0.0
    %1136 = vmatpush1.msra.mxu0 0.0
    %1137 = vmatprep.subr.mxu0 0.0
    %1138 = vmatpush1.msra.mxu0 0.0
    %1139 = vmatprep.subr.mxu0 0.0
    %1140 = vmatpush1.msra.mxu0 0.0
    %1141 = vmatprep.subr.mxu0 0.0
    %1142 = vmatpush1.msra.mxu0 0.0
    %1143 = vmatprep.subr.mxu0 0.0
    %1144 = vmatpush1.msra.mxu0 0.0
    %1145 = vmatprep.subr.mxu0 0.0
    %1146 = vmatpush1.msra.mxu0 0.0
    %1147 = vmatprep.subr.mxu0 0.0
    %1148 = vmatpush1.msra.mxu0 0.0
    %1149 = vmatprep.subr.mxu0 0.0
    %1150 = vmatpush1.msra.mxu0 0.0
    %1151 = vmatprep.subr.mxu0 0.0
    %1152 = vmatpush1.msra.mxu0 0.0
    %1153 = vmatprep.subr.mxu0 0.0
    %1154 = vmatpush1.msra.mxu0 0.0
    %1155 = vmatprep.subr.mxu0 0.0
    %1156 = vmatpush1.msra.mxu0 0.0
    %1157 = vmatprep.subr.mxu0 0.0
    %1158 = vmatpush1.msra.mxu0 0.0
    %1159 = vmatprep.subr.mxu0 0.0
    %1160 = vmatpush1.msra.mxu0 0.0
    %1161 = vmatprep.subr.mxu0 0.0
    %1162 = vmatpush1.msra.mxu0 0.0
    %1163 = vmatprep.subr.mxu0 0.0
    %1164 = vmatpush1.msra.mxu0 0.0
    %1165 = vmatprep.subr.mxu0 0.0
    %1166 = vmatpush1.msra.mxu0 0.0
    %1167 = vmatprep.subr.mxu0 0.0
    %1168 = vmatpush1.msra.mxu0 0.0
    %1169 = vmatprep.subr.mxu0 0.0
    %1170 = vmatpush1.msra.mxu0 0.0
    %1171 = vmatprep.subr.mxu0 0.0
    %1172 = vmatpush1.msra.mxu0 0.0
    %1173 = vmatprep.subr.mxu0 0.0
    %1174 = vmatpush1.msra.mxu0 0.0
    %1175 = vmatprep.mubr.f32.mxu0 0.0
    %1176 = vmatmul.mubr.f32.gmra.mrb[0].mxu0 %v1109
    %v1177 = vpop.f32.mrb[0].mxu0
    %v1178 = vadd.f32 0.0, %v1177
    %v1179 = vpop.f32.mrb[0].mxu0
    %1180 = vdwg.mxu0
    %v1182 = vsel %vm541, %v1178, 0
    %1184 = vmatprep.subr.mxu0 0.0
    %1185 = vmatpush1.msra.mxu0 %v271
    %1186 = vmatprep.subr.mxu0 0.0
    %1187 = vmatpush1.msra.mxu0 0.0
    %1188 = vmatprep.subr.mxu0 0.0
    %1189 = vmatpush1.msra.mxu0 0.0
    %1190 = vmatprep.subr.mxu0 0.0
    %1191 = vmatpush1.msra.mxu0 0.0
    %1192 = vmatprep.subr.mxu0 0.0
    %1193 = vmatpush1.msra.mxu0 0.0
    %1194 = vmatprep.subr.mxu0 0.0
    %1195 = vmatpush1.msra.mxu0 0.0
    %1196 = vmatprep.subr.mxu0 0.0
    %1197 = vmatpush1.msra.mxu0 0.0
    %1198 = vmatprep.subr.mxu0 0.0
    %1199 = vmatpush1.msra.mxu0 0.0
    %1200 = vmatprep.subr.mxu0 0.0
    %1201 = vmatpush1.msra.mxu0 0.0
    %1202 = vmatprep.subr.mxu0 0.0
    %1203 = vmatpush1.msra.mxu0 0.0
    %1204 = vmatprep.subr.mxu0 0.0
    %1205 = vmatpush1.msra.mxu0 0.0
    %1206 = vmatprep.subr.mxu0 0.0
    %1207 = vmatpush1.msra.mxu0 0.0
    %1208 = vmatprep.subr.mxu0 0.0
    %1209 = vmatpush1.msra.mxu0 0.0
    %1210 = vmatprep.subr.mxu0 0.0
    %1211 = vmatpush1.msra.mxu0 0.0
    %1212 = vmatprep.subr.mxu0 0.0
    %1213 = vmatpush1.msra.mxu0 0.0
    %1214 = vmatprep.subr.mxu0 0.0
    %1215 = vmatpush1.msra.mxu0 0.0
    %1216 = vmatprep.subr.mxu0 0.0
    %1217 = vmatpush1.msra.mxu0 0.0
    %1218 = vmatprep.subr.mxu0 0.0
    %1219 = vmatpush1.msra.mxu0 0.0
    %1220 = vmatprep.subr.mxu0 0.0
    %1221 = vmatpush1.msra.mxu0 0.0
    %1222 = vmatprep.subr.mxu0 0.0
    %1223 = vmatpush1.msra.mxu0 0.0
    %1224 = vmatprep.subr.mxu0 0.0
    %1225 = vmatpush1.msra.mxu0 0.0
    %1226 = vmatprep.subr.mxu0 0.0
    %1227 = vmatpush1.msra.mxu0 0.0
    %1228 = vmatprep.subr.mxu0 0.0
    %1229 = vmatpush1.msra.mxu0 0.0
    %1230 = vmatprep.subr.mxu0 0.0
    %1231 = vmatpush1.msra.mxu0 0.0
    %1232 = vmatprep.subr.mxu0 0.0
    %1233 = vmatpush1.msra.mxu0 0.0
    %1234 = vmatprep.subr.mxu0 0.0
    %1235 = vmatpush1.msra.mxu0 0.0
    %1236 = vmatprep.subr.mxu0 0.0
    %1237 = vmatpush1.msra.mxu0 0.0
    %1238 = vmatprep.subr.mxu0 0.0
    %1239 = vmatpush1.msra.mxu0 0.0
    %1240 = vmatprep.subr.mxu0 0.0
    %1241 = vmatpush1.msra.mxu0 0.0
    %1242 = vmatprep.subr.mxu0 0.0
    %1243 = vmatpush1.msra.mxu0 0.0
    %1244 = vmatprep.subr.mxu0 0.0
    %1245 = vmatpush1.msra.mxu0 0.0
    %1246 = vmatprep.subr.mxu0 0.0
    %1247 = vmatpush1.msra.mxu0 0.0
    %1248 = vmatprep.mubr.f32.mxu0 0.0
    %1249 = vmatmul.mubr.f32.gmra.mrb[0].mxu0 %v1182
    %v1250 = vpop.f32.mrb[0].mxu0
    %v1251 = vadd.f32 0.0, %v1250
    %v1252 = vpop.f32.mrb[0].mxu0
    %1253 = vdwg.mxu0
    %v1254 = vadd.f32 %v1015, %v1251
    %1255 = vrot.lane.b32.xlu0 %v374, 104
    %v1256 = vpop.permute.xlu0 %1255
    %1257 = vrot.lane.b32.xlu0 %v451, 104
    %v1258 = vpop.permute.xlu0 %1257
    %v1259 = vsel %vm541, %v1256, 0
    %v1261 = vsel %vm541, %v1258, 0
    %1263 = vmatprep.subr.mxu0 0.0
    %1264 = vmatpush1.xpose.msra.mxu0 %v1261
    %1265 = vmatprep.subr.mxu0 0.0
    %1266 = vmatpush1.xpose.msra.mxu0 0.0
    %1267 = vmatprep.subr.mxu0 0.0
    %1268 = vmatpush1.xpose.msra.mxu0 0.0
    %1269 = vmatprep.subr.mxu0 0.0
    %1270 = vmatpush1.xpose.msra.mxu0 0.0
    %1271 = vmatprep.subr.mxu0 0.0
    %1272 = vmatpush1.xpose.msra.mxu0 0.0
    %1273 = vmatprep.subr.mxu0 0.0
    %1274 = vmatpush1.xpose.msra.mxu0 0.0
    %1275 = vmatprep.subr.mxu0 0.0
    %1276 = vmatpush1.xpose.msra.mxu0 0.0
    %1277 = vmatprep.subr.mxu0 0.0
    %1278 = vmatpush1.xpose.msra.mxu0 0.0
    %1279 = vmatprep.subr.mxu0 0.0
    %1280 = vmatpush1.xpose.msra.mxu0 0.0
    %1281 = vmatprep.subr.mxu0 0.0
    %1282 = vmatpush1.xpose.msra.mxu0 0.0
    %1283 = vmatprep.subr.mxu0 0.0
    %1284 = vmatpush1.xpose.msra.mxu0 0.0
    %1285 = vmatprep.subr.mxu0 0.0
    %1286 = vmatpush1.xpose.msra.mxu0 0.0
    %1287 = vmatprep.subr.mxu0 0.0
    %1288 = vmatpush1.xpose.msra.mxu0 0.0
    %1289 = vmatprep.subr.mxu0 0.0
    %1290 = vmatpush1.xpose.msra.mxu0 0.0
    %1291 = vmatprep.subr.mxu0 0.0
    %1292 = vmatpush1.xpose.msra.mxu0 0.0
    %1293 = vmatprep.subr.mxu0 0.0
    %1294 = vmatpush1.xpose.msra.mxu0 0.0
    %1295 = vmatprep.subr.mxu0 0.0
    %1296 = vmatpush1.xpose.msra.mxu0 0.0
    %1297 = vmatprep.subr.mxu0 0.0
    %1298 = vmatpush1.xpose.msra.mxu0 0.0
    %1299 = vmatprep.subr.mxu0 0.0
    %1300 = vmatpush1.xpose.msra.mxu0 0.0
    %1301 = vmatprep.subr.mxu0 0.0
    %1302 = vmatpush1.xpose.msra.mxu0 0.0
    %1303 = vmatprep.subr.mxu0 0.0
    %1304 = vmatpush1.xpose.msra.mxu0 0.0
    %1305 = vmatprep.subr.mxu0 0.0
    %1306 = vmatpush1.xpose.msra.mxu0 0.0
    %1307 = vmatprep.subr.mxu0 0.0
    %1308 = vmatpush1.xpose.msra.mxu0 0.0
    %1309 = vmatprep.subr.mxu0 0.0
    %1310 = vmatpush1.xpose.msra.mxu0 0.0
    %1311 = vmatprep.subr.mxu0 0.0
    %1312 = vmatpush1.xpose.msra.mxu0 0.0
    %1313 = vmatprep.subr.mxu0 0.0
    %1314 = vmatpush1.xpose.msra.mxu0 0.0
    %1315 = vmatprep.subr.mxu0 0.0
    %1316 = vmatpush1.xpose.msra.mxu0 0.0
    %1317 = vmatprep.subr.mxu0 0.0
    %1318 = vmatpush1.xpose.msra.mxu0 0.0
    %1319 = vmatprep.subr.mxu0 0.0
    %1320 = vmatpush1.xpose.msra.mxu0 0.0
    %1321 = vmatprep.subr.mxu0 0.0
    %1322 = vmatpush1.xpose.msra.mxu0 0.0
    %1323 = vmatprep.subr.mxu0 0.0
    %1324 = vmatpush1.xpose.msra.mxu0 0.0
    %1325 = vmatprep.subr.mxu0 0.0
    %1326 = vmatpush1.xpose.msra.mxu0 0.0
    %1327 = vmatprep.mubr.f32.mxu0 0.0
    %1328 = vmatmul.mubr.f32.gmra.mrb[0].mxu0 %v1259
    %v1329 = vpop.f32.mrb[0].mxu0
    %v1330 = vadd.f32 %v540, %v1329
    %v1331 = vpop.f32.mrb[0].mxu0
    %1332 = vdwg.mxu0
    %v1333 = vsel %vm541, %v1330, -inf
    %1334 = vmax.xlane.f32.xlu0 %v1333
    %v1335 = vpop.xlane.xlu0 %1334
    %v1336 = vsub.f32 %v1330, %v1335
    %v1337 = vmul.f32 %v1336, 1.442695
    %v1338 = vpow.pop %v1337
    %v1339 = vsel %vm541, %v1338, 0.0
    %1340 = vadd.xlane.f32.xlu0 %v1339
    %v1341 = vpop.xlane.xlu0 %1340
    %v1342 = vrcp.pop %v1341
    %v1343 = vmul.f32 %v1338, %v1342
    %1344 = vrot.lane.b32.xlu0 %v527, 104
    %v1345 = vpop.permute.xlu0 %1344
    %v1348 = vsel %vm541, %v1343, 0
    %1350 = vmatprep.subr.mxu0 0.0
    %1351 = vmatpush1.msra.mxu0 %v1345
    %1352 = vmatprep.subr.mxu0 0.0
    %1353 = vmatpush1.msra.mxu0 0.0
    %1354 = vmatprep.subr.mxu0 0.0
    %1355 = vmatpush1.msra.mxu0 0.0
    %1356 = vmatprep.subr.mxu0 0.0
    %1357 = vmatpush1.msra.mxu0 0.0
    %1358 = vmatprep.subr.mxu0 0.0
    %1359 = vmatpush1.msra.mxu0 0.0
    %1360 = vmatprep.subr.mxu0 0.0
    %1361 = vmatpush1.msra.mxu0 0.0
    %1362 = vmatprep.subr.mxu0 0.0
    %1363 = vmatpush1.msra.mxu0 0.0
    %1364 = vmatprep.subr.mxu0 0.0
    %1365 = vmatpush1.msra.mxu0 0.0
    %1366 = vmatprep.subr.mxu0 0.0
    %1367 = vmatpush1.msra.mxu0 0.0
    %1368 = vmatprep.subr.mxu0 0.0
    %1369 = vmatpush1.msra.mxu0 0.0
    %1370 = vmatprep.subr.mxu0 0.0
    %1371 = vmatpush1.msra.mxu0 0.0
    %1372 = vmatprep.subr.mxu0 0.0
    %1373 = vmatpush1.msra.mxu0 0.0
    %1374 = vmatprep.subr.mxu0 0.0
    %1375 = vmatpush1.msra.mxu0 0.0
    %1376 = vmatprep.subr.mxu0 0.0
    %1377 = vmatpush1.msra.mxu0 0.0
    %1378 = vmatprep.subr.mxu0 0.0
    %1379 = vmatpush1.msra.mxu0 0.0
    %1380 = vmatprep.subr.mxu0 0.0
    %1381 = vmatpush1.msra.mxu0 0.0
    %1382 = vmatprep.subr.mxu0 0.0
    %1383 = vmatpush1.msra.mxu0 0.0
    %1384 = vmatprep.subr.mxu0 0.0
    %1385 = vmatpush1.msra.mxu0 0.0
    %1386 = vmatprep.subr.mxu0 0.0
    %1387 = vmatpush1.msra.mxu0 0.0
    %1388 = vmatprep.subr.mxu0 0.0
    %1389 = vmatpush1.msra.mxu0 0.0
    %1390 = vmatprep.subr.mxu0 0.0
    %1391 = vmatpush1.msra.mxu0 0.0
    %1392 = vmatprep.subr.mxu0 0.0
    %1393 = vmatpush1.msra.mxu0 0.0
    %1394 = vmatprep.subr.mxu0 0.0
    %1395 = vmatpush1.msra.mxu0 0.0
    %1396 = vmatprep.subr.mxu0 0.0
    %1397 = vmatpush1.msra.mxu0 0.0
    %1398 = vmatprep.subr.mxu0 0.0
    %1399 = vmatpush1.msra.mxu0 0.0
    %1400 = vmatprep.subr.mxu0 0.0
    %1401 = vmatpush1.msra.mxu0 0.0
    %1402 = vmatprep.subr.mxu0 0.0
    %1403 = vmatpush1.msra.mxu0 0.0
    %1404 = vmatprep.subr.mxu0 0.0
    %1405 = vmatpush1.msra.mxu0 0.0
    %1406 = vmatprep.subr.mxu0 0.0
    %1407 = vmatpush1.msra.mxu0 0.0
    %1408 = vmatprep.subr.mxu0 0.0
    %1409 = vmatpush1.msra.mxu0 0.0
    %1410 = vmatprep.subr.mxu0 0.0
    %1411 = vmatpush1.msra.mxu0 0.0
    %1412 = vmatprep.subr.mxu0 0.0
    %1413 = vmatpush1.msra.mxu0 0.0
    %1414 = vmatprep.mubr.f32.mxu0 0.0
    %1415 = vmatmul.mubr.f32.gmra.mrb[0].mxu0 %v1348
    %v1416 = vpop.f32.mrb[0].mxu0
    %v1417 = vadd.f32 0.0, %v1416
    %v1418 = vpop.f32.mrb[0].mxu0
    %1419 = vdwg.mxu0
    %v1421 = vsel %vm541, %v1417, 0
    %1423 = vmatprep.subr.mxu0 0.0
    %1424 = vmatpush1.msra.mxu0 %v272
    %1425 = vmatprep.subr.mxu0 0.0
    %1426 = vmatpush1.msra.mxu0 0.0
    %1427 = vmatprep.subr.mxu0 0.0
    %1428 = vmatpush1.msra.mxu0 0.0
    %1429 = vmatprep.subr.mxu0 0.0
    %1430 = vmatpush1.msra.mxu0 0.0
    %1431 = vmatprep.subr.mxu0 0.0
    %1432 = vmatpush1.msra.mxu0 0.0
    %1433 = vmatprep.subr.mxu0 0.0
    %1434 = vmatpush1.msra.mxu0 0.0
    %1435 = vmatprep.subr.mxu0 0.0
    %1436 = vmatpush1.msra.mxu0 0.0
    %1437 = vmatprep.subr.mxu0 0.0
    %1438 = vmatpush1.msra.mxu0 0.0
    %1439 = vmatprep.subr.mxu0 0.0
    %1440 = vmatpush1.msra.mxu0 0.0
    %1441 = vmatprep.subr.mxu0 0.0
    %1442 = vmatpush1.msra.mxu0 0.0
    %1443 = vmatprep.subr.mxu0 0.0
    %1444 = vmatpush1.msra.mxu0 0.0
    %1445 = vmatprep.subr.mxu0 0.0
    %1446 = vmatpush1.msra.mxu0 0.0
    %1447 = vmatprep.subr.mxu0 0.0
    %1448 = vmatpush1.msra.mxu0 0.0
    %1449 = vmatprep.subr.mxu0 0.0
    %1450 = vmatpush1.msra.mxu0 0.0
    %1451 = vmatprep.subr.mxu0 0.0
    %1452 = vmatpush1.msra.mxu0 0.0
    %1453 = vmatprep.subr.mxu0 0.0
    %1454 = vmatpush1.msra.mxu0 0.0
    %1455 = vmatprep.subr.mxu0 0.0
    %1456 = vmatpush1.msra.mxu0 0.0
    %1457 = vmatprep.subr.mxu0 0.0
    %1458 = vmatpush1.msra.mxu0 0.0
    %1459 = vmatprep.subr.mxu0 0.0
    %1460 = vmatpush1.msra.mxu0 0.0
    %1461 = vmatprep.subr.mxu0 0.0
    %1462 = vmatpush1.msra.mxu0 0.0
    %1463 = vmatprep.subr.mxu0 0.0
    %1464 = vmatpush1.msra.mxu0 0.0
    %1465 = vmatprep.subr.mxu0 0.0
    %1466 = vmatpush1.msra.mxu0 0.0
    %1467 = vmatprep.subr.mxu0 0.0
    %1468 = vmatpush1.msra.mxu0 0.0
    %1469 = vmatprep.subr.mxu0 0.0
    %1470 = vmatpush1.msra.mxu0 0.0
    %1471 = vmatprep.subr.mxu0 0.0
    %1472 = vmatpush1.msra.mxu0 0.0
    %1473 = vmatprep.subr.mxu0 0.0
    %1474 = vmatpush1.msra.mxu0 0.0
    %1475 = vmatprep.subr.mxu0 0.0
    %1476 = vmatpush1.msra.mxu0 0.0
    %1477 = vmatprep.subr.mxu0 0.0
    %1478 = vmatpush1.msra.mxu0 0.0
    %1479 = vmatprep.subr.mxu0 0.0
    %1480 = vmatpush1.msra.mxu0 0.0
    %1481 = vmatprep.subr.mxu0 0.0
    %1482 = vmatpush1.msra.mxu0 0.0
    %1483 = vmatprep.subr.mxu0 0.0
    %1484 = vmatpush1.msra.mxu0 0.0
    %1485 = vmatprep.subr.mxu0 0.0
    %1486 = vmatpush1.msra.mxu0 0.0
    %1487 = vmatprep.mubr.f32.mxu0 0.0
    %1488 = vmatmul.mubr.f32.gmra.mrb[0].mxu0 %v1421
    %v1489 = vpop.f32.mrb[0].mxu0
    %v1490 = vadd.f32 0.0, %v1489
    %v1491 = vpop.f32.mrb[0].mxu0
    %1492 = vdwg.mxu0
    %v1493 = vadd.f32 %v1254, %v1490
    %1494 = vst.msk [vmem:[%s23] sm:$0xff] %vm300, %v1493
    %v1496 = vlaneseq
    %v1497 = vshrl.u32 %v1496, 7
    %v1498 = vsub.s32 0, %v1497
    %v1499 = vrot.slane %v286, %v1498
    %1501 = vmatprep.subr.mxu0 0.0
    %1502 = vmatpush1.msra.mxu0 %v274
    %1503 = vmatprep.subr.mxu0 0.0
    %1504 = vmatpush1.msra.mxu0 %v275
    %1505 = vmatprep.subr.mxu0 0.0
    %1506 = vmatpush1.msra.mxu0 %v276
    %1507 = vmatprep.subr.mxu0 0.0
    %1508 = vmatpush1.msra.mxu0 %v277
    %1509 = vmatprep.subr.mxu0 0.0
    %1510 = vmatpush1.msra.mxu0 0.0
    %1511 = vmatprep.subr.mxu0 0.0
    %1512 = vmatpush1.msra.mxu0 0.0
    %1513 = vmatprep.subr.mxu0 0.0
    %1514 = vmatpush1.msra.mxu0 0.0
    %1515 = vmatprep.subr.mxu0 0.0
    %1516 = vmatpush1.msra.mxu0 0.0
    %1517 = vmatprep.subr.mxu0 0.0
    %1518 = vmatpush1.msra.mxu0 0.0
    %1519 = vmatprep.subr.mxu0 0.0
    %1520 = vmatpush1.msra.mxu0 0.0
    %1521 = vmatprep.subr.mxu0 0.0
    %1522 = vmatpush1.msra.mxu0 0.0
    %1523 = vmatprep.subr.mxu0 0.0
    %1524 = vmatpush1.msra.mxu0 0.0
    %1525 = vmatprep.subr.mxu0 0.0
    %1526 = vmatpush1.msra.mxu0 0.0
    %1527 = vmatprep.subr.mxu0 0.0
    %1528 = vmatpush1.msra.mxu0 0.0
    %1529 = vmatprep.subr.mxu0 0.0
    %1530 = vmatpush1.msra.mxu0 0.0
    %1531 = vmatprep.subr.mxu0 0.0
    %1532 = vmatpush1.msra.mxu0 0.0
    %1533 = vmatprep.subr.mxu0 0.0
    %1534 = vmatpush1.msra.mxu0 0.0
    %1535 = vmatprep.subr.mxu0 0.0
    %1536 = vmatpush1.msra.mxu0 0.0
    %1537 = vmatprep.subr.mxu0 0.0
    %1538 = vmatpush1.msra.mxu0 0.0
    %1539 = vmatprep.subr.mxu0 0.0
    %1540 = vmatpush1.msra.mxu0 0.0
    %1541 = vmatprep.subr.mxu0 0.0
    %1542 = vmatpush1.msra.mxu0 0.0
    %1543 = vmatprep.subr.mxu0 0.0
    %1544 = vmatpush1.msra.mxu0 0.0
    %1545 = vmatprep.subr.mxu0 0.0
    %1546 = vmatpush1.msra.mxu0 0.0
    %1547 = vmatprep.subr.mxu0 0.0
    %1548 = vmatpush1.msra.mxu0 0.0
    %1549 = vmatprep.subr.mxu0 0.0
    %1550 = vmatpush1.msra.mxu0 0.0
    %1551 = vmatprep.subr.mxu0 0.0
    %1552 = vmatpush1.msra.mxu0 0.0
    %1553 = vmatprep.subr.mxu0 0.0
    %1554 = vmatpush1.msra.mxu0 0.0
    %1555 = vmatprep.subr.mxu0 0.0
    %1556 = vmatpush1.msra.mxu0 0.0
    %1557 = vmatprep.subr.mxu0 0.0
    %1558 = vmatpush1.msra.mxu0 0.0
    %1559 = vmatprep.subr.mxu0 0.0
    %1560 = vmatpush1.msra.mxu0 0.0
    %1561 = vmatprep.subr.mxu0 0.0
    %1562 = vmatpush1.msra.mxu0 0.0
    %1563 = vmatprep.subr.mxu0 0.0
    %1564 = vmatpush1.msra.mxu0 0.0
    %1565 = vmatprep.mubr.f32.mxu0 0.0
    %1566 = vmatmul.mubr.f32.gmra.mrb[0].mxu0 %v302
    %v1567 = vpop.f32.mrb[0].mxu0
    %v1568 = vadd.f32 %v1499, %v1567
    %v1569 = vpop.f32.mrb[0].mxu0
    %1570 = vdwg.mxu0
    %v1571 = vmul.f32 %v1568, 0.35355338
    %v1573 = vlaneseq
    %v1574 = vshrl.u32 %v1573, 7
    %v1575 = vsub.s32 0, %v1574
    %v1576 = vrot.slane %v287, %v1575
    %1578 = vmatprep.subr.mxu0 0.0
    %1579 = vmatpush1.msra.mxu0 %v278
    %1580 = vmatprep.subr.mxu0 0.0
    %1581 = vmatpush1.msra.mxu0 %v279
    %1582 = vmatprep.subr.mxu0 0.0
    %1583 = vmatpush1.msra.mxu0 %v280
    %1584 = vmatprep.subr.mxu0 0.0
    %1585 = vmatpush1.msra.mxu0 %v281
    %1586 = vmatprep.subr.mxu0 0.0
    %1587 = vmatpush1.msra.mxu0 0.0
    %1588 = vmatprep.subr.mxu0 0.0
    %1589 = vmatpush1.msra.mxu0 0.0
    %1590 = vmatprep.subr.mxu0 0.0
    %1591 = vmatpush1.msra.mxu0 0.0
    %1592 = vmatprep.subr.mxu0 0.0
    %1593 = vmatpush1.msra.mxu0 0.0
    %1594 = vmatprep.subr.mxu0 0.0
    %1595 = vmatpush1.msra.mxu0 0.0
    %1596 = vmatprep.subr.mxu0 0.0
    %1597 = vmatpush1.msra.mxu0 0.0
    %1598 = vmatprep.subr.mxu0 0.0
    %1599 = vmatpush1.msra.mxu0 0.0
    %1600 = vmatprep.subr.mxu0 0.0
    %1601 = vmatpush1.msra.mxu0 0.0
    %1602 = vmatprep.subr.mxu0 0.0
    %1603 = vmatpush1.msra.mxu0 0.0
    %1604 = vmatprep.subr.mxu0 0.0
    %1605 = vmatpush1.msra.mxu0 0.0
    %1606 = vmatprep.subr.mxu0 0.0
    %1607 = vmatpush1.msra.mxu0 0.0
    %1608 = vmatprep.subr.mxu0 0.0
    %1609 = vmatpush1.msra.mxu0 0.0
    %1610 = vmatprep.subr.mxu0 0.0
    %1611 = vmatpush1.msra.mxu0 0.0
    %1612 = vmatprep.subr.mxu0 0.0
    %1613 = vmatpush1.msra.mxu0 0.0
    %1614 = vmatprep.subr.mxu0 0.0
    %1615 = vmatpush1.msra.mxu0 0.0
    %1616 = vmatprep.subr.mxu0 0.0
    %1617 = vmatpush1.msra.mxu0 0.0
    %1618 = vmatprep.subr.mxu0 0.0
    %1619 = vmatpush1.msra.mxu0 0.0
    %1620 = vmatprep.subr.mxu0 0.0
    %1621 = vmatpush1.msra.mxu0 0.0
    %1622 = vmatprep.subr.mxu0 0.0
    %1623 = vmatpush1.msra.mxu0 0.0
    %1624 = vmatprep.subr.mxu0 0.0
    %1625 = vmatpush1.msra.mxu0 0.0
    %1626 = vmatprep.subr.mxu0 0.0
    %1627 = vmatpush1.msra.mxu0 0.0
    %1628 = vmatprep.subr.mxu0 0.0
    %1629 = vmatpush1.msra.mxu0 0.0
    %1630 = vmatprep.subr.mxu0 0.0
    %1631 = vmatpush1.msra.mxu0 0.0
    %1632 = vmatprep.subr.mxu0 0.0
    %1633 = vmatpush1.msra.mxu0 0.0
    %1634 = vmatprep.subr.mxu0 0.0
    %1635 = vmatpush1.msra.mxu0 0.0
    %1636 = vmatprep.subr.mxu0 0.0
    %1637 = vmatpush1.msra.mxu0 0.0
    %1638 = vmatprep.subr.mxu0 0.0
    %1639 = vmatpush1.msra.mxu0 0.0
    %1640 = vmatprep.subr.mxu0 0.0
    %1641 = vmatpush1.msra.mxu0 0.0
    %1642 = vmatprep.mubr.f32.mxu0 0.0
    %1643 = vmatmul.mubr.f32.gmra.mrb[0].mxu0 %v302
    %v1644 = vpop.f32.mrb[0].mxu0
    %v1645 = vadd.f32 %v1576, %v1644
    %v1646 = vpop.f32.mrb[0].mxu0
    %1647 = vdwg.mxu0
    %v1649 = vlaneseq
    %v1650 = vshrl.u32 %v1649, 7
    %v1651 = vsub.s32 0, %v1650
    %v1652 = vrot.slane %v288, %v1651
    %1654 = vmatprep.subr.mxu0 0.0
    %1655 = vmatpush1.msra.mxu0 %v282
    %1656 = vmatprep.subr.mxu0 0.0
    %1657 = vmatpush1.msra.mxu0 %v283
    %1658 = vmatprep.subr.mxu0 0.0
    %1659 = vmatpush1.msra.mxu0 %v284
    %1660 = vmatprep.subr.mxu0 0.0
    %1661 = vmatpush1.msra.mxu0 %v285
    %1662 = vmatprep.subr.mxu0 0.0
    %1663 = vmatpush1.msra.mxu0 0.0
    %1664 = vmatprep.subr.mxu0 0.0
    %1665 = vmatpush1.msra.mxu0 0.0
    %1666 = vmatprep.subr.mxu0 0.0
    %1667 = vmatpush1.msra.mxu0 0.0
    %1668 = vmatprep.subr.mxu0 0.0
    %1669 = vmatpush1.msra.mxu0 0.0
    %1670 = vmatprep.subr.mxu0 0.0
    %1671 = vmatpush1.msra.mxu0 0.0
    %1672 = vmatprep.subr.mxu0 0.0
    %1673 = vmatpush1.msra.mxu0 0.0
    %1674 = vmatprep.subr.mxu0 0.0
    %1675 = vmatpush1.msra.mxu0 0.0
    %1676 = vmatprep.subr.mxu0 0.0
    %1677 = vmatpush1.msra.mxu0 0.0
    %1678 = vmatprep.subr.mxu0 0.0
    %1679 = vmatpush1.msra.mxu0 0.0
    %1680 = vmatprep.subr.mxu0 0.0
    %1681 = vmatpush1.msra.mxu0 0.0
    %1682 = vmatprep.subr.mxu0 0.0
    %1683 = vmatpush1.msra.mxu0 0.0
    %1684 = vmatprep.subr.mxu0 0.0
    %1685 = vmatpush1.msra.mxu0 0.0
    %1686 = vmatprep.subr.mxu0 0.0
    %1687 = vmatpush1.msra.mxu0 0.0
    %1688 = vmatprep.subr.mxu0 0.0
    %1689 = vmatpush1.msra.mxu0 0.0
    %1690 = vmatprep.subr.mxu0 0.0
    %1691 = vmatpush1.msra.mxu0 0.0
    %1692 = vmatprep.subr.mxu0 0.0
    %1693 = vmatpush1.msra.mxu0 0.0
    %1694 = vmatprep.subr.mxu0 0.0
    %1695 = vmatpush1.msra.mxu0 0.0
    %1696 = vmatprep.subr.mxu0 0.0
    %1697 = vmatpush1.msra.mxu0 0.0
    %1698 = vmatprep.subr.mxu0 0.0
    %1699 = vmatpush1.msra.mxu0 0.0
    %1700 = vmatprep.subr.mxu0 0.0
    %1701 = vmatpush1.msra.mxu0 0.0
    %1702 = vmatprep.subr.mxu0 0.0
    %1703 = vmatpush1.msra.mxu0 0.0
    %1704 = vmatprep.subr.mxu0 0.0
    %1705 = vmatpush1.msra.mxu0 0.0
    %1706 = vmatprep.subr.mxu0 0.0
    %1707 = vmatpush1.msra.mxu0 0.0
    %1708 = vmatprep.subr.mxu0 0.0
    %1709 = vmatpush1.msra.mxu0 0.0
    %1710 = vmatprep.subr.mxu0 0.0
    %1711 = vmatpush1.msra.mxu0 0.0
    %1712 = vmatprep.subr.mxu0 0.0
    %1713 = vmatpush1.msra.mxu0 0.0
    %1714 = vmatprep.subr.mxu0 0.0
    %1715 = vmatpush1.msra.mxu0 0.0
    %1716 = vmatprep.subr.mxu0 0.0
    %1717 = vmatpush1.msra.mxu0 0.0
    %1718 = vmatprep.mubr.f32.mxu0 0.0
    %1719 = vmatmul.mubr.f32.gmra.mrb[0].mxu0 %v302
    %v1720 = vpop.f32.mrb[0].mxu0
    %v1721 = vadd.f32 %v1652, %v1720
    %v1722 = vpop.f32.mrb[0].mxu0
    %1723 = vdwg.mxu0
    %v1725 = vlaneseq
    %v1726 = vshrl.u32 %v1725, 7
    %v1727 = vsub.s32 0, %v1726
    %v1728 = vrot.slane %v293, %v1727
    %v1730 = vadd.f32 %v1728, 0.0
    %v1731 = vlaneseq
    %v1732 = vshrl.u32 %v1731, 7
    %v1733 = vsub.s32 0, %v1732
    %v1734 = vrot.slane %v253, %v1733
    %v1736 = vsel %vm541, %v1571, 0
    %v1739 = vsel %vm541, %v1645, 0
    %1741 = vmatprep.subr.mxu0 0.0
    %1742 = vmatpush1.xpose.msra.mxu0 %v1739
    %1743 = vmatprep.subr.mxu0 0.0
    %1744 = vmatpush1.xpose.msra.mxu0 0.0
    %1745 = vmatprep.subr.mxu0 0.0
    %1746 = vmatpush1.xpose.msra.mxu0 0.0
    %1747 = vmatprep.subr.mxu0 0.0
    %1748 = vmatpush1.xpose.msra.mxu0 0.0
    %1749 = vmatprep.subr.mxu0 0.0
    %1750 = vmatpush1.xpose.msra.mxu0 0.0
    %1751 = vmatprep.subr.mxu0 0.0
    %1752 = vmatpush1.xpose.msra.mxu0 0.0
    %1753 = vmatprep.subr.mxu0 0.0
    %1754 = vmatpush1.xpose.msra.mxu0 0.0
    %1755 = vmatprep.subr.mxu0 0.0
    %1756 = vmatpush1.xpose.msra.mxu0 0.0
    %1757 = vmatprep.subr.mxu0 0.0
    %1758 = vmatpush1.xpose.msra.mxu0 0.0
    %1759 = vmatprep.subr.mxu0 0.0
    %1760 = vmatpush1.xpose.msra.mxu0 0.0
    %1761 = vmatprep.subr.mxu0 0.0
    %1762 = vmatpush1.xpose.msra.mxu0 0.0
    %1763 = vmatprep.subr.mxu0 0.0
    %1764 = vmatpush1.xpose.msra.mxu0 0.0
    %1765 = vmatprep.subr.mxu0 0.0
    %1766 = vmatpush1.xpose.msra.mxu0 0.0
    %1767 = vmatprep.subr.mxu0 0.0
    %1768 = vmatpush1.xpose.msra.mxu0 0.0
    %1769 = vmatprep.subr.mxu0 0.0
    %1770 = vmatpush1.xpose.msra.mxu0 0.0
    %1771 = vmatprep.subr.mxu0 0.0
    %1772 = vmatpush1.xpose.msra.mxu0 0.0
    %1773 = vmatprep.subr.mxu0 0.0
    %1774 = vmatpush1.xpose.msra.mxu0 0.0
    %1775 = vmatprep.subr.mxu0 0.0
    %1776 = vmatpush1.xpose.msra.mxu0 0.0
    %1777 = vmatprep.subr.mxu0 0.0
    %1778 = vmatpush1.xpose.msra.mxu0 0.0
    %1779 = vmatprep.subr.mxu0 0.0
    %1780 = vmatpush1.xpose.msra.mxu0 0.0
    %1781 = vmatprep.subr.mxu0 0.0
    %1782 = vmatpush1.xpose.msra.mxu0 0.0
    %1783 = vmatprep.subr.mxu0 0.0
    %1784 = vmatpush1.xpose.msra.mxu0 0.0
    %1785 = vmatprep.subr.mxu0 0.0
    %1786 = vmatpush1.xpose.msra.mxu0 0.0
    %1787 = vmatprep.subr.mxu0 0.0
    %1788 = vmatpush1.xpose.msra.mxu0 0.0
    %1789 = vmatprep.subr.mxu0 0.0
    %1790 = vmatpush1.xpose.msra.mxu0 0.0
    %1791 = vmatprep.subr.mxu0 0.0
    %1792 = vmatpush1.xpose.msra.mxu0 0.0
    %1793 = vmatprep.subr.mxu0 0.0
    %1794 = vmatpush1.xpose.msra.mxu0 0.0
    %1795 = vmatprep.subr.mxu0 0.0
    %1796 = vmatpush1.xpose.msra.mxu0 0.0
    %1797 = vmatprep.subr.mxu0 0.0
    %1798 = vmatpush1.xpose.msra.mxu0 0.0
    %1799 = vmatprep.subr.mxu0 0.0
    %1800 = vmatpush1.xpose.msra.mxu0 0.0
    %1801 = vmatprep.subr.mxu0 0.0
    %1802 = vmatpush1.xpose.msra.mxu0 0.0
    %1803 = vmatprep.subr.mxu0 0.0
    %1804 = vmatpush1.xpose.msra.mxu0 0.0
    %1805 = vmatprep.mubr.f32.mxu0 0.0
    %1806 = vmatmul.mubr.f32.gmra.mrb[0].mxu0 %v1736
    %v1807 = vpop.f32.mrb[0].mxu0
    %v1808 = vadd.f32 %v1734, %v1807
    %v1809 = vpop.f32.mrb[0].mxu0
    %1810 = vdwg.mxu0
    %v1811 = vsel %vm541, %v1808, -inf
    %1812 = vmax.xlane.f32.xlu0 %v1811
    %v1813 = vpop.xlane.xlu0 %1812
    %v1814 = vsub.f32 %v1808, %v1813
    %v1815 = vmul.f32 %v1814, 1.442695
    %v1816 = vpow.pop %v1815
    %v1817 = vsel %vm541, %v1816, 0.0
    %1818 = vadd.xlane.f32.xlu0 %v1817
    %v1819 = vpop.xlane.xlu0 %1818
    %v1820 = vrcp.pop %v1819
    %v1821 = vmul.f32 %v1816, %v1820
    %v1823 = vsel %vm541, %v1821, 0
    %1825 = vmatprep.subr.mxu0 0.0
    %1826 = vmatpush1.msra.mxu0 %v1721
    %1827 = vmatprep.subr.mxu0 0.0
    %1828 = vmatpush1.msra.mxu0 0.0
    %1829 = vmatprep.subr.mxu0 0.0
    %1830 = vmatpush1.msra.mxu0 0.0
    %1831 = vmatprep.subr.mxu0 0.0
    %1832 = vmatpush1.msra.mxu0 0.0
    %1833 = vmatprep.subr.mxu0 0.0
    %1834 = vmatpush1.msra.mxu0 0.0
    %1835 = vmatprep.subr.mxu0 0.0
    %1836 = vmatpush1.msra.mxu0 0.0
    %1837 = vmatprep.subr.mxu0 0.0
    %1838 = vmatpush1.msra.mxu0 0.0
    %1839 = vmatprep.subr.mxu0 0.0
    %1840 = vmatpush1.msra.mxu0 0.0
    %1841 = vmatprep.subr.mxu0 0.0
    %1842 = vmatpush1.msra.mxu0 0.0
    %1843 = vmatprep.subr.mxu0 0.0
    %1844 = vmatpush1.msra.mxu0 0.0
    %1845 = vmatprep.subr.mxu0 0.0
    %1846 = vmatpush1.msra.mxu0 0.0
    %1847 = vmatprep.subr.mxu0 0.0
    %1848 = vmatpush1.msra.mxu0 0.0
    %1849 = vmatprep.subr.mxu0 0.0
    %1850 = vmatpush1.msra.mxu0 0.0
    %1851 = vmatprep.subr.mxu0 0.0
    %1852 = vmatpush1.msra.mxu0 0.0
    %1853 = vmatprep.subr.mxu0 0.0
    %1854 = vmatpush1.msra.mxu0 0.0
    %1855 = vmatprep.subr.mxu0 0.0
    %1856 = vmatpush1.msra.mxu0 0.0
    %1857 = vmatprep.subr.mxu0 0.0
    %1858 = vmatpush1.msra.mxu0 0.0
    %1859 = vmatprep.subr.mxu0 0.0
    %1860 = vmatpush1.msra.mxu0 0.0
    %1861 = vmatprep.subr.mxu0 0.0
    %1862 = vmatpush1.msra.mxu0 0.0
    %1863 = vmatprep.subr.mxu0 0.0
    %1864 = vmatpush1.msra.mxu0 0.0
    %1865 = vmatprep.subr.mxu0 0.0
    %1866 = vmatpush1.msra.mxu0 0.0
    %1867 = vmatprep.subr.mxu0 0.0
    %1868 = vmatpush1.msra.mxu0 0.0
    %1869 = vmatprep.subr.mxu0 0.0
    %1870 = vmatpush1.msra.mxu0 0.0
    %1871 = vmatprep.subr.mxu0 0.0
    %1872 = vmatpush1.msra.mxu0 0.0
    %1873 = vmatprep.subr.mxu0 0.0
    %1874 = vmatpush1.msra.mxu0 0.0
    %1875 = vmatprep.subr.mxu0 0.0
    %1876 = vmatpush1.msra.mxu0 0.0
    %1877 = vmatprep.subr.mxu0 0.0
    %1878 = vmatpush1.msra.mxu0 0.0
    %1879 = vmatprep.subr.mxu0 0.0
    %1880 = vmatpush1.msra.mxu0 0.0
    %1881 = vmatprep.subr.mxu0 0.0
    %1882 = vmatpush1.msra.mxu0 0.0
    %1883 = vmatprep.subr.mxu0 0.0
    %1884 = vmatpush1.msra.mxu0 0.0
    %1885 = vmatprep.subr.mxu0 0.0
    %1886 = vmatpush1.msra.mxu0 0.0
    %1887 = vmatprep.subr.mxu0 0.0
    %1888 = vmatpush1.msra.mxu0 0.0
    %1889 = vmatprep.mubr.f32.mxu0 0.0
    %1890 = vmatmul.mubr.f32.gmra.mrb[0].mxu0 %v1823
    %v1891 = vpop.f32.mrb[0].mxu0
    %v1892 = vadd.f32 0.0, %v1891
    %v1893 = vpop.f32.mrb[0].mxu0
    %1894 = vdwg.mxu0
    %v1896 = vsel %vm541, %v1892, 0
    %1898 = vmatprep.subr.mxu0 0.0
    %1899 = vmatpush1.msra.mxu0 %v289
    %1900 = vmatprep.subr.mxu0 0.0
    %1901 = vmatpush1.msra.mxu0 0.0
    %1902 = vmatprep.subr.mxu0 0.0
    %1903 = vmatpush1.msra.mxu0 0.0
    %1904 = vmatprep.subr.mxu0 0.0
    %1905 = vmatpush1.msra.mxu0 0.0
    %1906 = vmatprep.subr.mxu0 0.0
    %1907 = vmatpush1.msra.mxu0 0.0
    %1908 = vmatprep.subr.mxu0 0.0
    %1909 = vmatpush1.msra.mxu0 0.0
    %1910 = vmatprep.subr.mxu0 0.0
    %1911 = vmatpush1.msra.mxu0 0.0
    %1912 = vmatprep.subr.mxu0 0.0
    %1913 = vmatpush1.msra.mxu0 0.0
    %1914 = vmatprep.subr.mxu0 0.0
    %1915 = vmatpush1.msra.mxu0 0.0
    %1916 = vmatprep.subr.mxu0 0.0
    %1917 = vmatpush1.msra.mxu0 0.0
    %1918 = vmatprep.subr.mxu0 0.0
    %1919 = vmatpush1.msra.mxu0 0.0
    %1920 = vmatprep.subr.mxu0 0.0
    %1921 = vmatpush1.msra.mxu0 0.0
    %1922 = vmatprep.subr.mxu0 0.0
    %1923 = vmatpush1.msra.mxu0 0.0
    %1924 = vmatprep.subr.mxu0 0.0
    %1925 = vmatpush1.msra.mxu0 0.0
    %1926 = vmatprep.subr.mxu0 0.0
    %1927 = vmatpush1.msra.mxu0 0.0
    %1928 = vmatprep.subr.mxu0 0.0
    %1929 = vmatpush1.msra.mxu0 0.0
    %1930 = vmatprep.subr.mxu0 0.0
    %1931 = vmatpush1.msra.mxu0 0.0
    %1932 = vmatprep.subr.mxu0 0.0
    %1933 = vmatpush1.msra.mxu0 0.0
    %1934 = vmatprep.subr.mxu0 0.0
    %1935 = vmatpush1.msra.mxu0 0.0
    %1936 = vmatprep.subr.mxu0 0.0
    %1937 = vmatpush1.msra.mxu0 0.0
    %1938 = vmatprep.subr.mxu0 0.0
    %1939 = vmatpush1.msra.mxu0 0.0
    %1940 = vmatprep.subr.mxu0 0.0
    %1941 = vmatpush1.msra.mxu0 0.0
    %1942 = vmatprep.subr.mxu0 0.0
    %1943 = vmatpush1.msra.mxu0 0.0
    %1944 = vmatprep.subr.mxu0 0.0
    %1945 = vmatpush1.msra.mxu0 0.0
    %1946 = vmatprep.subr.mxu0 0.0
    %1947 = vmatpush1.msra.mxu0 0.0
    %1948 = vmatprep.subr.mxu0 0.0
    %1949 = vmatpush1.msra.mxu0 0.0
    %1950 = vmatprep.subr.mxu0 0.0
    %1951 = vmatpush1.msra.mxu0 0.0
    %1952 = vmatprep.subr.mxu0 0.0
    %1953 = vmatpush1.msra.mxu0 0.0
    %1954 = vmatprep.subr.mxu0 0.0
    %1955 = vmatpush1.msra.mxu0 0.0
    %1956 = vmatprep.subr.mxu0 0.0
    %1957 = vmatpush1.msra.mxu0 0.0
    %1958 = vmatprep.subr.mxu0 0.0
    %1959 = vmatpush1.msra.mxu0 0.0
    %1960 = vmatprep.subr.mxu0 0.0
    %1961 = vmatpush1.msra.mxu0 0.0
    %1962 = vmatprep.mubr.f32.mxu0 0.0
    %1963 = vmatmul.mubr.f32.gmra.mrb[0].mxu0 %v1896
    %v1964 = vpop.f32.mrb[0].mxu0
    %v1965 = vadd.f32 0.0, %v1964
    %v1966 = vpop.f32.mrb[0].mxu0
    %1967 = vdwg.mxu0
    %v1968 = vadd.f32 %v1730, %v1965
    %1969 = vrot.lane.b32.xlu0 %v1571, 120
    %v1970 = vpop.permute.xlu0 %1969
    %1971 = vrot.lane.b32.xlu0 %v1645, 120
    %v1972 = vpop.permute.xlu0 %1971
    %v1973 = vsel %vm541, %v1970, 0
    %v1975 = vsel %vm541, %v1972, 0
    %1977 = vmatprep.subr.mxu0 0.0
    %1978 = vmatpush1.xpose.msra.mxu0 %v1975
    %1979 = vmatprep.subr.mxu0 0.0
    %1980 = vmatpush1.xpose.msra.mxu0 0.0
    %1981 = vmatprep.subr.mxu0 0.0
    %1982 = vmatpush1.xpose.msra.mxu0 0.0
    %1983 = vmatprep.subr.mxu0 0.0
    %1984 = vmatpush1.xpose.msra.mxu0 0.0
    %1985 = vmatprep.subr.mxu0 0.0
    %1986 = vmatpush1.xpose.msra.mxu0 0.0
    %1987 = vmatprep.subr.mxu0 0.0
    %1988 = vmatpush1.xpose.msra.mxu0 0.0
    %1989 = vmatprep.subr.mxu0 0.0
    %1990 = vmatpush1.xpose.msra.mxu0 0.0
    %1991 = vmatprep.subr.mxu0 0.0
    %1992 = vmatpush1.xpose.msra.mxu0 0.0
    %1993 = vmatprep.subr.mxu0 0.0
    %1994 = vmatpush1.xpose.msra.mxu0 0.0
    %1995 = vmatprep.subr.mxu0 0.0
    %1996 = vmatpush1.xpose.msra.mxu0 0.0
    %1997 = vmatprep.subr.mxu0 0.0
    %1998 = vmatpush1.xpose.msra.mxu0 0.0
    %1999 = vmatprep.subr.mxu0 0.0
    %2000 = vmatpush1.xpose.msra.mxu0 0.0
    %2001 = vmatprep.subr.mxu0 0.0
    %2002 = vmatpush1.xpose.msra.mxu0 0.0
    %2003 = vmatprep.subr.mxu0 0.0
    %2004 = vmatpush1.xpose.msra.mxu0 0.0
    %2005 = vmatprep.subr.mxu0 0.0
    %2006 = vmatpush1.xpose.msra.mxu0 0.0
    %2007 = vmatprep.subr.mxu0 0.0
    %2008 = vmatpush1.xpose.msra.mxu0 0.0
    %2009 = vmatprep.subr.mxu0 0.0
    %2010 = vmatpush1.xpose.msra.mxu0 0.0
    %2011 = vmatprep.subr.mxu0 0.0
    %2012 = vmatpush1.xpose.msra.mxu0 0.0
    %2013 = vmatprep.subr.mxu0 0.0
    %2014 = vmatpush1.xpose.msra.mxu0 0.0
    %2015 = vmatprep.subr.mxu0 0.0
    %2016 = vmatpush1.xpose.msra.mxu0 0.0
    %2017 = vmatprep.subr.mxu0 0.0
    %2018 = vmatpush1.xpose.msra.mxu0 0.0
    %2019 = vmatprep.subr.mxu0 0.0
    %2020 = vmatpush1.xpose.msra.mxu0 0.0
    %2021 = vmatprep.subr.mxu0 0.0
    %2022 = vmatpush1.xpose.msra.mxu0 0.0
    %2023 = vmatprep.subr.mxu0 0.0
    %2024 = vmatpush1.xpose.msra.mxu0 0.0
    %2025 = vmatprep.subr.mxu0 0.0
    %2026 = vmatpush1.xpose.msra.mxu0 0.0
    %2027 = vmatprep.subr.mxu0 0.0
    %2028 = vmatpush1.xpose.msra.mxu0 0.0
    %2029 = vmatprep.subr.mxu0 0.0
    %2030 = vmatpush1.xpose.msra.mxu0 0.0
    %2031 = vmatprep.subr.mxu0 0.0
    %2032 = vmatpush1.xpose.msra.mxu0 0.0
    %2033 = vmatprep.subr.mxu0 0.0
    %2034 = vmatpush1.xpose.msra.mxu0 0.0
    %2035 = vmatprep.subr.mxu0 0.0
    %2036 = vmatpush1.xpose.msra.mxu0 0.0
    %2037 = vmatprep.subr.mxu0 0.0
    %2038 = vmatpush1.xpose.msra.mxu0 0.0
    %2039 = vmatprep.subr.mxu0 0.0
    %2040 = vmatpush1.xpose.msra.mxu0 0.0
    %2041 = vmatprep.mubr.f32.mxu0 0.0
    %2042 = vmatmul.mubr.f32.gmra.mrb[0].mxu0 %v1973
    %v2043 = vpop.f32.mrb[0].mxu0
    %v2044 = vadd.f32 %v1734, %v2043
    %v2045 = vpop.f32.mrb[0].mxu0
    %2046 = vdwg.mxu0
    %v2047 = vsel %vm541, %v2044, -inf
    %2048 = vmax.xlane.f32.xlu0 %v2047
    %v2049 = vpop.xlane.xlu0 %2048
    %v2050 = vsub.f32 %v2044, %v2049
    %v2051 = vmul.f32 %v2050, 1.442695
    %v2052 = vpow.pop %v2051
    %v2053 = vsel %vm541, %v2052, 0.0
    %2054 = vadd.xlane.f32.xlu0 %v2053
    %v2055 = vpop.xlane.xlu0 %2054
    %v2056 = vrcp.pop %v2055
    %v2057 = vmul.f32 %v2052, %v2056
    %2059 = vrot.lane.b32.xlu0 %v1721, 120
    %v2060 = vpop.permute.xlu0 %2059
    %v2063 = vsel %vm541, %v2057, 0
    %2065 = vmatprep.subr.mxu0 0.0
    %2066 = vmatpush1.msra.mxu0 %v2060
    %2067 = vmatprep.subr.mxu0 0.0
    %2068 = vmatpush1.msra.mxu0 0.0
    %2069 = vmatprep.subr.mxu0 0.0
    %2070 = vmatpush1.msra.mxu0 0.0
    %2071 = vmatprep.subr.mxu0 0.0
    %2072 = vmatpush1.msra.mxu0 0.0
    %2073 = vmatprep.subr.mxu0 0.0
    %2074 = vmatpush1.msra.mxu0 0.0
    %2075 = vmatprep.subr.mxu0 0.0
    %2076 = vmatpush1.msra.mxu0 0.0
    %2077 = vmatprep.subr.mxu0 0.0
    %2078 = vmatpush1.msra.mxu0 0.0
    %2079 = vmatprep.subr.mxu0 0.0
    %2080 = vmatpush1.msra.mxu0 0.0
    %2081 = vmatprep.subr.mxu0 0.0
    %2082 = vmatpush1.msra.mxu0 0.0
    %2083 = vmatprep.subr.mxu0 0.0
    %2084 = vmatpush1.msra.mxu0 0.0
    %2085 = vmatprep.subr.mxu0 0.0
    %2086 = vmatpush1.msra.mxu0 0.0
    %2087 = vmatprep.subr.mxu0 0.0
    %2088 = vmatpush1.msra.mxu0 0.0
    %2089 = vmatprep.subr.mxu0 0.0
    %2090 = vmatpush1.msra.mxu0 0.0
    %2091 = vmatprep.subr.mxu0 0.0
    %2092 = vmatpush1.msra.mxu0 0.0
    %2093 = vmatprep.subr.mxu0 0.0
    %2094 = vmatpush1.msra.mxu0 0.0
    %2095 = vmatprep.subr.mxu0 0.0
    %2096 = vmatpush1.msra.mxu0 0.0
    %2097 = vmatprep.subr.mxu0 0.0
    %2098 = vmatpush1.msra.mxu0 0.0
    %2099 = vmatprep.subr.mxu0 0.0
    %2100 = vmatpush1.msra.mxu0 0.0
    %2101 = vmatprep.subr.mxu0 0.0
    %2102 = vmatpush1.msra.mxu0 0.0
    %2103 = vmatprep.subr.mxu0 0.0
    %2104 = vmatpush1.msra.mxu0 0.0
    %2105 = vmatprep.subr.mxu0 0.0
    %2106 = vmatpush1.msra.mxu0 0.0
    %2107 = vmatprep.subr.mxu0 0.0
    %2108 = vmatpush1.msra.mxu0 0.0
    %2109 = vmatprep.subr.mxu0 0.0
    %2110 = vmatpush1.msra.mxu0 0.0
    %2111 = vmatprep.subr.mxu0 0.0
    %2112 = vmatpush1.msra.mxu0 0.0
    %2113 = vmatprep.subr.mxu0 0.0
    %2114 = vmatpush1.msra.mxu0 0.0
    %2115 = vmatprep.subr.mxu0 0.0
    %2116 = vmatpush1.msra.mxu0 0.0
    %2117 = vmatprep.subr.mxu0 0.0
    %2118 = vmatpush1.msra.mxu0 0.0
    %2119 = vmatprep.subr.mxu0 0.0
    %2120 = vmatpush1.msra.mxu0 0.0
    %2121 = vmatprep.subr.mxu0 0.0
    %2122 = vmatpush1.msra.mxu0 0.0
    %2123 = vmatprep.subr.mxu0 0.0
    %2124 = vmatpush1.msra.mxu0 0.0
    %2125 = vmatprep.subr.mxu0 0.0
    %2126 = vmatpush1.msra.mxu0 0.0
    %2127 = vmatprep.subr.mxu0 0.0
    %2128 = vmatpush1.msra.mxu0 0.0
    %2129 = vmatprep.mubr.f32.mxu0 0.0
    %2130 = vmatmul.mubr.f32.gmra.mrb[0].mxu0 %v2063
    %v2131 = vpop.f32.mrb[0].mxu0
    %v2132 = vadd.f32 0.0, %v2131
    %v2133 = vpop.f32.mrb[0].mxu0
    %2134 = vdwg.mxu0
    %v2136 = vsel %vm541, %v2132, 0
    %2138 = vmatprep.subr.mxu0 0.0
    %2139 = vmatpush1.msra.mxu0 %v290
    %2140 = vmatprep.subr.mxu0 0.0
    %2141 = vmatpush1.msra.mxu0 0.0
    %2142 = vmatprep.subr.mxu0 0.0
    %2143 = vmatpush1.msra.mxu0 0.0
    %2144 = vmatprep.subr.mxu0 0.0
    %2145 = vmatpush1.msra.mxu0 0.0
    %2146 = vmatprep.subr.mxu0 0.0
    %2147 = vmatpush1.msra.mxu0 0.0
    %2148 = vmatprep.subr.mxu0 0.0
    %2149 = vmatpush1.msra.mxu0 0.0
    %2150 = vmatprep.subr.mxu0 0.0
    %2151 = vmatpush1.msra.mxu0 0.0
    %2152 = vmatprep.subr.mxu0 0.0
    %2153 = vmatpush1.msra.mxu0 0.0
    %2154 = vmatprep.subr.mxu0 0.0
    %2155 = vmatpush1.msra.mxu0 0.0
    %2156 = vmatprep.subr.mxu0 0.0
    %2157 = vmatpush1.msra.mxu0 0.0
    %2158 = vmatprep.subr.mxu0 0.0
    %2159 = vmatpush1.msra.mxu0 0.0
    %2160 = vmatprep.subr.mxu0 0.0
    %2161 = vmatpush1.msra.mxu0 0.0
    %2162 = vmatprep.subr.mxu0 0.0
    %2163 = vmatpush1.msra.mxu0 0.0
    %2164 = vmatprep.subr.mxu0 0.0
    %2165 = vmatpush1.msra.mxu0 0.0
    %2166 = vmatprep.subr.mxu0 0.0
    %2167 = vmatpush1.msra.mxu0 0.0
    %2168 = vmatprep.subr.mxu0 0.0
    %2169 = vmatpush1.msra.mxu0 0.0
    %2170 = vmatprep.subr.mxu0 0.0
    %2171 = vmatpush1.msra.mxu0 0.0
    %2172 = vmatprep.subr.mxu0 0.0
    %2173 = vmatpush1.msra.mxu0 0.0
    %2174 = vmatprep.subr.mxu0 0.0
    %2175 = vmatpush1.msra.mxu0 0.0
    %2176 = vmatprep.subr.mxu0 0.0
    %2177 = vmatpush1.msra.mxu0 0.0
    %2178 = vmatprep.subr.mxu0 0.0
    %2179 = vmatpush1.msra.mxu0 0.0
    %2180 = vmatprep.subr.mxu0 0.0
    %2181 = vmatpush1.msra.mxu0 0.0
    %2182 = vmatprep.subr.mxu0 0.0
    %2183 = vmatpush1.msra.mxu0 0.0
    %2184 = vmatprep.subr.mxu0 0.0
    %2185 = vmatpush1.msra.mxu0 0.0
    %2186 = vmatprep.subr.mxu0 0.0
    %2187 = vmatpush1.msra.mxu0 0.0
    %2188 = vmatprep.subr.mxu0 0.0
    %2189 = vmatpush1.msra.mxu0 0.0
    %2190 = vmatprep.subr.mxu0 0.0
    %2191 = vmatpush1.msra.mxu0 0.0
    %2192 = vmatprep.subr.mxu0 0.0
    %2193 = vmatpush1.msra.mxu0 0.0
    %2194 = vmatprep.subr.mxu0 0.0
    %2195 = vmatpush1.msra.mxu0 0.0
    %2196 = vmatprep.subr.mxu0 0.0
    %2197 = vmatpush1.msra.mxu0 0.0
    %2198 = vmatprep.subr.mxu0 0.0
    %2199 = vmatpush1.msra.mxu0 0.0
    %2200 = vmatprep.subr.mxu0 0.0
    %2201 = vmatpush1.msra.mxu0 0.0
    %2202 = vmatprep.mubr.f32.mxu0 0.0
    %2203 = vmatmul.mubr.f32.gmra.mrb[0].mxu0 %v2136
    %v2204 = vpop.f32.mrb[0].mxu0
    %v2205 = vadd.f32 0.0, %v2204
    %v2206 = vpop.f32.mrb[0].mxu0
    %2207 = vdwg.mxu0
    %v2208 = vadd.f32 %v1968, %v2205
    %2209 = vrot.lane.b32.xlu0 %v1571, 112
    %v2210 = vpop.permute.xlu0 %2209
    %2211 = vrot.lane.b32.xlu0 %v1645, 112
    %v2212 = vpop.permute.xlu0 %2211
    %v2213 = vsel %vm541, %v2210, 0
    %v2215 = vsel %vm541, %v2212, 0
    %2217 = vmatprep.subr.mxu0 0.0
    %2218 = vmatpush1.xpose.msra.mxu0 %v2215
    %2219 = vmatprep.subr.mxu0 0.0
    %2220 = vmatpush1.xpose.msra.mxu0 0.0
    %2221 = vmatprep.subr.mxu0 0.0
    %2222 = vmatpush1.xpose.msra.mxu0 0.0
    %2223 = vmatprep.subr.mxu0 0.0
    %2224 = vmatpush1.xpose.msra.mxu0 0.0
    %2225 = vmatprep.subr.mxu0 0.0
    %2226 = vmatpush1.xpose.msra.mxu0 0.0
    %2227 = vmatprep.subr.mxu0 0.0
    %2228 = vmatpush1.xpose.msra.mxu0 0.0
    %2229 = vmatprep.subr.mxu0 0.0
    %2230 = vmatpush1.xpose.msra.mxu0 0.0
    %2231 = vmatprep.subr.mxu0 0.0
    %2232 = vmatpush1.xpose.msra.mxu0 0.0
    %2233 = vmatprep.subr.mxu0 0.0
    %2234 = vmatpush1.xpose.msra.mxu0 0.0
    %2235 = vmatprep.subr.mxu0 0.0
    %2236 = vmatpush1.xpose.msra.mxu0 0.0
    %2237 = vmatprep.subr.mxu0 0.0
    %2238 = vmatpush1.xpose.msra.mxu0 0.0
    %2239 = vmatprep.subr.mxu0 0.0
    %2240 = vmatpush1.xpose.msra.mxu0 0.0
    %2241 = vmatprep.subr.mxu0 0.0
    %2242 = vmatpush1.xpose.msra.mxu0 0.0
    %2243 = vmatprep.subr.mxu0 0.0
    %2244 = vmatpush1.xpose.msra.mxu0 0.0
    %2245 = vmatprep.subr.mxu0 0.0
    %2246 = vmatpush1.xpose.msra.mxu0 0.0
    %2247 = vmatprep.subr.mxu0 0.0
    %2248 = vmatpush1.xpose.msra.mxu0 0.0
    %2249 = vmatprep.subr.mxu0 0.0
    %2250 = vmatpush1.xpose.msra.mxu0 0.0
    %2251 = vmatprep.subr.mxu0 0.0
    %2252 = vmatpush1.xpose.msra.mxu0 0.0
    %2253 = vmatprep.subr.mxu0 0.0
    %2254 = vmatpush1.xpose.msra.mxu0 0.0
    %2255 = vmatprep.subr.mxu0 0.0
    %2256 = vmatpush1.xpose.msra.mxu0 0.0
    %2257 = vmatprep.subr.mxu0 0.0
    %2258 = vmatpush1.xpose.msra.mxu0 0.0
    %2259 = vmatprep.subr.mxu0 0.0
    %2260 = vmatpush1.xpose.msra.mxu0 0.0
    %2261 = vmatprep.subr.mxu0 0.0
    %2262 = vmatpush1.xpose.msra.mxu0 0.0
    %2263 = vmatprep.subr.mxu0 0.0
    %2264 = vmatpush1.xpose.msra.mxu0 0.0
    %2265 = vmatprep.subr.mxu0 0.0
    %2266 = vmatpush1.xpose.msra.mxu0 0.0
    %2267 = vmatprep.subr.mxu0 0.0
    %2268 = vmatpush1.xpose.msra.mxu0 0.0
    %2269 = vmatprep.subr.mxu0 0.0
    %2270 = vmatpush1.xpose.msra.mxu0 0.0
    %2271 = vmatprep.subr.mxu0 0.0
    %2272 = vmatpush1.xpose.msra.mxu0 0.0
    %2273 = vmatprep.subr.mxu0 0.0
    %2274 = vmatpush1.xpose.msra.mxu0 0.0
    %2275 = vmatprep.subr.mxu0 0.0
    %2276 = vmatpush1.xpose.msra.mxu0 0.0
    %2277 = vmatprep.subr.mxu0 0.0
    %2278 = vmatpush1.xpose.msra.mxu0 0.0
    %2279 = vmatprep.subr.mxu0 0.0
    %2280 = vmatpush1.xpose.msra.mxu0 0.0
    %2281 = vmatprep.mubr.f32.mxu0 0.0
    %2282 = vmatmul.mubr.f32.gmra.mrb[0].mxu0 %v2213
    %v2283 = vpop.f32.mrb[0].mxu0
    %v2284 = vadd.f32 %v1734, %v2283
    %v2285 = vpop.f32.mrb[0].mxu0
    %2286 = vdwg.mxu0
    %v2287 = vsel %vm541, %v2284, -inf
    %2288 = vmax.xlane.f32.xlu0 %v2287
    %v2289 = vpop.xlane.xlu0 %2288
    %v2290 = vsub.f32 %v2284, %v2289
    %v2291 = vmul.f32 %v2290, 1.442695
    %v2292 = vpow.pop %v2291
    %v2293 = vsel %vm541, %v2292, 0.0
    %2294 = vadd.xlane.f32.xlu0 %v2293
    %v2295 = vpop.xlane.xlu0 %2294
    %v2296 = vrcp.pop %v2295
    %v2297 = vmul.f32 %v2292, %v2296
    %2298 = vrot.lane.b32.xlu0 %v1721, 112
    %v2299 = vpop.permute.xlu0 %2298
    %v2302 = vsel %vm541, %v2297, 0
    %2304 = vmatprep.subr.mxu0 0.0
    %2305 = vmatpush1.msra.mxu0 %v2299
    %2306 = vmatprep.subr.mxu0 0.0
    %2307 = vmatpush1.msra.mxu0 0.0
    %2308 = vmatprep.subr.mxu0 0.0
    %2309 = vmatpush1.msra.mxu0 0.0
    %2310 = vmatprep.subr.mxu0 0.0
    %2311 = vmatpush1.msra.mxu0 0.0
    %2312 = vmatprep.subr.mxu0 0.0
    %2313 = vmatpush1.msra.mxu0 0.0
    %2314 = vmatprep.subr.mxu0 0.0
    %2315 = vmatpush1.msra.mxu0 0.0
    %2316 = vmatprep.subr.mxu0 0.0
    %2317 = vmatpush1.msra.mxu0 0.0
    %2318 = vmatprep.subr.mxu0 0.0
    %2319 = vmatpush1.msra.mxu0 0.0
    %2320 = vmatprep.subr.mxu0 0.0
    %2321 = vmatpush1.msra.mxu0 0.0
    %2322 = vmatprep.subr.mxu0 0.0
    %2323 = vmatpush1.msra.mxu0 0.0
    %2324 = vmatprep.subr.mxu0 0.0
    %2325 = vmatpush1.msra.mxu0 0.0
    %2326 = vmatprep.subr.mxu0 0.0
    %2327 = vmatpush1.msra.mxu0 0.0
    %2328 = vmatprep.subr.mxu0 0.0
    %2329 = vmatpush1.msra.mxu0 0.0
    %2330 = vmatprep.subr.mxu0 0.0
    %2331 = vmatpush1.msra.mxu0 0.0
    %2332 = vmatprep.subr.mxu0 0.0
    %2333 = vmatpush1.msra.mxu0 0.0
    %2334 = vmatprep.subr.mxu0 0.0
    %2335 = vmatpush1.msra.mxu0 0.0
    %2336 = vmatprep.subr.mxu0 0.0
    %2337 = vmatpush1.msra.mxu0 0.0
    %2338 = vmatprep.subr.mxu0 0.0
    %2339 = vmatpush1.msra.mxu0 0.0
    %2340 = vmatprep.subr.mxu0 0.0
    %2341 = vmatpush1.msra.mxu0 0.0
    %2342 = vmatprep.subr.mxu0 0.0
    %2343 = vmatpush1.msra.mxu0 0.0
    %2344 = vmatprep.subr.mxu0 0.0
    %2345 = vmatpush1.msra.mxu0 0.0
    %2346 = vmatprep.subr.mxu0 0.0
    %2347 = vmatpush1.msra.mxu0 0.0
    %2348 = vmatprep.subr.mxu0 0.0
    %2349 = vmatpush1.msra.mxu0 0.0
    %2350 = vmatprep.subr.mxu0 0.0
    %2351 = vmatpush1.msra.mxu0 0.0
    %2352 = vmatprep.subr.mxu0 0.0
    %2353 = vmatpush1.msra.mxu0 0.0
    %2354 = vmatprep.subr.mxu0 0.0
    %2355 = vmatpush1.msra.mxu0 0.0
    %2356 = vmatprep.subr.mxu0 0.0
    %2357 = vmatpush1.msra.mxu0 0.0
    %2358 = vmatprep.subr.mxu0 0.0
    %2359 = vmatpush1.msra.mxu0 0.0
    %2360 = vmatprep.subr.mxu0 0.0
    %2361 = vmatpush1.msra.mxu0 0.0
    %2362 = vmatprep.subr.mxu0 0.0
    %2363 = vmatpush1.msra.mxu0 0.0
    %2364 = vmatprep.subr.mxu0 0.0
    %2365 = vmatpush1.msra.mxu0 0.0
    %2366 = vmatprep.subr.mxu0 0.0
    %2367 = vmatpush1.msra.mxu0 0.0
    %2368 = vmatprep.mubr.f32.mxu0 0.0
    %2369 = vmatmul.mubr.f32.gmra.mrb[0].mxu0 %v2302
    %v2370 = vpop.f32.mrb[0].mxu0
    %v2371 = vadd.f32 0.0, %v2370
    %v2372 = vpop.f32.mrb[0].mxu0
    %2373 = vdwg.mxu0
    %v2375 = vsel %vm541, %v2371, 0
    %2377 = vmatprep.subr.mxu0 0.0
    %2378 = vmatpush1.msra.mxu0 %v291
    %2379 = vmatprep.subr.mxu0 0.0
    %2380 = vmatpush1.msra.mxu0 0.0
    %2381 = vmatprep.subr.mxu0 0.0
    %2382 = vmatpush1.msra.mxu0 0.0
    %2383 = vmatprep.subr.mxu0 0.0
    %2384 = vmatpush1.msra.mxu0 0.0
    %2385 = vmatprep.subr.mxu0 0.0
    %2386 = vmatpush1.msra.mxu0 0.0
    %2387 = vmatprep.subr.mxu0 0.0
    %2388 = vmatpush1.msra.mxu0 0.0
    %2389 = vmatprep.subr.mxu0 0.0
    %2390 = vmatpush1.msra.mxu0 0.0
    %2391 = vmatprep.subr.mxu0 0.0
    %2392 = vmatpush1.msra.mxu0 0.0
    %2393 = vmatprep.subr.mxu0 0.0
    %2394 = vmatpush1.msra.mxu0 0.0
    %2395 = vmatprep.subr.mxu0 0.0
    %2396 = vmatpush1.msra.mxu0 0.0
    %2397 = vmatprep.subr.mxu0 0.0
    %2398 = vmatpush1.msra.mxu0 0.0
    %2399 = vmatprep.subr.mxu0 0.0
    %2400 = vmatpush1.msra.mxu0 0.0
    %2401 = vmatprep.subr.mxu0 0.0
    %2402 = vmatpush1.msra.mxu0 0.0
    %2403 = vmatprep.subr.mxu0 0.0
    %2404 = vmatpush1.msra.mxu0 0.0
    %2405 = vmatprep.subr.mxu0 0.0
    %2406 = vmatpush1.msra.mxu0 0.0
    %2407 = vmatprep.subr.mxu0 0.0
    %2408 = vmatpush1.msra.mxu0 0.0
    %2409 = vmatprep.subr.mxu0 0.0
    %2410 = vmatpush1.msra.mxu0 0.0
    %2411 = vmatprep.subr.mxu0 0.0
    %2412 = vmatpush1.msra.mxu0 0.0
    %2413 = vmatprep.subr.mxu0 0.0
    %2414 = vmatpush1.msra.mxu0 0.0
    %2415 = vmatprep.subr.mxu0 0.0
    %2416 = vmatpush1.msra.mxu0 0.0
    %2417 = vmatprep.subr.mxu0 0.0
    %2418 = vmatpush1.msra.mxu0 0.0
    %2419 = vmatprep.subr.mxu0 0.0
    %2420 = vmatpush1.msra.mxu0 0.0
    %2421 = vmatprep.subr.mxu0 0.0
    %2422 = vmatpush1.msra.mxu0 0.0
    %2423 = vmatprep.subr.mxu0 0.0
    %2424 = vmatpush1.msra.mxu0 0.0
    %2425 = vmatprep.subr.mxu0 0.0
    %2426 = vmatpush1.msra.mxu0 0.0
    %2427 = vmatprep.subr.mxu0 0.0
    %2428 = vmatpush1.msra.mxu0 0.0
    %2429 = vmatprep.subr.mxu0 0.0
    %2430 = vmatpush1.msra.mxu0 0.0
    %2431 = vmatprep.subr.mxu0 0.0
    %2432 = vmatpush1.msra.mxu0 0.0
    %2433 = vmatprep.subr.mxu0 0.0
    %2434 = vmatpush1.msra.mxu0 0.0
    %2435 = vmatprep.subr.mxu0 0.0
    %2436 = vmatpush1.msra.mxu0 0.0
    %2437 = vmatprep.subr.mxu0 0.0
    %2438 = vmatpush1.msra.mxu0 0.0
    %2439 = vmatprep.subr.mxu0 0.0
    %2440 = vmatpush1.msra.mxu0 0.0
    %2441 = vmatprep.mubr.f32.mxu0 0.0
    %2442 = vmatmul.mubr.f32.gmra.mrb[0].mxu0 %v2375
    %v2443 = vpop.f32.mrb[0].mxu0
    %v2444 = vadd.f32 0.0, %v2443
    %v2445 = vpop.f32.mrb[0].mxu0
    %2446 = vdwg.mxu0
    %v2447 = vadd.f32 %v2208, %v2444
    %2448 = vrot.lane.b32.xlu0 %v1571, 104
    %v2449 = vpop.permute.xlu0 %2448
    %2450 = vrot.lane.b32.xlu0 %v1645, 104
    %v2451 = vpop.permute.xlu0 %2450
    %v2452 = vsel %vm541, %v2449, 0
    %v2454 = vsel %vm541, %v2451, 0
    %2456 = vmatprep.subr.mxu0 0.0
    %2457 = vmatpush1.xpose.msra.mxu0 %v2454
    %2458 = vmatprep.subr.mxu0 0.0
    %2459 = vmatpush1.xpose.msra.mxu0 0.0
    %2460 = vmatprep.subr.mxu0 0.0
    %2461 = vmatpush1.xpose.msra.mxu0 0.0
    %2462 = vmatprep.subr.mxu0 0.0
    %2463 = vmatpush1.xpose.msra.mxu0 0.0
    %2464 = vmatprep.subr.mxu0 0.0
    %2465 = vmatpush1.xpose.msra.mxu0 0.0
    %2466 = vmatprep.subr.mxu0 0.0
    %2467 = vmatpush1.xpose.msra.mxu0 0.0
    %2468 = vmatprep.subr.mxu0 0.0
    %2469 = vmatpush1.xpose.msra.mxu0 0.0
    %2470 = vmatprep.subr.mxu0 0.0
    %2471 = vmatpush1.xpose.msra.mxu0 0.0
    %2472 = vmatprep.subr.mxu0 0.0
    %2473 = vmatpush1.xpose.msra.mxu0 0.0
    %2474 = vmatprep.subr.mxu0 0.0
    %2475 = vmatpush1.xpose.msra.mxu0 0.0
    %2476 = vmatprep.subr.mxu0 0.0
    %2477 = vmatpush1.xpose.msra.mxu0 0.0
    %2478 = vmatprep.subr.mxu0 0.0
    %2479 = vmatpush1.xpose.msra.mxu0 0.0
    %2480 = vmatprep.subr.mxu0 0.0
    %2481 = vmatpush1.xpose.msra.mxu0 0.0
    %2482 = vmatprep.subr.mxu0 0.0
    %2483 = vmatpush1.xpose.msra.mxu0 0.0
    %2484 = vmatprep.subr.mxu0 0.0
    %2485 = vmatpush1.xpose.msra.mxu0 0.0
    %2486 = vmatprep.subr.mxu0 0.0
    %2487 = vmatpush1.xpose.msra.mxu0 0.0
    %2488 = vmatprep.subr.mxu0 0.0
    %2489 = vmatpush1.xpose.msra.mxu0 0.0
    %2490 = vmatprep.subr.mxu0 0.0
    %2491 = vmatpush1.xpose.msra.mxu0 0.0
    %2492 = vmatprep.subr.mxu0 0.0
    %2493 = vmatpush1.xpose.msra.mxu0 0.0
    %2494 = vmatprep.subr.mxu0 0.0
    %2495 = vmatpush1.xpose.msra.mxu0 0.0
    %2496 = vmatprep.subr.mxu0 0.0
    %2497 = vmatpush1.xpose.msra.mxu0 0.0
    %2498 = vmatprep.subr.mxu0 0.0
    %2499 = vmatpush1.xpose.msra.mxu0 0.0
    %2500 = vmatprep.subr.mxu0 0.0
    %2501 = vmatpush1.xpose.msra.mxu0 0.0
    %2502 = vmatprep.subr.mxu0 0.0
    %2503 = vmatpush1.xpose.msra.mxu0 0.0
    %2504 = vmatprep.subr.mxu0 0.0
    %2505 = vmatpush1.xpose.msra.mxu0 0.0
    %2506 = vmatprep.subr.mxu0 0.0
    %2507 = vmatpush1.xpose.msra.mxu0 0.0
    %2508 = vmatprep.subr.mxu0 0.0
    %2509 = vmatpush1.xpose.msra.mxu0 0.0
    %2510 = vmatprep.subr.mxu0 0.0
    %2511 = vmatpush1.xpose.msra.mxu0 0.0
    %2512 = vmatprep.subr.mxu0 0.0
    %2513 = vmatpush1.xpose.msra.mxu0 0.0
    %2514 = vmatprep.subr.mxu0 0.0
    %2515 = vmatpush1.xpose.msra.mxu0 0.0
    %2516 = vmatprep.subr.mxu0 0.0
    %2517 = vmatpush1.xpose.msra.mxu0 0.0
    %2518 = vmatprep.subr.mxu0 0.0
    %2519 = vmatpush1.xpose.msra.mxu0 0.0
    %2520 = vmatprep.mubr.f32.mxu0 0.0
    %2521 = vmatmul.mubr.f32.gmra.mrb[0].mxu0 %v2452
    %v2522 = vpop.f32.mrb[0].mxu0
    %v2523 = vadd.f32 %v1734, %v2522
    %v2524 = vpop.f32.mrb[0].mxu0
    %2525 = vdwg.mxu0
    %v2526 = vsel %vm541, %v2523, -inf
    %2527 = vmax.xlane.f32.xlu0 %v2526
    %v2528 = vpop.xlane.xlu0 %2527
    %v2529 = vsub.f32 %v2523, %v2528
    %v2530 = vmul.f32 %v2529, 1.442695
    %v2531 = vpow.pop %v2530
    %v2532 = vsel %vm541, %v2531, 0.0
    %2533 = vadd.xlane.f32.xlu0 %v2532
    %v2534 = vpop.xlane.xlu0 %2533
    %v2535 = vrcp.pop %v2534
    %v2536 = vmul.f32 %v2531, %v2535
    %2537 = vrot.lane.b32.xlu0 %v1721, 104
    %v2538 = vpop.permute.xlu0 %2537
    %v2541 = vsel %vm541, %v2536, 0
    %2543 = vmatprep.subr.mxu0 0.0
    %2544 = vmatpush1.msra.mxu0 %v2538
    %2545 = vmatprep.subr.mxu0 0.0
    %2546 = vmatpush1.msra.mxu0 0.0
    %2547 = vmatprep.subr.mxu0 0.0
    %2548 = vmatpush1.msra.mxu0 0.0
    %2549 = vmatprep.subr.mxu0 0.0
    %2550 = vmatpush1.msra.mxu0 0.0
    %2551 = vmatprep.subr.mxu0 0.0
    %2552 = vmatpush1.msra.mxu0 0.0
    %2553 = vmatprep.subr.mxu0 0.0
    %2554 = vmatpush1.msra.mxu0 0.0
    %2555 = vmatprep.subr.mxu0 0.0
    %2556 = vmatpush1.msra.mxu0 0.0
    %2557 = vmatprep.subr.mxu0 0.0
    %2558 = vmatpush1.msra.mxu0 0.0
    %2559 = vmatprep.subr.mxu0 0.0
    %2560 = vmatpush1.msra.mxu0 0.0
    %2561 = vmatprep.subr.mxu0 0.0
    %2562 = vmatpush1.msra.mxu0 0.0
    %2563 = vmatprep.subr.mxu0 0.0
    %2564 = vmatpush1.msra.mxu0 0.0
    %2565 = vmatprep.subr.mxu0 0.0
    %2566 = vmatpush1.msra.mxu0 0.0
    %2567 = vmatprep.subr.mxu0 0.0
    %2568 = vmatpush1.msra.mxu0 0.0
    %2569 = vmatprep.subr.mxu0 0.0
    %2570 = vmatpush1.msra.mxu0 0.0
    %2571 = vmatprep.subr.mxu0 0.0
    %2572 = vmatpush1.msra.mxu0 0.0
    %2573 = vmatprep.subr.mxu0 0.0
    %2574 = vmatpush1.msra.mxu0 0.0
    %2575 = vmatprep.subr.mxu0 0.0
    %2576 = vmatpush1.msra.mxu0 0.0
    %2577 = vmatprep.subr.mxu0 0.0
    %2578 = vmatpush1.msra.mxu0 0.0
    %2579 = vmatprep.subr.mxu0 0.0
    %2580 = vmatpush1.msra.mxu0 0.0
    %2581 = vmatprep.subr.mxu0 0.0
    %2582 = vmatpush1.msra.mxu0 0.0
    %2583 = vmatprep.subr.mxu0 0.0
    %2584 = vmatpush1.msra.mxu0 0.0
    %2585 = vmatprep.subr.mxu0 0.0
    %2586 = vmatpush1.msra.mxu0 0.0
    %2587 = vmatprep.subr.mxu0 0.0
    %2588 = vmatpush1.msra.mxu0 0.0
    %2589 = vmatprep.subr.mxu0 0.0
    %2590 = vmatpush1.msra.mxu0 0.0
    %2591 = vmatprep.subr.mxu0 0.0
    %2592 = vmatpush1.msra.mxu0 0.0
    %2593 = vmatprep.subr.mxu0 0.0
    %2594 = vmatpush1.msra.mxu0 0.0
    %2595 = vmatprep.subr.mxu0 0.0
    %2596 = vmatpush1.msra.mxu0 0.0
    %2597 = vmatprep.subr.mxu0 0.0
    %2598 = vmatpush1.msra.mxu0 0.0
    %2599 = vmatprep.subr.mxu0 0.0
    %2600 = vmatpush1.msra.mxu0 0.0
    %2601 = vmatprep.subr.mxu0 0.0
    %2602 = vmatpush1.msra.mxu0 0.0
    %2603 = vmatprep.subr.mxu0 0.0
    %2604 = vmatpush1.msra.mxu0 0.0
    %2605 = vmatprep.subr.mxu0 0.0
    %2606 = vmatpush1.msra.mxu0 0.0
    %2607 = vmatprep.mubr.f32.mxu0 0.0
    %2608 = vmatmul.mubr.f32.gmra.mrb[0].mxu0 %v2541
    %v2609 = vpop.f32.mrb[0].mxu0
    %v2610 = vadd.f32 0.0, %v2609
    %v2611 = vpop.f32.mrb[0].mxu0
    %2612 = vdwg.mxu0
    %v2614 = vsel %vm541, %v2610, 0
    %2616 = vmatprep.subr.mxu0 0.0
    %2617 = vmatpush1.msra.mxu0 %v292
    %2618 = vmatprep.subr.mxu0 0.0
    %2619 = vmatpush1.msra.mxu0 0.0
    %2620 = vmatprep.subr.mxu0 0.0
    %2621 = vmatpush1.msra.mxu0 0.0
    %2622 = vmatprep.subr.mxu0 0.0
    %2623 = vmatpush1.msra.mxu0 0.0
    %2624 = vmatprep.subr.mxu0 0.0
    %2625 = vmatpush1.msra.mxu0 0.0
    %2626 = vmatprep.subr.mxu0 0.0
    %2627 = vmatpush1.msra.mxu0 0.0
    %2628 = vmatprep.subr.mxu0 0.0
    %2629 = vmatpush1.msra.mxu0 0.0
    %2630 = vmatprep.subr.mxu0 0.0
    %2631 = vmatpush1.msra.mxu0 0.0
    %2632 = vmatprep.subr.mxu0 0.0
    %2633 = vmatpush1.msra.mxu0 0.0
    %2634 = vmatprep.subr.mxu0 0.0
    %2635 = vmatpush1.msra.mxu0 0.0
    %2636 = vmatprep.subr.mxu0 0.0
    %2637 = vmatpush1.msra.mxu0 0.0
    %2638 = vmatprep.subr.mxu0 0.0
    %2639 = vmatpush1.msra.mxu0 0.0
    %2640 = vmatprep.subr.mxu0 0.0
    %2641 = vmatpush1.msra.mxu0 0.0
    %2642 = vmatprep.subr.mxu0 0.0
    %2643 = vmatpush1.msra.mxu0 0.0
    %2644 = vmatprep.subr.mxu0 0.0
    %2645 = vmatpush1.msra.mxu0 0.0
    %2646 = vmatprep.subr.mxu0 0.0
    %2647 = vmatpush1.msra.mxu0 0.0
    %2648 = vmatprep.subr.mxu0 0.0
    %2649 = vmatpush1.msra.mxu0 0.0
    %2650 = vmatprep.subr.mxu0 0.0
    %2651 = vmatpush1.msra.mxu0 0.0
    %2652 = vmatprep.subr.mxu0 0.0
    %2653 = vmatpush1.msra.mxu0 0.0
    %2654 = vmatprep.subr.mxu0 0.0
    %2655 = vmatpush1.msra.mxu0 0.0
    %2656 = vmatprep.subr.mxu0 0.0
    %2657 = vmatpush1.msra.mxu0 0.0
    %2658 = vmatprep.subr.mxu0 0.0
    %2659 = vmatpush1.msra.mxu0 0.0
    %2660 = vmatprep.subr.mxu0 0.0
    %2661 = vmatpush1.msra.mxu0 0.0
    %2662 = vmatprep.subr.mxu0 0.0
    %2663 = vmatpush1.msra.mxu0 0.0
    %2664 = vmatprep.subr.mxu0 0.0
    %2665 = vmatpush1.msra.mxu0 0.0
    %2666 = vmatprep.subr.mxu0 0.0
    %2667 = vmatpush1.msra.mxu0 0.0
    %2668 = vmatprep.subr.mxu0 0.0
    %2669 = vmatpush1.msra.mxu0 0.0
    %2670 = vmatprep.subr.mxu0 0.0
    %2671 = vmatpush1.msra.mxu0 0.0
    %2672 = vmatprep.subr.mxu0 0.0
    %2673 = vmatpush1.msra.mxu0 0.0
    %2674 = vmatprep.subr.mxu0 0.0
    %2675 = vmatpush1.msra.mxu0 0.0
    %2676 = vmatprep.subr.mxu0 0.0
    %2677 = vmatpush1.msra.mxu0 0.0
    %2678 = vmatprep.subr.mxu0 0.0
    %2679 = vmatpush1.msra.mxu0 0.0
    %2680 = vmatprep.mubr.f32.mxu0 0.0
    %2681 = vmatmul.mubr.f32.gmra.mrb[0].mxu0 %v2614
    %v2682 = vpop.f32.mrb[0].mxu0
    %v2683 = vadd.f32 0.0, %v2682
    %v2684 = vpop.f32.mrb[0].mxu0
    %2685 = vdwg.mxu0
    %v2686 = vadd.f32 %v2447, %v2683
    %2687 = vst.msk [vmem:[%s24] sm:$0xff] %vm300, %v2686
    %2688 = vrot.lane.b32.xlu0 %v250, 96
    %v2689 = vpop.permute.xlu0 %2688
    %v2690 = vsel %vm300, %v2689, 0
    %2692 = vmatprep.subr.mxu0 0.0
    %2693 = vmatpush1.msra.mxu0 %v254
    %2694 = vmatprep.subr.mxu0 0.0
    %2695 = vmatpush1.msra.mxu0 %v255
    %2696 = vmatprep.subr.mxu0 0.0
    %2697 = vmatpush1.msra.mxu0 %v256
    %2698 = vmatprep.subr.mxu0 0.0
    %2699 = vmatpush1.msra.mxu0 %v257
    %2700 = vmatprep.subr.mxu0 0.0
    %2701 = vmatpush1.msra.mxu0 0.0
    %2702 = vmatprep.subr.mxu0 0.0
    %2703 = vmatpush1.msra.mxu0 0.0
    %2704 = vmatprep.subr.mxu0 0.0
    %2705 = vmatpush1.msra.mxu0 0.0
    %2706 = vmatprep.subr.mxu0 0.0
    %2707 = vmatpush1.msra.mxu0 0.0
    %2708 = vmatprep.subr.mxu0 0.0
    %2709 = vmatpush1.msra.mxu0 0.0
    %2710 = vmatprep.subr.mxu0 0.0
    %2711 = vmatpush1.msra.mxu0 0.0
    %2712 = vmatprep.subr.mxu0 0.0
    %2713 = vmatpush1.msra.mxu0 0.0
    %2714 = vmatprep.subr.mxu0 0.0
    %2715 = vmatpush1.msra.mxu0 0.0
    %2716 = vmatprep.subr.mxu0 0.0
    %2717 = vmatpush1.msra.mxu0 0.0
    %2718 = vmatprep.subr.mxu0 0.0
    %2719 = vmatpush1.msra.mxu0 0.0
    %2720 = vmatprep.subr.mxu0 0.0
    %2721 = vmatpush1.msra.mxu0 0.0
    %2722 = vmatprep.subr.mxu0 0.0
    %2723 = vmatpush1.msra.mxu0 0.0
    %2724 = vmatprep.subr.mxu0 0.0
    %2725 = vmatpush1.msra.mxu0 0.0
    %2726 = vmatprep.subr.mxu0 0.0
    %2727 = vmatpush1.msra.mxu0 0.0
    %2728 = vmatprep.subr.mxu0 0.0
    %2729 = vmatpush1.msra.mxu0 0.0
    %2730 = vmatprep.subr.mxu0 0.0
    %2731 = vmatpush1.msra.mxu0 0.0
    %2732 = vmatprep.subr.mxu0 0.0
    %2733 = vmatpush1.msra.mxu0 0.0
    %2734 = vmatprep.subr.mxu0 0.0
    %2735 = vmatpush1.msra.mxu0 0.0
    %2736 = vmatprep.subr.mxu0 0.0
    %2737 = vmatpush1.msra.mxu0 0.0
    %2738 = vmatprep.subr.mxu0 0.0
    %2739 = vmatpush1.msra.mxu0 0.0
    %2740 = vmatprep.subr.mxu0 0.0
    %2741 = vmatpush1.msra.mxu0 0.0
    %2742 = vmatprep.subr.mxu0 0.0
    %2743 = vmatpush1.msra.mxu0 0.0
    %2744 = vmatprep.subr.mxu0 0.0
    %2745 = vmatpush1.msra.mxu0 0.0
    %2746 = vmatprep.subr.mxu0 0.0
    %2747 = vmatpush1.msra.mxu0 0.0
    %2748 = vmatprep.subr.mxu0 0.0
    %2749 = vmatpush1.msra.mxu0 0.0
    %2750 = vmatprep.subr.mxu0 0.0
    %2751 = vmatpush1.msra.mxu0 0.0
    %2752 = vmatprep.subr.mxu0 0.0
    %2753 = vmatpush1.msra.mxu0 0.0
    %2754 = vmatprep.subr.mxu0 0.0
    %2755 = vmatpush1.msra.mxu0 0.0
    %2756 = vmatprep.mubr.f32.mxu0 0.0
    %2757 = vmatmul.mubr.f32.gmra.mrb[0].mxu0 %v2690
    %v2758 = vpop.f32.mrb[0].mxu0
    %v2759 = vadd.f32 %v298, %v2758
    %v2760 = vpop.f32.mrb[0].mxu0
    %2761 = vdwg.mxu0
    %v2762 = vmul.f32 %v2759, 0.35355338
    %2763 = vrot.lane.b32.xlu0 %v251, 96
    %v2764 = vpop.permute.xlu0 %2763
    %v2765 = vsel %vm300, %v2764, 0
    %2767 = vmatprep.subr.mxu0 0.0
    %2768 = vmatpush1.msra.mxu0 %v258
    %2769 = vmatprep.subr.mxu0 0.0
    %2770 = vmatpush1.msra.mxu0 %v259
    %2771 = vmatprep.subr.mxu0 0.0
    %2772 = vmatpush1.msra.mxu0 %v260
    %2773 = vmatprep.subr.mxu0 0.0
    %2774 = vmatpush1.msra.mxu0 %v261
    %2775 = vmatprep.subr.mxu0 0.0
    %2776 = vmatpush1.msra.mxu0 0.0
    %2777 = vmatprep.subr.mxu0 0.0
    %2778 = vmatpush1.msra.mxu0 0.0
    %2779 = vmatprep.subr.mxu0 0.0
    %2780 = vmatpush1.msra.mxu0 0.0
    %2781 = vmatprep.subr.mxu0 0.0
    %2782 = vmatpush1.msra.mxu0 0.0
    %2783 = vmatprep.subr.mxu0 0.0
    %2784 = vmatpush1.msra.mxu0 0.0
    %2785 = vmatprep.subr.mxu0 0.0
    %2786 = vmatpush1.msra.mxu0 0.0
    %2787 = vmatprep.subr.mxu0 0.0
    %2788 = vmatpush1.msra.mxu0 0.0
    %2789 = vmatprep.subr.mxu0 0.0
    %2790 = vmatpush1.msra.mxu0 0.0
    %2791 = vmatprep.subr.mxu0 0.0
    %2792 = vmatpush1.msra.mxu0 0.0
    %2793 = vmatprep.subr.mxu0 0.0
    %2794 = vmatpush1.msra.mxu0 0.0
    %2795 = vmatprep.subr.mxu0 0.0
    %2796 = vmatpush1.msra.mxu0 0.0
    %2797 = vmatprep.subr.mxu0 0.0
    %2798 = vmatpush1.msra.mxu0 0.0
    %2799 = vmatprep.subr.mxu0 0.0
    %2800 = vmatpush1.msra.mxu0 0.0
    %2801 = vmatprep.subr.mxu0 0.0
    %2802 = vmatpush1.msra.mxu0 0.0
    %2803 = vmatprep.subr.mxu0 0.0
    %2804 = vmatpush1.msra.mxu0 0.0
    %2805 = vmatprep.subr.mxu0 0.0
    %2806 = vmatpush1.msra.mxu0 0.0
    %2807 = vmatprep.subr.mxu0 0.0
    %2808 = vmatpush1.msra.mxu0 0.0
    %2809 = vmatprep.subr.mxu0 0.0
    %2810 = vmatpush1.msra.mxu0 0.0
    %2811 = vmatprep.subr.mxu0 0.0
    %2812 = vmatpush1.msra.mxu0 0.0
    %2813 = vmatprep.subr.mxu0 0.0
    %2814 = vmatpush1.msra.mxu0 0.0
    %2815 = vmatprep.subr.mxu0 0.0
    %2816 = vmatpush1.msra.mxu0 0.0
    %2817 = vmatprep.subr.mxu0 0.0
    %2818 = vmatpush1.msra.mxu0 0.0
    %2819 = vmatprep.subr.mxu0 0.0
    %2820 = vmatpush1.msra.mxu0 0.0
    %2821 = vmatprep.subr.mxu0 0.0
    %2822 = vmatpush1.msra.mxu0 0.0
    %2823 = vmatprep.subr.mxu0 0.0
    %2824 = vmatpush1.msra.mxu0 0.0
    %2825 = vmatprep.subr.mxu0 0.0
    %2826 = vmatpush1.msra.mxu0 0.0
    %2827 = vmatprep.subr.mxu0 0.0
    %2828 = vmatpush1.msra.mxu0 0.0
    %2829 = vmatprep.subr.mxu0 0.0
    %2830 = vmatpush1.msra.mxu0 0.0
    %2831 = vmatprep.mubr.f32.mxu0 0.0
    %2832 = vmatmul.mubr.f32.gmra.mrb[0].mxu0 %v2765
    %v2833 = vpop.f32.mrb[0].mxu0
    %v2834 = vadd.f32 %v379, %v2833
    %v2835 = vpop.f32.mrb[0].mxu0
    %2836 = vdwg.mxu0
    %2837 = vmatprep.subr.mxu0 0.0
    %2838 = vmatpush1.msra.mxu0 %v262
    %2839 = vmatprep.subr.mxu0 0.0
    %2840 = vmatpush1.msra.mxu0 %v263
    %2841 = vmatprep.subr.mxu0 0.0
    %2842 = vmatpush1.msra.mxu0 %v264
    %2843 = vmatprep.subr.mxu0 0.0
    %2844 = vmatpush1.msra.mxu0 %v265
    %2845 = vmatprep.subr.mxu0 0.0
    %2846 = vmatpush1.msra.mxu0 0.0
    %2847 = vmatprep.subr.mxu0 0.0
    %2848 = vmatpush1.msra.mxu0 0.0
    %2849 = vmatprep.subr.mxu0 0.0
    %2850 = vmatpush1.msra.mxu0 0.0
    %2851 = vmatprep.subr.mxu0 0.0
    %2852 = vmatpush1.msra.mxu0 0.0
    %2853 = vmatprep.subr.mxu0 0.0
    %2854 = vmatpush1.msra.mxu0 0.0
    %2855 = vmatprep.subr.mxu0 0.0
    %2856 = vmatpush1.msra.mxu0 0.0
    %2857 = vmatprep.subr.mxu0 0.0
    %2858 = vmatpush1.msra.mxu0 0.0
    %2859 = vmatprep.subr.mxu0 0.0
    %2860 = vmatpush1.msra.mxu0 0.0
    %2861 = vmatprep.subr.mxu0 0.0
    %2862 = vmatpush1.msra.mxu0 0.0
    %2863 = vmatprep.subr.mxu0 0.0
    %2864 = vmatpush1.msra.mxu0 0.0
    %2865 = vmatprep.subr.mxu0 0.0
    %2866 = vmatpush1.msra.mxu0 0.0
    %2867 = vmatprep.subr.mxu0 0.0
    %2868 = vmatpush1.msra.mxu0 0.0
    %2869 = vmatprep.subr.mxu0 0.0
    %2870 = vmatpush1.msra.mxu0 0.0
    %2871 = vmatprep.subr.mxu0 0.0
    %2872 = vmatpush1.msra.mxu0 0.0
    %2873 = vmatprep.subr.mxu0 0.0
    %2874 = vmatpush1.msra.mxu0 0.0
    %2875 = vmatprep.subr.mxu0 0.0
    %2876 = vmatpush1.msra.mxu0 0.0
    %2877 = vmatprep.subr.mxu0 0.0
    %2878 = vmatpush1.msra.mxu0 0.0
    %2879 = vmatprep.subr.mxu0 0.0
    %2880 = vmatpush1.msra.mxu0 0.0
    %2881 = vmatprep.subr.mxu0 0.0
    %2882 = vmatpush1.msra.mxu0 0.0
    %2883 = vmatprep.subr.mxu0 0.0
    %2884 = vmatpush1.msra.mxu0 0.0
    %2885 = vmatprep.subr.mxu0 0.0
    %2886 = vmatpush1.msra.mxu0 0.0
    %2887 = vmatprep.subr.mxu0 0.0
    %2888 = vmatpush1.msra.mxu0 0.0
    %2889 = vmatprep.subr.mxu0 0.0
    %2890 = vmatpush1.msra.mxu0 0.0
    %2891 = vmatprep.subr.mxu0 0.0
    %2892 = vmatpush1.msra.mxu0 0.0
    %2893 = vmatprep.subr.mxu0 0.0
    %2894 = vmatpush1.msra.mxu0 0.0
    %2895 = vmatprep.subr.mxu0 0.0
    %2896 = vmatpush1.msra.mxu0 0.0
    %2897 = vmatprep.subr.mxu0 0.0
    %2898 = vmatpush1.msra.mxu0 0.0
    %2899 = vmatprep.subr.mxu0 0.0
    %2900 = vmatpush1.msra.mxu0 0.0
    %2901 = vmatprep.mubr.f32.mxu0 0.0
    %2902 = vmatmul.mubr.f32.gmra.mrb[0].mxu0 %v2765
    %v2903 = vpop.f32.mrb[0].mxu0
    %v2904 = vadd.f32 %v458, %v2903
    %v2905 = vpop.f32.mrb[0].mxu0
    %2906 = vdwg.mxu0
    %v2907 = vlaneseq
    %v2908 = vshrl.u32 %v2907, 7
    %v2909 = vsub.s32 1, %v2908
    %v2910 = vrot.slane %v252, %v2909
    %v2912 = vsel %vm541, %v2762, 0
    %v2915 = vsel %vm541, %v2834, 0
    %2917 = vmatprep.subr.mxu0 0.0
    %2918 = vmatpush1.xpose.msra.mxu0 %v2915
    %2919 = vmatprep.subr.mxu0 0.0
    %2920 = vmatpush1.xpose.msra.mxu0 0.0
    %2921 = vmatprep.subr.mxu0 0.0
    %2922 = vmatpush1.xpose.msra.mxu0 0.0
    %2923 = vmatprep.subr.mxu0 0.0
    %2924 = vmatpush1.xpose.msra.mxu0 0.0
    %2925 = vmatprep.subr.mxu0 0.0
    %2926 = vmatpush1.xpose.msra.mxu0 0.0
    %2927 = vmatprep.subr.mxu0 0.0
    %2928 = vmatpush1.xpose.msra.mxu0 0.0
    %2929 = vmatprep.subr.mxu0 0.0
    %2930 = vmatpush1.xpose.msra.mxu0 0.0
    %2931 = vmatprep.subr.mxu0 0.0
    %2932 = vmatpush1.xpose.msra.mxu0 0.0
    %2933 = vmatprep.subr.mxu0 0.0
    %2934 = vmatpush1.xpose.msra.mxu0 0.0
    %2935 = vmatprep.subr.mxu0 0.0
    %2936 = vmatpush1.xpose.msra.mxu0 0.0
    %2937 = vmatprep.subr.mxu0 0.0
    %2938 = vmatpush1.xpose.msra.mxu0 0.0
    %2939 = vmatprep.subr.mxu0 0.0
    %2940 = vmatpush1.xpose.msra.mxu0 0.0
    %2941 = vmatprep.subr.mxu0 0.0
    %2942 = vmatpush1.xpose.msra.mxu0 0.0
    %2943 = vmatprep.subr.mxu0 0.0
    %2944 = vmatpush1.xpose.msra.mxu0 0.0
    %2945 = vmatprep.subr.mxu0 0.0
    %2946 = vmatpush1.xpose.msra.mxu0 0.0
    %2947 = vmatprep.subr.mxu0 0.0
    %2948 = vmatpush1.xpose.msra.mxu0 0.0
    %2949 = vmatprep.subr.mxu0 0.0
    %2950 = vmatpush1.xpose.msra.mxu0 0.0
    %2951 = vmatprep.subr.mxu0 0.0
    %2952 = vmatpush1.xpose.msra.mxu0 0.0
    %2953 = vmatprep.subr.mxu0 0.0
    %2954 = vmatpush1.xpose.msra.mxu0 0.0
    %2955 = vmatprep.subr.mxu0 0.0
    %2956 = vmatpush1.xpose.msra.mxu0 0.0
    %2957 = vmatprep.subr.mxu0 0.0
    %2958 = vmatpush1.xpose.msra.mxu0 0.0
    %2959 = vmatprep.subr.mxu0 0.0
    %2960 = vmatpush1.xpose.msra.mxu0 0.0
    %2961 = vmatprep.subr.mxu0 0.0
    %2962 = vmatpush1.xpose.msra.mxu0 0.0
    %2963 = vmatprep.subr.mxu0 0.0
    %2964 = vmatpush1.xpose.msra.mxu0 0.0
    %2965 = vmatprep.subr.mxu0 0.0
    %2966 = vmatpush1.xpose.msra.mxu0 0.0
    %2967 = vmatprep.subr.mxu0 0.0
    %2968 = vmatpush1.xpose.msra.mxu0 0.0
    %2969 = vmatprep.subr.mxu0 0.0
    %2970 = vmatpush1.xpose.msra.mxu0 0.0
    %2971 = vmatprep.subr.mxu0 0.0
    %2972 = vmatpush1.xpose.msra.mxu0 0.0
    %2973 = vmatprep.subr.mxu0 0.0
    %2974 = vmatpush1.xpose.msra.mxu0 0.0
    %2975 = vmatprep.subr.mxu0 0.0
    %2976 = vmatpush1.xpose.msra.mxu0 0.0
    %2977 = vmatprep.subr.mxu0 0.0
    %2978 = vmatpush1.xpose.msra.mxu0 0.0
    %2979 = vmatprep.subr.mxu0 0.0
    %2980 = vmatpush1.xpose.msra.mxu0 0.0
    %2981 = vmatprep.mubr.f32.mxu0 0.0
    %2982 = vmatmul.mubr.f32.gmra.mrb[0].mxu0 %v2912
    %v2983 = vpop.f32.mrb[0].mxu0
    %v2984 = vadd.f32 %v2910, %v2983
    %v2985 = vpop.f32.mrb[0].mxu0
    %2986 = vdwg.mxu0
    %v2987 = vsel %vm541, %v2984, -inf
    %2988 = vmax.xlane.f32.xlu0 %v2987
    %v2989 = vpop.xlane.xlu0 %2988
    %v2990 = vsub.f32 %v2984, %v2989
    %v2991 = vmul.f32 %v2990, 1.442695
    %v2992 = vpow.pop %v2991
    %v2993 = vsel %vm541, %v2992, 0.0
    %2994 = vadd.xlane.f32.xlu0 %v2993
    %v2995 = vpop.xlane.xlu0 %2994
    %v2996 = vrcp.pop %v2995
    %v2997 = vmul.f32 %v2992, %v2996
    %v2999 = vsel %vm541, %v2997, 0
    %3001 = vmatprep.subr.mxu0 0.0
    %3002 = vmatpush1.msra.mxu0 %v2904
    %3003 = vmatprep.subr.mxu0 0.0
    %3004 = vmatpush1.msra.mxu0 0.0
    %3005 = vmatprep.subr.mxu0 0.0
    %3006 = vmatpush1.msra.mxu0 0.0
    %3007 = vmatprep.subr.mxu0 0.0
    %3008 = vmatpush1.msra.mxu0 0.0
    %3009 = vmatprep.subr.mxu0 0.0
    %3010 = vmatpush1.msra.mxu0 0.0
    %3011 = vmatprep.subr.mxu0 0.0
    %3012 = vmatpush1.msra.mxu0 0.0
    %3013 = vmatprep.subr.mxu0 0.0
    %3014 = vmatpush1.msra.mxu0 0.0
    %3015 = vmatprep.subr.mxu0 0.0
    %3016 = vmatpush1.msra.mxu0 0.0
    %3017 = vmatprep.subr.mxu0 0.0
    %3018 = vmatpush1.msra.mxu0 0.0
    %3019 = vmatprep.subr.mxu0 0.0
    %3020 = vmatpush1.msra.mxu0 0.0
    %3021 = vmatprep.subr.mxu0 0.0
    %3022 = vmatpush1.msra.mxu0 0.0
    %3023 = vmatprep.subr.mxu0 0.0
    %3024 = vmatpush1.msra.mxu0 0.0
    %3025 = vmatprep.subr.mxu0 0.0
    %3026 = vmatpush1.msra.mxu0 0.0
    %3027 = vmatprep.subr.mxu0 0.0
    %3028 = vmatpush1.msra.mxu0 0.0
    %3029 = vmatprep.subr.mxu0 0.0
    %3030 = vmatpush1.msra.mxu0 0.0
    %3031 = vmatprep.subr.mxu0 0.0
    %3032 = vmatpush1.msra.mxu0 0.0
    %3033 = vmatprep.subr.mxu0 0.0
    %3034 = vmatpush1.msra.mxu0 0.0
    %3035 = vmatprep.subr.mxu0 0.0
    %3036 = vmatpush1.msra.mxu0 0.0
    %3037 = vmatprep.subr.mxu0 0.0
    %3038 = vmatpush1.msra.mxu0 0.0
    %3039 = vmatprep.subr.mxu0 0.0
    %3040 = vmatpush1.msra.mxu0 0.0
    %3041 = vmatprep.subr.mxu0 0.0
    %3042 = vmatpush1.msra.mxu0 0.0
    %3043 = vmatprep.subr.mxu0 0.0
    %3044 = vmatpush1.msra.mxu0 0.0
    %3045 = vmatprep.subr.mxu0 0.0
    %3046 = vmatpush1.msra.mxu0 0.0
    %3047 = vmatprep.subr.mxu0 0.0
    %3048 = vmatpush1.msra.mxu0 0.0
    %3049 = vmatprep.subr.mxu0 0.0
    %3050 = vmatpush1.msra.mxu0 0.0
    %3051 = vmatprep.subr.mxu0 0.0
    %3052 = vmatpush1.msra.mxu0 0.0
    %3053 = vmatprep.subr.mxu0 0.0
    %3054 = vmatpush1.msra.mxu0 0.0
    %3055 = vmatprep.subr.mxu0 0.0
    %3056 = vmatpush1.msra.mxu0 0.0
    %3057 = vmatprep.subr.mxu0 0.0
    %3058 = vmatpush1.msra.mxu0 0.0
    %3059 = vmatprep.subr.mxu0 0.0
    %3060 = vmatpush1.msra.mxu0 0.0
    %3061 = vmatprep.subr.mxu0 0.0
    %3062 = vmatpush1.msra.mxu0 0.0
    %3063 = vmatprep.subr.mxu0 0.0
    %3064 = vmatpush1.msra.mxu0 0.0
    %3065 = vmatprep.mubr.f32.mxu0 0.0
    %3066 = vmatmul.mubr.f32.gmra.mrb[0].mxu0 %v2999
    %v3067 = vpop.f32.mrb[0].mxu0
    %v3068 = vadd.f32 0.0, %v3067
    %v3069 = vpop.f32.mrb[0].mxu0
    %3070 = vdwg.mxu0
    %v3072 = vsel %vm541, %v3068, 0
    %3074 = vmatprep.subr.mxu0 0.0
    %3075 = vmatpush1.msra.mxu0 %v269
    %3076 = vmatprep.subr.mxu0 0.0
    %3077 = vmatpush1.msra.mxu0 0.0
    %3078 = vmatprep.subr.mxu0 0.0
    %3079 = vmatpush1.msra.mxu0 0.0
    %3080 = vmatprep.subr.mxu0 0.0
    %3081 = vmatpush1.msra.mxu0 0.0
    %3082 = vmatprep.subr.mxu0 0.0
    %3083 = vmatpush1.msra.mxu0 0.0
    %3084 = vmatprep.subr.mxu0 0.0
    %3085 = vmatpush1.msra.mxu0 0.0
    %3086 = vmatprep.subr.mxu0 0.0
    %3087 = vmatpush1.msra.mxu0 0.0
    %3088 = vmatprep.subr.mxu0 0.0
    %3089 = vmatpush1.msra.mxu0 0.0
    %3090 = vmatprep.subr.mxu0 0.0
    %3091 = vmatpush1.msra.mxu0 0.0
    %3092 = vmatprep.subr.mxu0 0.0
    %3093 = vmatpush1.msra.mxu0 0.0
    %3094 = vmatprep.subr.mxu0 0.0
    %3095 = vmatpush1.msra.mxu0 0.0
    %3096 = vmatprep.subr.mxu0 0.0
    %3097 = vmatpush1.msra.mxu0 0.0
    %3098 = vmatprep.subr.mxu0 0.0
    %3099 = vmatpush1.msra.mxu0 0.0
    %3100 = vmatprep.subr.mxu0 0.0
    %3101 = vmatpush1.msra.mxu0 0.0
    %3102 = vmatprep.subr.mxu0 0.0
    %3103 = vmatpush1.msra.mxu0 0.0
    %3104 = vmatprep.subr.mxu0 0.0
    %3105 = vmatpush1.msra.mxu0 0.0
    %3106 = vmatprep.subr.mxu0 0.0
    %3107 = vmatpush1.msra.mxu0 0.0
    %3108 = vmatprep.subr.mxu0 0.0
    %3109 = vmatpush1.msra.mxu0 0.0
    %3110 = vmatprep.subr.mxu0 0.0
    %3111 = vmatpush1.msra.mxu0 0.0
    %3112 = vmatprep.subr.mxu0 0.0
    %3113 = vmatpush1.msra.mxu0 0.0
    %3114 = vmatprep.subr.mxu0 0.0
    %3115 = vmatpush1.msra.mxu0 0.0
    %3116 = vmatprep.subr.mxu0 0.0
    %3117 = vmatpush1.msra.mxu0 0.0
    %3118 = vmatprep.subr.mxu0 0.0
    %3119 = vmatpush1.msra.mxu0 0.0
    %3120 = vmatprep.subr.mxu0 0.0
    %3121 = vmatpush1.msra.mxu0 0.0
    %3122 = vmatprep.subr.mxu0 0.0
    %3123 = vmatpush1.msra.mxu0 0.0
    %3124 = vmatprep.subr.mxu0 0.0
    %3125 = vmatpush1.msra.mxu0 0.0
    %3126 = vmatprep.subr.mxu0 0.0
    %3127 = vmatpush1.msra.mxu0 0.0
    %3128 = vmatprep.subr.mxu0 0.0
    %3129 = vmatpush1.msra.mxu0 0.0
    %3130 = vmatprep.subr.mxu0 0.0
    %3131 = vmatpush1.msra.mxu0 0.0
    %3132 = vmatprep.subr.mxu0 0.0
    %3133 = vmatpush1.msra.mxu0 0.0
    %3134 = vmatprep.subr.mxu0 0.0
    %3135 = vmatpush1.msra.mxu0 0.0
    %3136 = vmatprep.subr.mxu0 0.0
    %3137 = vmatpush1.msra.mxu0 0.0
    %3138 = vmatprep.mubr.f32.mxu0 0.0
    %3139 = vmatmul.mubr.f32.gmra.mrb[0].mxu0 %v3072
    %v3140 = vpop.f32.mrb[0].mxu0
    %v3141 = vadd.f32 0.0, %v3140
    %v3142 = vpop.f32.mrb[0].mxu0
    %3143 = vdwg.mxu0
    %v3144 = vadd.f32 %v536, %v3141
    %3145 = vrot.lane.b32.xlu0 %v2762, 120
    %v3146 = vpop.permute.xlu0 %3145
    %3147 = vrot.lane.b32.xlu0 %v2834, 120
    %v3148 = vpop.permute.xlu0 %3147
    %v3149 = vsel %vm541, %v3146, 0
    %v3151 = vsel %vm541, %v3148, 0
    %3153 = vmatprep.subr.mxu0 0.0
    %3154 = vmatpush1.xpose.msra.mxu0 %v3151
    %3155 = vmatprep.subr.mxu0 0.0
    %3156 = vmatpush1.xpose.msra.mxu0 0.0
    %3157 = vmatprep.subr.mxu0 0.0
    %3158 = vmatpush1.xpose.msra.mxu0 0.0
    %3159 = vmatprep.subr.mxu0 0.0
    %3160 = vmatpush1.xpose.msra.mxu0 0.0
    %3161 = vmatprep.subr.mxu0 0.0
    %3162 = vmatpush1.xpose.msra.mxu0 0.0
    %3163 = vmatprep.subr.mxu0 0.0
    %3164 = vmatpush1.xpose.msra.mxu0 0.0
    %3165 = vmatprep.subr.mxu0 0.0
    %3166 = vmatpush1.xpose.msra.mxu0 0.0
    %3167 = vmatprep.subr.mxu0 0.0
    %3168 = vmatpush1.xpose.msra.mxu0 0.0
    %3169 = vmatprep.subr.mxu0 0.0
    %3170 = vmatpush1.xpose.msra.mxu0 0.0
    %3171 = vmatprep.subr.mxu0 0.0
    %3172 = vmatpush1.xpose.msra.mxu0 0.0
    %3173 = vmatprep.subr.mxu0 0.0
    %3174 = vmatpush1.xpose.msra.mxu0 0.0
    %3175 = vmatprep.subr.mxu0 0.0
    %3176 = vmatpush1.xpose.msra.mxu0 0.0
    %3177 = vmatprep.subr.mxu0 0.0
    %3178 = vmatpush1.xpose.msra.mxu0 0.0
    %3179 = vmatprep.subr.mxu0 0.0
    %3180 = vmatpush1.xpose.msra.mxu0 0.0
    %3181 = vmatprep.subr.mxu0 0.0
    %3182 = vmatpush1.xpose.msra.mxu0 0.0
    %3183 = vmatprep.subr.mxu0 0.0
    %3184 = vmatpush1.xpose.msra.mxu0 0.0
    %3185 = vmatprep.subr.mxu0 0.0
    %3186 = vmatpush1.xpose.msra.mxu0 0.0
    %3187 = vmatprep.subr.mxu0 0.0
    %3188 = vmatpush1.xpose.msra.mxu0 0.0
    %3189 = vmatprep.subr.mxu0 0.0
    %3190 = vmatpush1.xpose.msra.mxu0 0.0
    %3191 = vmatprep.subr.mxu0 0.0
    %3192 = vmatpush1.xpose.msra.mxu0 0.0
    %3193 = vmatprep.subr.mxu0 0.0
    %3194 = vmatpush1.xpose.msra.mxu0 0.0
    %3195 = vmatprep.subr.mxu0 0.0
    %3196 = vmatpush1.xpose.msra.mxu0 0.0
    %3197 = vmatprep.subr.mxu0 0.0
    %3198 = vmatpush1.xpose.msra.mxu0 0.0
    %3199 = vmatprep.subr.mxu0 0.0
    %3200 = vmatpush1.xpose.msra.mxu0 0.0
    %3201 = vmatprep.subr.mxu0 0.0
    %3202 = vmatpush1.xpose.msra.mxu0 0.0
    %3203 = vmatprep.subr.mxu0 0.0
    %3204 = vmatpush1.xpose.msra.mxu0 0.0
    %3205 = vmatprep.subr.mxu0 0.0
    %3206 = vmatpush1.xpose.msra.mxu0 0.0
    %3207 = vmatprep.subr.mxu0 0.0
    %3208 = vmatpush1.xpose.msra.mxu0 0.0
    %3209 = vmatprep.subr.mxu0 0.0
    %3210 = vmatpush1.xpose.msra.mxu0 0.0
    %3211 = vmatprep.subr.mxu0 0.0
    %3212 = vmatpush1.xpose.msra.mxu0 0.0
    %3213 = vmatprep.subr.mxu0 0.0
    %3214 = vmatpush1.xpose.msra.mxu0 0.0
    %3215 = vmatprep.subr.mxu0 0.0
    %3216 = vmatpush1.xpose.msra.mxu0 0.0
    %3217 = vmatprep.mubr.f32.mxu0 0.0
    %3218 = vmatmul.mubr.f32.gmra.mrb[0].mxu0 %v3149
    %v3219 = vpop.f32.mrb[0].mxu0
    %v3220 = vadd.f32 %v2910, %v3219
    %v3221 = vpop.f32.mrb[0].mxu0
    %3222 = vdwg.mxu0
    %v3223 = vsel %vm541, %v3220, -inf
    %3224 = vmax.xlane.f32.xlu0 %v3223
    %v3225 = vpop.xlane.xlu0 %3224
    %v3226 = vsub.f32 %v3220, %v3225
    %v3227 = vmul.f32 %v3226, 1.442695
    %v3228 = vpow.pop %v3227
    %v3229 = vsel %vm541, %v3228, 0.0
    %3230 = vadd.xlane.f32.xlu0 %v3229
    %v3231 = vpop.xlane.xlu0 %3230
    %v3232 = vrcp.pop %v3231
    %v3233 = vmul.f32 %v3228, %v3232
    %3235 = vrot.lane.b32.xlu0 %v2904, 120
    %v3236 = vpop.permute.xlu0 %3235
    %v3239 = vsel %vm541, %v3233, 0
    %3241 = vmatprep.subr.mxu0 0.0
    %3242 = vmatpush1.msra.mxu0 %v3236
    %3243 = vmatprep.subr.mxu0 0.0
    %3244 = vmatpush1.msra.mxu0 0.0
    %3245 = vmatprep.subr.mxu0 0.0
    %3246 = vmatpush1.msra.mxu0 0.0
    %3247 = vmatprep.subr.mxu0 0.0
    %3248 = vmatpush1.msra.mxu0 0.0
    %3249 = vmatprep.subr.mxu0 0.0
    %3250 = vmatpush1.msra.mxu0 0.0
    %3251 = vmatprep.subr.mxu0 0.0
    %3252 = vmatpush1.msra.mxu0 0.0
    %3253 = vmatprep.subr.mxu0 0.0
    %3254 = vmatpush1.msra.mxu0 0.0
    %3255 = vmatprep.subr.mxu0 0.0
    %3256 = vmatpush1.msra.mxu0 0.0
    %3257 = vmatprep.subr.mxu0 0.0
    %3258 = vmatpush1.msra.mxu0 0.0
    %3259 = vmatprep.subr.mxu0 0.0
    %3260 = vmatpush1.msra.mxu0 0.0
    %3261 = vmatprep.subr.mxu0 0.0
    %3262 = vmatpush1.msra.mxu0 0.0
    %3263 = vmatprep.subr.mxu0 0.0
    %3264 = vmatpush1.msra.mxu0 0.0
    %3265 = vmatprep.subr.mxu0 0.0
    %3266 = vmatpush1.msra.mxu0 0.0
    %3267 = vmatprep.subr.mxu0 0.0
    %3268 = vmatpush1.msra.mxu0 0.0
    %3269 = vmatprep.subr.mxu0 0.0
    %3270 = vmatpush1.msra.mxu0 0.0
    %3271 = vmatprep.subr.mxu0 0.0
    %3272 = vmatpush1.msra.mxu0 0.0
    %3273 = vmatprep.subr.mxu0 0.0
    %3274 = vmatpush1.msra.mxu0 0.0
    %3275 = vmatprep.subr.mxu0 0.0
    %3276 = vmatpush1.msra.mxu0 0.0
    %3277 = vmatprep.subr.mxu0 0.0
    %3278 = vmatpush1.msra.mxu0 0.0
    %3279 = vmatprep.subr.mxu0 0.0
    %3280 = vmatpush1.msra.mxu0 0.0
    %3281 = vmatprep.subr.mxu0 0.0
    %3282 = vmatpush1.msra.mxu0 0.0
    %3283 = vmatprep.subr.mxu0 0.0
    %3284 = vmatpush1.msra.mxu0 0.0
    %3285 = vmatprep.subr.mxu0 0.0
    %3286 = vmatpush1.msra.mxu0 0.0
    %3287 = vmatprep.subr.mxu0 0.0
    %3288 = vmatpush1.msra.mxu0 0.0
    %3289 = vmatprep.subr.mxu0 0.0
    %3290 = vmatpush1.msra.mxu0 0.0
    %3291 = vmatprep.subr.mxu0 0.0
    %3292 = vmatpush1.msra.mxu0 0.0
    %3293 = vmatprep.subr.mxu0 0.0
    %3294 = vmatpush1.msra.mxu0 0.0
    %3295 = vmatprep.subr.mxu0 0.0
    %3296 = vmatpush1.msra.mxu0 0.0
    %3297 = vmatprep.subr.mxu0 0.0
    %3298 = vmatpush1.msra.mxu0 0.0
    %3299 = vmatprep.subr.mxu0 0.0
    %3300 = vmatpush1.msra.mxu0 0.0
    %3301 = vmatprep.subr.mxu0 0.0
    %3302 = vmatpush1.msra.mxu0 0.0
    %3303 = vmatprep.subr.mxu0 0.0
    %3304 = vmatpush1.msra.mxu0 0.0
    %3305 = vmatprep.mubr.f32.mxu0 0.0
    %3306 = vmatmul.mubr.f32.gmra.mrb[0].mxu0 %v3239
    %v3307 = vpop.f32.mrb[0].mxu0
    %v3308 = vadd.f32 0.0, %v3307
    %v3309 = vpop.f32.mrb[0].mxu0
    %3310 = vdwg.mxu0
    %v3312 = vsel %vm541, %v3308, 0
    %3314 = vmatprep.subr.mxu0 0.0
    %3315 = vmatpush1.msra.mxu0 %v270
    %3316 = vmatprep.subr.mxu0 0.0
    %3317 = vmatpush1.msra.mxu0 0.0
    %3318 = vmatprep.subr.mxu0 0.0
    %3319 = vmatpush1.msra.mxu0 0.0
    %3320 = vmatprep.subr.mxu0 0.0
    %3321 = vmatpush1.msra.mxu0 0.0
    %3322 = vmatprep.subr.mxu0 0.0
    %3323 = vmatpush1.msra.mxu0 0.0
    %3324 = vmatprep.subr.mxu0 0.0
    %3325 = vmatpush1.msra.mxu0 0.0
    %3326 = vmatprep.subr.mxu0 0.0
    %3327 = vmatpush1.msra.mxu0 0.0
    %3328 = vmatprep.subr.mxu0 0.0
    %3329 = vmatpush1.msra.mxu0 0.0
    %3330 = vmatprep.subr.mxu0 0.0
    %3331 = vmatpush1.msra.mxu0 0.0
    %3332 = vmatprep.subr.mxu0 0.0
    %3333 = vmatpush1.msra.mxu0 0.0
    %3334 = vmatprep.subr.mxu0 0.0
    %3335 = vmatpush1.msra.mxu0 0.0
    %3336 = vmatprep.subr.mxu0 0.0
    %3337 = vmatpush1.msra.mxu0 0.0
    %3338 = vmatprep.subr.mxu0 0.0
    %3339 = vmatpush1.msra.mxu0 0.0
    %3340 = vmatprep.subr.mxu0 0.0
    %3341 = vmatpush1.msra.mxu0 0.0
    %3342 = vmatprep.subr.mxu0 0.0
    %3343 = vmatpush1.msra.mxu0 0.0
    %3344 = vmatprep.subr.mxu0 0.0
    %3345 = vmatpush1.msra.mxu0 0.0
    %3346 = vmatprep.subr.mxu0 0.0
    %3347 = vmatpush1.msra.mxu0 0.0
    %3348 = vmatprep.subr.mxu0 0.0
    %3349 = vmatpush1.msra.mxu0 0.0
    %3350 = vmatprep.subr.mxu0 0.0
    %3351 = vmatpush1.msra.mxu0 0.0
    %3352 = vmatprep.subr.mxu0 0.0
    %3353 = vmatpush1.msra.mxu0 0.0
    %3354 = vmatprep.subr.mxu0 0.0
    %3355 = vmatpush1.msra.mxu0 0.0
    %3356 = vmatprep.subr.mxu0 0.0
    %3357 = vmatpush1.msra.mxu0 0.0
    %3358 = vmatprep.subr.mxu0 0.0
    %3359 = vmatpush1.msra.mxu0 0.0
    %3360 = vmatprep.subr.mxu0 0.0
    %3361 = vmatpush1.msra.mxu0 0.0
    %3362 = vmatprep.subr.mxu0 0.0
    %3363 = vmatpush1.msra.mxu0 0.0
    %3364 = vmatprep.subr.mxu0 0.0
    %3365 = vmatpush1.msra.mxu0 0.0
    %3366 = vmatprep.subr.mxu0 0.0
    %3367 = vmatpush1.msra.mxu0 0.0
    %3368 = vmatprep.subr.mxu0 0.0
    %3369 = vmatpush1.msra.mxu0 0.0
    %3370 = vmatprep.subr.mxu0 0.0
    %3371 = vmatpush1.msra.mxu0 0.0
    %3372 = vmatprep.subr.mxu0 0.0
    %3373 = vmatpush1.msra.mxu0 0.0
    %3374 = vmatprep.subr.mxu0 0.0
    %3375 = vmatpush1.msra.mxu0 0.0
    %3376 = vmatprep.subr.mxu0 0.0
    %3377 = vmatpush1.msra.mxu0 0.0
    %3378 = vmatprep.mubr.f32.mxu0 0.0
    %3379 = vmatmul.mubr.f32.gmra.mrb[0].mxu0 %v3312
    %v3380 = vpop.f32.mrb[0].mxu0
    %v3381 = vadd.f32 0.0, %v3380
    %v3382 = vpop.f32.mrb[0].mxu0
    %3383 = vdwg.mxu0
    %v3384 = vadd.f32 %v3144, %v3381
    %3385 = vrot.lane.b32.xlu0 %v2762, 112
    %v3386 = vpop.permute.xlu0 %3385
    %3387 = vrot.lane.b32.xlu0 %v2834, 112
    %v3388 = vpop.permute.xlu0 %3387
    %v3389 = vsel %vm541, %v3386, 0
    %v3391 = vsel %vm541, %v3388, 0
    %3393 = vmatprep.subr.mxu0 0.0
    %3394 = vmatpush1.xpose.msra.mxu0 %v3391
    %3395 = vmatprep.subr.mxu0 0.0
    %3396 = vmatpush1.xpose.msra.mxu0 0.0
    %3397 = vmatprep.subr.mxu0 0.0
    %3398 = vmatpush1.xpose.msra.mxu0 0.0
    %3399 = vmatprep.subr.mxu0 0.0
    %3400 = vmatpush1.xpose.msra.mxu0 0.0
    %3401 = vmatprep.subr.mxu0 0.0
    %3402 = vmatpush1.xpose.msra.mxu0 0.0
    %3403 = vmatprep.subr.mxu0 0.0
    %3404 = vmatpush1.xpose.msra.mxu0 0.0
    %3405 = vmatprep.subr.mxu0 0.0
    %3406 = vmatpush1.xpose.msra.mxu0 0.0
    %3407 = vmatprep.subr.mxu0 0.0
    %3408 = vmatpush1.xpose.msra.mxu0 0.0
    %3409 = vmatprep.subr.mxu0 0.0
    %3410 = vmatpush1.xpose.msra.mxu0 0.0
    %3411 = vmatprep.subr.mxu0 0.0
    %3412 = vmatpush1.xpose.msra.mxu0 0.0
    %3413 = vmatprep.subr.mxu0 0.0
    %3414 = vmatpush1.xpose.msra.mxu0 0.0
    %3415 = vmatprep.subr.mxu0 0.0
    %3416 = vmatpush1.xpose.msra.mxu0 0.0
    %3417 = vmatprep.subr.mxu0 0.0
    %3418 = vmatpush1.xpose.msra.mxu0 0.0
    %3419 = vmatprep.subr.mxu0 0.0
    %3420 = vmatpush1.xpose.msra.mxu0 0.0
    %3421 = vmatprep.subr.mxu0 0.0
    %3422 = vmatpush1.xpose.msra.mxu0 0.0
    %3423 = vmatprep.subr.mxu0 0.0
    %3424 = vmatpush1.xpose.msra.mxu0 0.0
    %3425 = vmatprep.subr.mxu0 0.0
    %3426 = vmatpush1.xpose.msra.mxu0 0.0
    %3427 = vmatprep.subr.mxu0 0.0
    %3428 = vmatpush1.xpose.msra.mxu0 0.0
    %3429 = vmatprep.subr.mxu0 0.0
    %3430 = vmatpush1.xpose.msra.mxu0 0.0
    %3431 = vmatprep.subr.mxu0 0.0
    %3432 = vmatpush1.xpose.msra.mxu0 0.0
    %3433 = vmatprep.subr.mxu0 0.0
    %3434 = vmatpush1.xpose.msra.mxu0 0.0
    %3435 = vmatprep.subr.mxu0 0.0
    %3436 = vmatpush1.xpose.msra.mxu0 0.0
    %3437 = vmatprep.subr.mxu0 0.0
    %3438 = vmatpush1.xpose.msra.mxu0 0.0
    %3439 = vmatprep.subr.mxu0 0.0
    %3440 = vmatpush1.xpose.msra.mxu0 0.0
    %3441 = vmatprep.subr.mxu0 0.0
    %3442 = vmatpush1.xpose.msra.mxu0 0.0
    %3443 = vmatprep.subr.mxu0 0.0
    %3444 = vmatpush1.xpose.msra.mxu0 0.0
    %3445 = vmatprep.subr.mxu0 0.0
    %3446 = vmatpush1.xpose.msra.mxu0 0.0
    %3447 = vmatprep.subr.mxu0 0.0
    %3448 = vmatpush1.xpose.msra.mxu0 0.0
    %3449 = vmatprep.subr.mxu0 0.0
    %3450 = vmatpush1.xpose.msra.mxu0 0.0
    %3451 = vmatprep.subr.mxu0 0.0
    %3452 = vmatpush1.xpose.msra.mxu0 0.0
    %3453 = vmatprep.subr.mxu0 0.0
    %3454 = vmatpush1.xpose.msra.mxu0 0.0
    %3455 = vmatprep.subr.mxu0 0.0
    %3456 = vmatpush1.xpose.msra.mxu0 0.0
    %3457 = vmatprep.mubr.f32.mxu0 0.0
    %3458 = vmatmul.mubr.f32.gmra.mrb[0].mxu0 %v3389
    %v3459 = vpop.f32.mrb[0].mxu0
    %v3460 = vadd.f32 %v2910, %v3459
    %v3461 = vpop.f32.mrb[0].mxu0
    %3462 = vdwg.mxu0
    %v3463 = vsel %vm541, %v3460, -inf
    %3464 = vmax.xlane.f32.xlu0 %v3463
    %v3465 = vpop.xlane.xlu0 %3464
    %v3466 = vsub.f32 %v3460, %v3465
    %v3467 = vmul.f32 %v3466, 1.442695
    %v3468 = vpow.pop %v3467
    %v3469 = vsel %vm541, %v3468, 0.0
    %3470 = vadd.xlane.f32.xlu0 %v3469
    %v3471 = vpop.xlane.xlu0 %3470
    %v3472 = vrcp.pop %v3471
    %v3473 = vmul.f32 %v3468, %v3472
    %3474 = vrot.lane.b32.xlu0 %v2904, 112
    %v3475 = vpop.permute.xlu0 %3474
    %v3478 = vsel %vm541, %v3473, 0
    %3480 = vmatprep.subr.mxu0 0.0
    %3481 = vmatpush1.msra.mxu0 %v3475
    %3482 = vmatprep.subr.mxu0 0.0
    %3483 = vmatpush1.msra.mxu0 0.0
    %3484 = vmatprep.subr.mxu0 0.0
    %3485 = vmatpush1.msra.mxu0 0.0
    %3486 = vmatprep.subr.mxu0 0.0
    %3487 = vmatpush1.msra.mxu0 0.0
    %3488 = vmatprep.subr.mxu0 0.0
    %3489 = vmatpush1.msra.mxu0 0.0
    %3490 = vmatprep.subr.mxu0 0.0
    %3491 = vmatpush1.msra.mxu0 0.0
    %3492 = vmatprep.subr.mxu0 0.0
    %3493 = vmatpush1.msra.mxu0 0.0
    %3494 = vmatprep.subr.mxu0 0.0
    %3495 = vmatpush1.msra.mxu0 0.0
    %3496 = vmatprep.subr.mxu0 0.0
    %3497 = vmatpush1.msra.mxu0 0.0
    %3498 = vmatprep.subr.mxu0 0.0
    %3499 = vmatpush1.msra.mxu0 0.0
    %3500 = vmatprep.subr.mxu0 0.0
    %3501 = vmatpush1.msra.mxu0 0.0
    %3502 = vmatprep.subr.mxu0 0.0
    %3503 = vmatpush1.msra.mxu0 0.0
    %3504 = vmatprep.subr.mxu0 0.0
    %3505 = vmatpush1.msra.mxu0 0.0
    %3506 = vmatprep.subr.mxu0 0.0
    %3507 = vmatpush1.msra.mxu0 0.0
    %3508 = vmatprep.subr.mxu0 0.0
    %3509 = vmatpush1.msra.mxu0 0.0
    %3510 = vmatprep.subr.mxu0 0.0
    %3511 = vmatpush1.msra.mxu0 0.0
    %3512 = vmatprep.subr.mxu0 0.0
    %3513 = vmatpush1.msra.mxu0 0.0
    %3514 = vmatprep.subr.mxu0 0.0
    %3515 = vmatpush1.msra.mxu0 0.0
    %3516 = vmatprep.subr.mxu0 0.0
    %3517 = vmatpush1.msra.mxu0 0.0
    %3518 = vmatprep.subr.mxu0 0.0
    %3519 = vmatpush1.msra.mxu0 0.0
    %3520 = vmatprep.subr.mxu0 0.0
    %3521 = vmatpush1.msra.mxu0 0.0
    %3522 = vmatprep.subr.mxu0 0.0
    %3523 = vmatpush1.msra.mxu0 0.0
    %3524 = vmatprep.subr.mxu0 0.0
    %3525 = vmatpush1.msra.mxu0 0.0
    %3526 = vmatprep.subr.mxu0 0.0
    %3527 = vmatpush1.msra.mxu0 0.0
    %3528 = vmatprep.subr.mxu0 0.0
    %3529 = vmatpush1.msra.mxu0 0.0
    %3530 = vmatprep.subr.mxu0 0.0
    %3531 = vmatpush1.msra.mxu0 0.0
    %3532 = vmatprep.subr.mxu0 0.0
    %3533 = vmatpush1.msra.mxu0 0.0
    %3534 = vmatprep.subr.mxu0 0.0
    %3535 = vmatpush1.msra.mxu0 0.0
    %3536 = vmatprep.subr.mxu0 0.0
    %3537 = vmatpush1.msra.mxu0 0.0
    %3538 = vmatprep.subr.mxu0 0.0
    %3539 = vmatpush1.msra.mxu0 0.0
    %3540 = vmatprep.subr.mxu0 0.0
    %3541 = vmatpush1.msra.mxu0 0.0
    %3542 = vmatprep.subr.mxu0 0.0
    %3543 = vmatpush1.msra.mxu0 0.0
    %3544 = vmatprep.mubr.f32.mxu0 0.0
    %3545 = vmatmul.mubr.f32.gmra.mrb[0].mxu0 %v3478
    %v3546 = vpop.f32.mrb[0].mxu0
    %v3547 = vadd.f32 0.0, %v3546
    %v3548 = vpop.f32.mrb[0].mxu0
    %3549 = vdwg.mxu0
    %v3551 = vsel %vm541, %v3547, 0
    %3553 = vmatprep.subr.mxu0 0.0
    %3554 = vmatpush1.msra.mxu0 %v271
    %3555 = vmatprep.subr.mxu0 0.0
    %3556 = vmatpush1.msra.mxu0 0.0
    %3557 = vmatprep.subr.mxu0 0.0
    %3558 = vmatpush1.msra.mxu0 0.0
    %3559 = vmatprep.subr.mxu0 0.0
    %3560 = vmatpush1.msra.mxu0 0.0
    %3561 = vmatprep.subr.mxu0 0.0
    %3562 = vmatpush1.msra.mxu0 0.0
    %3563 = vmatprep.subr.mxu0 0.0
    %3564 = vmatpush1.msra.mxu0 0.0
    %3565 = vmatprep.subr.mxu0 0.0
    %3566 = vmatpush1.msra.mxu0 0.0
    %3567 = vmatprep.subr.mxu0 0.0
    %3568 = vmatpush1.msra.mxu0 0.0
    %3569 = vmatprep.subr.mxu0 0.0
    %3570 = vmatpush1.msra.mxu0 0.0
    %3571 = vmatprep.subr.mxu0 0.0
    %3572 = vmatpush1.msra.mxu0 0.0
    %3573 = vmatprep.subr.mxu0 0.0
    %3574 = vmatpush1.msra.mxu0 0.0
    %3575 = vmatprep.subr.mxu0 0.0
    %3576 = vmatpush1.msra.mxu0 0.0
    %3577 = vmatprep.subr.mxu0 0.0
    %3578 = vmatpush1.msra.mxu0 0.0
    %3579 = vmatprep.subr.mxu0 0.0
    %3580 = vmatpush1.msra.mxu0 0.0
    %3581 = vmatprep.subr.mxu0 0.0
    %3582 = vmatpush1.msra.mxu0 0.0
    %3583 = vmatprep.subr.mxu0 0.0
    %3584 = vmatpush1.msra.mxu0 0.0
    %3585 = vmatprep.subr.mxu0 0.0
    %3586 = vmatpush1.msra.mxu0 0.0
    %3587 = vmatprep.subr.mxu0 0.0
    %3588 = vmatpush1.msra.mxu0 0.0
    %3589 = vmatprep.subr.mxu0 0.0
    %3590 = vmatpush1.msra.mxu0 0.0
    %3591 = vmatprep.subr.mxu0 0.0
    %3592 = vmatpush1.msra.mxu0 0.0
    %3593 = vmatprep.subr.mxu0 0.0
    %3594 = vmatpush1.msra.mxu0 0.0
    %3595 = vmatprep.subr.mxu0 0.0
    %3596 = vmatpush1.msra.mxu0 0.0
    %3597 = vmatprep.subr.mxu0 0.0
    %3598 = vmatpush1.msra.mxu0 0.0
    %3599 = vmatprep.subr.mxu0 0.0
    %3600 = vmatpush1.msra.mxu0 0.0
    %3601 = vmatprep.subr.mxu0 0.0
    %3602 = vmatpush1.msra.mxu0 0.0
    %3603 = vmatprep.subr.mxu0 0.0
    %3604 = vmatpush1.msra.mxu0 0.0
    %3605 = vmatprep.subr.mxu0 0.0
    %3606 = vmatpush1.msra.mxu0 0.0
    %3607 = vmatprep.subr.mxu0 0.0
    %3608 = vmatpush1.msra.mxu0 0.0
    %3609 = vmatprep.subr.mxu0 0.0
    %3610 = vmatpush1.msra.mxu0 0.0
    %3611 = vmatprep.subr.mxu0 0.0
    %3612 = vmatpush1.msra.mxu0 0.0
    %3613 = vmatprep.subr.mxu0 0.0
    %3614 = vmatpush1.msra.mxu0 0.0
    %3615 = vmatprep.subr.mxu0 0.0
    %3616 = vmatpush1.msra.mxu0 0.0
    %3617 = vmatprep.mubr.f32.mxu0 0.0
    %3618 = vmatmul.mubr.f32.gmra.mrb[0].mxu0 %v3551
    %v3619 = vpop.f32.mrb[0].mxu0
    %v3620 = vadd.f32 0.0, %v3619
    %v3621 = vpop.f32.mrb[0].mxu0
    %3622 = vdwg.mxu0
    %v3623 = vadd.f32 %v3384, %v3620
    %3624 = vrot.lane.b32.xlu0 %v2762, 104
    %v3625 = vpop.permute.xlu0 %3624
    %3626 = vrot.lane.b32.xlu0 %v2834, 104
    %v3627 = vpop.permute.xlu0 %3626
    %v3628 = vsel %vm541, %v3625, 0
    %v3630 = vsel %vm541, %v3627, 0
    %3632 = vmatprep.subr.mxu0 0.0
    %3633 = vmatpush1.xpose.msra.mxu0 %v3630
    %3634 = vmatprep.subr.mxu0 0.0
    %3635 = vmatpush1.xpose.msra.mxu0 0.0
    %3636 = vmatprep.subr.mxu0 0.0
    %3637 = vmatpush1.xpose.msra.mxu0 0.0
    %3638 = vmatprep.subr.mxu0 0.0
    %3639 = vmatpush1.xpose.msra.mxu0 0.0
    %3640 = vmatprep.subr.mxu0 0.0
    %3641 = vmatpush1.xpose.msra.mxu0 0.0
    %3642 = vmatprep.subr.mxu0 0.0
    %3643 = vmatpush1.xpose.msra.mxu0 0.0
    %3644 = vmatprep.subr.mxu0 0.0
    %3645 = vmatpush1.xpose.msra.mxu0 0.0
    %3646 = vmatprep.subr.mxu0 0.0
    %3647 = vmatpush1.xpose.msra.mxu0 0.0
    %3648 = vmatprep.subr.mxu0 0.0
    %3649 = vmatpush1.xpose.msra.mxu0 0.0
    %3650 = vmatprep.subr.mxu0 0.0
    %3651 = vmatpush1.xpose.msra.mxu0 0.0
    %3652 = vmatprep.subr.mxu0 0.0
    %3653 = vmatpush1.xpose.msra.mxu0 0.0
    %3654 = vmatprep.subr.mxu0 0.0
    %3655 = vmatpush1.xpose.msra.mxu0 0.0
    %3656 = vmatprep.subr.mxu0 0.0
    %3657 = vmatpush1.xpose.msra.mxu0 0.0
    %3658 = vmatprep.subr.mxu0 0.0
    %3659 = vmatpush1.xpose.msra.mxu0 0.0
    %3660 = vmatprep.subr.mxu0 0.0
    %3661 = vmatpush1.xpose.msra.mxu0 0.0
    %3662 = vmatprep.subr.mxu0 0.0
    %3663 = vmatpush1.xpose.msra.mxu0 0.0
    %3664 = vmatprep.subr.mxu0 0.0
    %3665 = vmatpush1.xpose.msra.mxu0 0.0
    %3666 = vmatprep.subr.mxu0 0.0
    %3667 = vmatpush1.xpose.msra.mxu0 0.0
    %3668 = vmatprep.subr.mxu0 0.0
    %3669 = vmatpush1.xpose.msra.mxu0 0.0
    %3670 = vmatprep.subr.mxu0 0.0
    %3671 = vmatpush1.xpose.msra.mxu0 0.0
    %3672 = vmatprep.subr.mxu0 0.0
    %3673 = vmatpush1.xpose.msra.mxu0 0.0
    %3674 = vmatprep.subr.mxu0 0.0
    %3675 = vmatpush1.xpose.msra.mxu0 0.0
    %3676 = vmatprep.subr.mxu0 0.0
    %3677 = vmatpush1.xpose.msra.mxu0 0.0
    %3678 = vmatprep.subr.mxu0 0.0
    %3679 = vmatpush1.xpose.msra.mxu0 0.0
    %3680 = vmatprep.subr.mxu0 0.0
    %3681 = vmatpush1.xpose.msra.mxu0 0.0
    %3682 = vmatprep.subr.mxu0 0.0
    %3683 = vmatpush1.xpose.msra.mxu0 0.0
    %3684 = vmatprep.subr.mxu0 0.0
    %3685 = vmatpush1.xpose.msra.mxu0 0.0
    %3686 = vmatprep.subr.mxu0 0.0
    %3687 = vmatpush1.xpose.msra.mxu0 0.0
    %3688 = vmatprep.subr.mxu0 0.0
    %3689 = vmatpush1.xpose.msra.mxu0 0.0
    %3690 = vmatprep.subr.mxu0 0.0
    %3691 = vmatpush1.xpose.msra.mxu0 0.0
    %3692 = vmatprep.subr.mxu0 0.0
    %3693 = vmatpush1.xpose.msra.mxu0 0.0
    %3694 = vmatprep.subr.mxu0 0.0
    %3695 = vmatpush1.xpose.msra.mxu0 0.0
    %3696 = vmatprep.mubr.f32.mxu0 0.0
    %3697 = vmatmul.mubr.f32.gmra.mrb[0].mxu0 %v3628
    %v3698 = vpop.f32.mrb[0].mxu0
    %v3699 = vadd.f32 %v2910, %v3698
    %v3700 = vpop.f32.mrb[0].mxu0
    %3701 = vdwg.mxu0
    %v3702 = vsel %vm541, %v3699, -inf
    %3703 = vmax.xlane.f32.xlu0 %v3702
    %v3704 = vpop.xlane.xlu0 %3703
    %v3705 = vsub.f32 %v3699, %v3704
    %v3706 = vmul.f32 %v3705, 1.442695
    %v3707 = vpow.pop %v3706
    %v3708 = vsel %vm541, %v3707, 0.0
    %3709 = vadd.xlane.f32.xlu0 %v3708
    %v3710 = vpop.xlane.xlu0 %3709
    %v3711 = vrcp.pop %v3710
    %v3712 = vmul.f32 %v3707, %v3711
    %3713 = vrot.lane.b32.xlu0 %v2904, 104
    %v3714 = vpop.permute.xlu0 %3713
    %v3717 = vsel %vm541, %v3712, 0
    %3719 = vmatprep.subr.mxu0 0.0
    %3720 = vmatpush1.msra.mxu0 %v3714
    %3721 = vmatprep.subr.mxu0 0.0
    %3722 = vmatpush1.msra.mxu0 0.0
    %3723 = vmatprep.subr.mxu0 0.0
    %3724 = vmatpush1.msra.mxu0 0.0
    %3725 = vmatprep.subr.mxu0 0.0
    %3726 = vmatpush1.msra.mxu0 0.0
    %3727 = vmatprep.subr.mxu0 0.0
    %3728 = vmatpush1.msra.mxu0 0.0
    %3729 = vmatprep.subr.mxu0 0.0
    %3730 = vmatpush1.msra.mxu0 0.0
    %3731 = vmatprep.subr.mxu0 0.0
    %3732 = vmatpush1.msra.mxu0 0.0
    %3733 = vmatprep.subr.mxu0 0.0
    %3734 = vmatpush1.msra.mxu0 0.0
    %3735 = vmatprep.subr.mxu0 0.0
    %3736 = vmatpush1.msra.mxu0 0.0
    %3737 = vmatprep.subr.mxu0 0.0
    %3738 = vmatpush1.msra.mxu0 0.0
    %3739 = vmatprep.subr.mxu0 0.0
    %3740 = vmatpush1.msra.mxu0 0.0
    %3741 = vmatprep.subr.mxu0 0.0
    %3742 = vmatpush1.msra.mxu0 0.0
    %3743 = vmatprep.subr.mxu0 0.0
    %3744 = vmatpush1.msra.mxu0 0.0
    %3745 = vmatprep.subr.mxu0 0.0
    %3746 = vmatpush1.msra.mxu0 0.0
    %3747 = vmatprep.subr.mxu0 0.0
    %3748 = vmatpush1.msra.mxu0 0.0
    %3749 = vmatprep.subr.mxu0 0.0
    %3750 = vmatpush1.msra.mxu0 0.0
    %3751 = vmatprep.subr.mxu0 0.0
    %3752 = vmatpush1.msra.mxu0 0.0
    %3753 = vmatprep.subr.mxu0 0.0
    %3754 = vmatpush1.msra.mxu0 0.0
    %3755 = vmatprep.subr.mxu0 0.0
    %3756 = vmatpush1.msra.mxu0 0.0
    %3757 = vmatprep.subr.mxu0 0.0
    %3758 = vmatpush1.msra.mxu0 0.0
    %3759 = vmatprep.subr.mxu0 0.0
    %3760 = vmatpush1.msra.mxu0 0.0
    %3761 = vmatprep.subr.mxu0 0.0
    %3762 = vmatpush1.msra.mxu0 0.0
    %3763 = vmatprep.subr.mxu0 0.0
    %3764 = vmatpush1.msra.mxu0 0.0
    %3765 = vmatprep.subr.mxu0 0.0
    %3766 = vmatpush1.msra.mxu0 0.0
    %3767 = vmatprep.subr.mxu0 0.0
    %3768 = vmatpush1.msra.mxu0 0.0
    %3769 = vmatprep.subr.mxu0 0.0
    %3770 = vmatpush1.msra.mxu0 0.0
    %3771 = vmatprep.subr.mxu0 0.0
    %3772 = vmatpush1.msra.mxu0 0.0
    %3773 = vmatprep.subr.mxu0 0.0
    %3774 = vmatpush1.msra.mxu0 0.0
    %3775 = vmatprep.subr.mxu0 0.0
    %3776 = vmatpush1.msra.mxu0 0.0
    %3777 = vmatprep.subr.mxu0 0.0
    %3778 = vmatpush1.msra.mxu0 0.0
    %3779 = vmatprep.subr.mxu0 0.0
    %3780 = vmatpush1.msra.mxu0 0.0
    %3781 = vmatprep.subr.mxu0 0.0
    %3782 = vmatpush1.msra.mxu0 0.0
    %3783 = vmatprep.mubr.f32.mxu0 0.0
    %3784 = vmatmul.mubr.f32.gmra.mrb[0].mxu0 %v3717
    %v3785 = vpop.f32.mrb[0].mxu0
    %v3786 = vadd.f32 0.0, %v3785
    %v3787 = vpop.f32.mrb[0].mxu0
    %3788 = vdwg.mxu0
    %v3790 = vsel %vm541, %v3786, 0
    %3792 = vmatprep.subr.mxu0 0.0
    %3793 = vmatpush1.msra.mxu0 %v272
    %3794 = vmatprep.subr.mxu0 0.0
    %3795 = vmatpush1.msra.mxu0 0.0
    %3796 = vmatprep.subr.mxu0 0.0
    %3797 = vmatpush1.msra.mxu0 0.0
    %3798 = vmatprep.subr.mxu0 0.0
    %3799 = vmatpush1.msra.mxu0 0.0
    %3800 = vmatprep.subr.mxu0 0.0
    %3801 = vmatpush1.msra.mxu0 0.0
    %3802 = vmatprep.subr.mxu0 0.0
    %3803 = vmatpush1.msra.mxu0 0.0
    %3804 = vmatprep.subr.mxu0 0.0
    %3805 = vmatpush1.msra.mxu0 0.0
    %3806 = vmatprep.subr.mxu0 0.0
    %3807 = vmatpush1.msra.mxu0 0.0
    %3808 = vmatprep.subr.mxu0 0.0
    %3809 = vmatpush1.msra.mxu0 0.0
    %3810 = vmatprep.subr.mxu0 0.0
    %3811 = vmatpush1.msra.mxu0 0.0
    %3812 = vmatprep.subr.mxu0 0.0
    %3813 = vmatpush1.msra.mxu0 0.0
    %3814 = vmatprep.subr.mxu0 0.0
    %3815 = vmatpush1.msra.mxu0 0.0
    %3816 = vmatprep.subr.mxu0 0.0
    %3817 = vmatpush1.msra.mxu0 0.0
    %3818 = vmatprep.subr.mxu0 0.0
    %3819 = vmatpush1.msra.mxu0 0.0
    %3820 = vmatprep.subr.mxu0 0.0
    %3821 = vmatpush1.msra.mxu0 0.0
    %3822 = vmatprep.subr.mxu0 0.0
    %3823 = vmatpush1.msra.mxu0 0.0
    %3824 = vmatprep.subr.mxu0 0.0
    %3825 = vmatpush1.msra.mxu0 0.0
    %3826 = vmatprep.subr.mxu0 0.0
    %3827 = vmatpush1.msra.mxu0 0.0
    %3828 = vmatprep.subr.mxu0 0.0
    %3829 = vmatpush1.msra.mxu0 0.0
    %3830 = vmatprep.subr.mxu0 0.0
    %3831 = vmatpush1.msra.mxu0 0.0
    %3832 = vmatprep.subr.mxu0 0.0
    %3833 = vmatpush1.msra.mxu0 0.0
    %3834 = vmatprep.subr.mxu0 0.0
    %3835 = vmatpush1.msra.mxu0 0.0
    %3836 = vmatprep.subr.mxu0 0.0
    %3837 = vmatpush1.msra.mxu0 0.0
    %3838 = vmatprep.subr.mxu0 0.0
    %3839 = vmatpush1.msra.mxu0 0.0
    %3840 = vmatprep.subr.mxu0 0.0
    %3841 = vmatpush1.msra.mxu0 0.0
    %3842 = vmatprep.subr.mxu0 0.0
    %3843 = vmatpush1.msra.mxu0 0.0
    %3844 = vmatprep.subr.mxu0 0.0
    %3845 = vmatpush1.msra.mxu0 0.0
    %3846 = vmatprep.subr.mxu0 0.0
    %3847 = vmatpush1.msra.mxu0 0.0
    %3848 = vmatprep.subr.mxu0 0.0
    %3849 = vmatpush1.msra.mxu0 0.0
    %3850 = vmatprep.subr.mxu0 0.0
    %3851 = vmatpush1.msra.mxu0 0.0
    %3852 = vmatprep.subr.mxu0 0.0
    %3853 = vmatpush1.msra.mxu0 0.0
    %3854 = vmatprep.subr.mxu0 0.0
    %3855 = vmatpush1.msra.mxu0 0.0
    %3856 = vmatprep.mubr.f32.mxu0 0.0
    %3857 = vmatmul.mubr.f32.gmra.mrb[0].mxu0 %v3790
    %v3858 = vpop.f32.mrb[0].mxu0
    %v3859 = vadd.f32 0.0, %v3858
    %v3860 = vpop.f32.mrb[0].mxu0
    %3861 = vdwg.mxu0
    %v3862 = vadd.f32 %v3623, %v3859
    %3864 = vrot.lane.b32.xlu0 %v3862, 32
    %v3865 = vpop.permute.xlu0 %3864
    %vm3867 = vcmask 523520
    %3868 = vst.msk [vmem:[%s23] sm:$0xff] %vm3867, %v3865
    %3869 = vmatprep.subr.mxu0 0.0
    %3870 = vmatpush1.msra.mxu0 %v274
    %3871 = vmatprep.subr.mxu0 0.0
    %3872 = vmatpush1.msra.mxu0 %v275
    %3873 = vmatprep.subr.mxu0 0.0
    %3874 = vmatpush1.msra.mxu0 %v276
    %3875 = vmatprep.subr.mxu0 0.0
    %3876 = vmatpush1.msra.mxu0 %v277
    %3877 = vmatprep.subr.mxu0 0.0
    %3878 = vmatpush1.msra.mxu0 0.0
    %3879 = vmatprep.subr.mxu0 0.0
    %3880 = vmatpush1.msra.mxu0 0.0
    %3881 = vmatprep.subr.mxu0 0.0
    %3882 = vmatpush1.msra.mxu0 0.0
    %3883 = vmatprep.subr.mxu0 0.0
    %3884 = vmatpush1.msra.mxu0 0.0
    %3885 = vmatprep.subr.mxu0 0.0
    %3886 = vmatpush1.msra.mxu0 0.0
    %3887 = vmatprep.subr.mxu0 0.0
    %3888 = vmatpush1.msra.mxu0 0.0
    %3889 = vmatprep.subr.mxu0 0.0
    %3890 = vmatpush1.msra.mxu0 0.0
    %3891 = vmatprep.subr.mxu0 0.0
    %3892 = vmatpush1.msra.mxu0 0.0
    %3893 = vmatprep.subr.mxu0 0.0
    %3894 = vmatpush1.msra.mxu0 0.0
    %3895 = vmatprep.subr.mxu0 0.0
    %3896 = vmatpush1.msra.mxu0 0.0
    %3897 = vmatprep.subr.mxu0 0.0
    %3898 = vmatpush1.msra.mxu0 0.0
    %3899 = vmatprep.subr.mxu0 0.0
    %3900 = vmatpush1.msra.mxu0 0.0
    %3901 = vmatprep.subr.mxu0 0.0
    %3902 = vmatpush1.msra.mxu0 0.0
    %3903 = vmatprep.subr.mxu0 0.0
    %3904 = vmatpush1.msra.mxu0 0.0
    %3905 = vmatprep.subr.mxu0 0.0
    %3906 = vmatpush1.msra.mxu0 0.0
    %3907 = vmatprep.subr.mxu0 0.0
    %3908 = vmatpush1.msra.mxu0 0.0
    %3909 = vmatprep.subr.mxu0 0.0
    %3910 = vmatpush1.msra.mxu0 0.0
    %3911 = vmatprep.subr.mxu0 0.0
    %3912 = vmatpush1.msra.mxu0 0.0
    %3913 = vmatprep.subr.mxu0 0.0
    %3914 = vmatpush1.msra.mxu0 0.0
    %3915 = vmatprep.subr.mxu0 0.0
    %3916 = vmatpush1.msra.mxu0 0.0
    %3917 = vmatprep.subr.mxu0 0.0
    %3918 = vmatpush1.msra.mxu0 0.0
    %3919 = vmatprep.subr.mxu0 0.0
    %3920 = vmatpush1.msra.mxu0 0.0
    %3921 = vmatprep.subr.mxu0 0.0
    %3922 = vmatpush1.msra.mxu0 0.0
    %3923 = vmatprep.subr.mxu0 0.0
    %3924 = vmatpush1.msra.mxu0 0.0
    %3925 = vmatprep.subr.mxu0 0.0
    %3926 = vmatpush1.msra.mxu0 0.0
    %3927 = vmatprep.subr.mxu0 0.0
    %3928 = vmatpush1.msra.mxu0 0.0
    %3929 = vmatprep.subr.mxu0 0.0
    %3930 = vmatpush1.msra.mxu0 0.0
    %3931 = vmatprep.subr.mxu0 0.0
    %3932 = vmatpush1.msra.mxu0 0.0
    %3933 = vmatprep.mubr.f32.mxu0 0.0
    %3934 = vmatmul.mubr.f32.gmra.mrb[0].mxu0 %v2690
    %v3935 = vpop.f32.mrb[0].mxu0
    %v3936 = vadd.f32 %v1499, %v3935
    %v3937 = vpop.f32.mrb[0].mxu0
    %3938 = vdwg.mxu0
    %v3939 = vmul.f32 %v3936, 0.35355338
    %3940 = vmatprep.subr.mxu0 0.0
    %3941 = vmatpush1.msra.mxu0 %v278
    %3942 = vmatprep.subr.mxu0 0.0
    %3943 = vmatpush1.msra.mxu0 %v279
    %3944 = vmatprep.subr.mxu0 0.0
    %3945 = vmatpush1.msra.mxu0 %v280
    %3946 = vmatprep.subr.mxu0 0.0
    %3947 = vmatpush1.msra.mxu0 %v281
    %3948 = vmatprep.subr.mxu0 0.0
    %3949 = vmatpush1.msra.mxu0 0.0
    %3950 = vmatprep.subr.mxu0 0.0
    %3951 = vmatpush1.msra.mxu0 0.0
    %3952 = vmatprep.subr.mxu0 0.0
    %3953 = vmatpush1.msra.mxu0 0.0
    %3954 = vmatprep.subr.mxu0 0.0
    %3955 = vmatpush1.msra.mxu0 0.0
    %3956 = vmatprep.subr.mxu0 0.0
    %3957 = vmatpush1.msra.mxu0 0.0
    %3958 = vmatprep.subr.mxu0 0.0
    %3959 = vmatpush1.msra.mxu0 0.0
    %3960 = vmatprep.subr.mxu0 0.0
    %3961 = vmatpush1.msra.mxu0 0.0
    %3962 = vmatprep.subr.mxu0 0.0
    %3963 = vmatpush1.msra.mxu0 0.0
    %3964 = vmatprep.subr.mxu0 0.0
    %3965 = vmatpush1.msra.mxu0 0.0
    %3966 = vmatprep.subr.mxu0 0.0
    %3967 = vmatpush1.msra.mxu0 0.0
    %3968 = vmatprep.subr.mxu0 0.0
    %3969 = vmatpush1.msra.mxu0 0.0
    %3970 = vmatprep.subr.mxu0 0.0
    %3971 = vmatpush1.msra.mxu0 0.0
    %3972 = vmatprep.subr.mxu0 0.0
    %3973 = vmatpush1.msra.mxu0 0.0
    %3974 = vmatprep.subr.mxu0 0.0
    %3975 = vmatpush1.msra.mxu0 0.0
    %3976 = vmatprep.subr.mxu0 0.0
    %3977 = vmatpush1.msra.mxu0 0.0
    %3978 = vmatprep.subr.mxu0 0.0
    %3979 = vmatpush1.msra.mxu0 0.0
    %3980 = vmatprep.subr.mxu0 0.0
    %3981 = vmatpush1.msra.mxu0 0.0
    %3982 = vmatprep.subr.mxu0 0.0
    %3983 = vmatpush1.msra.mxu0 0.0
    %3984 = vmatprep.subr.mxu0 0.0
    %3985 = vmatpush1.msra.mxu0 0.0
    %3986 = vmatprep.subr.mxu0 0.0
    %3987 = vmatpush1.msra.mxu0 0.0
    %3988 = vmatprep.subr.mxu0 0.0
    %3989 = vmatpush1.msra.mxu0 0.0
    %3990 = vmatprep.subr.mxu0 0.0
    %3991 = vmatpush1.msra.mxu0 0.0
    %3992 = vmatprep.subr.mxu0 0.0
    %3993 = vmatpush1.msra.mxu0 0.0
    %3994 = vmatprep.subr.mxu0 0.0
    %3995 = vmatpush1.msra.mxu0 0.0
    %3996 = vmatprep.subr.mxu0 0.0
    %3997 = vmatpush1.msra.mxu0 0.0
    %3998 = vmatprep.subr.mxu0 0.0
    %3999 = vmatpush1.msra.mxu0 0.0
    %4000 = vmatprep.subr.mxu0 0.0
    %4001 = vmatpush1.msra.mxu0 0.0
    %4002 = vmatprep.subr.mxu0 0.0
    %4003 = vmatpush1.msra.mxu0 0.0
    %4004 = vmatprep.mubr.f32.mxu0 0.0
    %4005 = vmatmul.mubr.f32.gmra.mrb[0].mxu0 %v2690
    %v4006 = vpop.f32.mrb[0].mxu0
    %v4007 = vadd.f32 %v1576, %v4006
    %v4008 = vpop.f32.mrb[0].mxu0
    %4009 = vdwg.mxu0
    %4010 = vmatprep.subr.mxu0 0.0
    %4011 = vmatpush1.msra.mxu0 %v282
    %4012 = vmatprep.subr.mxu0 0.0
    %4013 = vmatpush1.msra.mxu0 %v283
    %4014 = vmatprep.subr.mxu0 0.0
    %4015 = vmatpush1.msra.mxu0 %v284
    %4016 = vmatprep.subr.mxu0 0.0
    %4017 = vmatpush1.msra.mxu0 %v285
    %4018 = vmatprep.subr.mxu0 0.0
    %4019 = vmatpush1.msra.mxu0 0.0
    %4020 = vmatprep.subr.mxu0 0.0
    %4021 = vmatpush1.msra.mxu0 0.0
    %4022 = vmatprep.subr.mxu0 0.0
    %4023 = vmatpush1.msra.mxu0 0.0
    %4024 = vmatprep.subr.mxu0 0.0
    %4025 = vmatpush1.msra.mxu0 0.0
    %4026 = vmatprep.subr.mxu0 0.0
    %4027 = vmatpush1.msra.mxu0 0.0
    %4028 = vmatprep.subr.mxu0 0.0
    %4029 = vmatpush1.msra.mxu0 0.0
    %4030 = vmatprep.subr.mxu0 0.0
    %4031 = vmatpush1.msra.mxu0 0.0
    %4032 = vmatprep.subr.mxu0 0.0
    %4033 = vmatpush1.msra.mxu0 0.0
    %4034 = vmatprep.subr.mxu0 0.0
    %4035 = vmatpush1.msra.mxu0 0.0
    %4036 = vmatprep.subr.mxu0 0.0
    %4037 = vmatpush1.msra.mxu0 0.0
    %4038 = vmatprep.subr.mxu0 0.0
    %4039 = vmatpush1.msra.mxu0 0.0
    %4040 = vmatprep.subr.mxu0 0.0
    %4041 = vmatpush1.msra.mxu0 0.0
    %4042 = vmatprep.subr.mxu0 0.0
    %4043 = vmatpush1.msra.mxu0 0.0
    %4044 = vmatprep.subr.mxu0 0.0
    %4045 = vmatpush1.msra.mxu0 0.0
    %4046 = vmatprep.subr.mxu0 0.0
    %4047 = vmatpush1.msra.mxu0 0.0
    %4048 = vmatprep.subr.mxu0 0.0
    %4049 = vmatpush1.msra.mxu0 0.0
    %4050 = vmatprep.subr.mxu0 0.0
    %4051 = vmatpush1.msra.mxu0 0.0
    %4052 = vmatprep.subr.mxu0 0.0
    %4053 = vmatpush1.msra.mxu0 0.0
    %4054 = vmatprep.subr.mxu0 0.0
    %4055 = vmatpush1.msra.mxu0 0.0
    %4056 = vmatprep.subr.mxu0 0.0
    %4057 = vmatpush1.msra.mxu0 0.0
    %4058 = vmatprep.subr.mxu0 0.0
    %4059 = vmatpush1.msra.mxu0 0.0
    %4060 = vmatprep.subr.mxu0 0.0
    %4061 = vmatpush1.msra.mxu0 0.0
    %4062 = vmatprep.subr.mxu0 0.0
    %4063 = vmatpush1.msra.mxu0 0.0
    %4064 = vmatprep.subr.mxu0 0.0
    %4065 = vmatpush1.msra.mxu0 0.0
    %4066 = vmatprep.subr.mxu0 0.0
    %4067 = vmatpush1.msra.mxu0 0.0
    %4068 = vmatprep.subr.mxu0 0.0
    %4069 = vmatpush1.msra.mxu0 0.0
    %4070 = vmatprep.subr.mxu0 0.0
    %4071 = vmatpush1.msra.mxu0 0.0
    %4072 = vmatprep.subr.mxu0 0.0
    %4073 = vmatpush1.msra.mxu0 0.0
    %4074 = vmatprep.mubr.f32.mxu0 0.0
    %4075 = vmatmul.mubr.f32.gmra.mrb[0].mxu0 %v2690
    %v4076 = vpop.f32.mrb[0].mxu0
    %v4077 = vadd.f32 %v1652, %v4076
    %v4078 = vpop.f32.mrb[0].mxu0
    %4079 = vdwg.mxu0
    %v4080 = vlaneseq
    %v4081 = vshrl.u32 %v4080, 7
    %v4082 = vsub.s32 1, %v4081
    %v4083 = vrot.slane %v253, %v4082
    %v4085 = vsel %vm541, %v3939, 0
    %v4088 = vsel %vm541, %v4007, 0
    %4090 = vmatprep.subr.mxu0 0.0
    %4091 = vmatpush1.xpose.msra.mxu0 %v4088
    %4092 = vmatprep.subr.mxu0 0.0
    %4093 = vmatpush1.xpose.msra.mxu0 0.0
    %4094 = vmatprep.subr.mxu0 0.0
    %4095 = vmatpush1.xpose.msra.mxu0 0.0
    %4096 = vmatprep.subr.mxu0 0.0
    %4097 = vmatpush1.xpose.msra.mxu0 0.0
    %4098 = vmatprep.subr.mxu0 0.0
    %4099 = vmatpush1.xpose.msra.mxu0 0.0
    %4100 = vmatprep.subr.mxu0 0.0
    %4101 = vmatpush1.xpose.msra.mxu0 0.0
    %4102 = vmatprep.subr.mxu0 0.0
    %4103 = vmatpush1.xpose.msra.mxu0 0.0
    %4104 = vmatprep.subr.mxu0 0.0
    %4105 = vmatpush1.xpose.msra.mxu0 0.0
    %4106 = vmatprep.subr.mxu0 0.0
    %4107 = vmatpush1.xpose.msra.mxu0 0.0
    %4108 = vmatprep.subr.mxu0 0.0
    %4109 = vmatpush1.xpose.msra.mxu0 0.0
    %4110 = vmatprep.subr.mxu0 0.0
    %4111 = vmatpush1.xpose.msra.mxu0 0.0
    %4112 = vmatprep.subr.mxu0 0.0
    %4113 = vmatpush1.xpose.msra.mxu0 0.0
    %4114 = vmatprep.subr.mxu0 0.0
    %4115 = vmatpush1.xpose.msra.mxu0 0.0
    %4116 = vmatprep.subr.mxu0 0.0
    %4117 = vmatpush1.xpose.msra.mxu0 0.0
    %4118 = vmatprep.subr.mxu0 0.0
    %4119 = vmatpush1.xpose.msra.mxu0 0.0
    %4120 = vmatprep.subr.mxu0 0.0
    %4121 = vmatpush1.xpose.msra.mxu0 0.0
    %4122 = vmatprep.subr.mxu0 0.0
    %4123 = vmatpush1.xpose.msra.mxu0 0.0
    %4124 = vmatprep.subr.mxu0 0.0
    %4125 = vmatpush1.xpose.msra.mxu0 0.0
    %4126 = vmatprep.subr.mxu0 0.0
    %4127 = vmatpush1.xpose.msra.mxu0 0.0
    %4128 = vmatprep.subr.mxu0 0.0
    %4129 = vmatpush1.xpose.msra.mxu0 0.0
    %4130 = vmatprep.subr.mxu0 0.0
    %4131 = vmatpush1.xpose.msra.mxu0 0.0
    %4132 = vmatprep.subr.mxu0 0.0
    %4133 = vmatpush1.xpose.msra.mxu0 0.0
    %4134 = vmatprep.subr.mxu0 0.0
    %4135 = vmatpush1.xpose.msra.mxu0 0.0
    %4136 = vmatprep.subr.mxu0 0.0
    %4137 = vmatpush1.xpose.msra.mxu0 0.0
    %4138 = vmatprep.subr.mxu0 0.0
    %4139 = vmatpush1.xpose.msra.mxu0 0.0
    %4140 = vmatprep.subr.mxu0 0.0
    %4141 = vmatpush1.xpose.msra.mxu0 0.0
    %4142 = vmatprep.subr.mxu0 0.0
    %4143 = vmatpush1.xpose.msra.mxu0 0.0
    %4144 = vmatprep.subr.mxu0 0.0
    %4145 = vmatpush1.xpose.msra.mxu0 0.0
    %4146 = vmatprep.subr.mxu0 0.0
    %4147 = vmatpush1.xpose.msra.mxu0 0.0
    %4148 = vmatprep.subr.mxu0 0.0
    %4149 = vmatpush1.xpose.msra.mxu0 0.0
    %4150 = vmatprep.subr.mxu0 0.0
    %4151 = vmatpush1.xpose.msra.mxu0 0.0
    %4152 = vmatprep.subr.mxu0 0.0
    %4153 = vmatpush1.xpose.msra.mxu0 0.0
    %4154 = vmatprep.mubr.f32.mxu0 0.0
    %4155 = vmatmul.mubr.f32.gmra.mrb[0].mxu0 %v4085
    %v4156 = vpop.f32.mrb[0].mxu0
    %v4157 = vadd.f32 %v4083, %v4156
    %v4158 = vpop.f32.mrb[0].mxu0
    %4159 = vdwg.mxu0
    %v4160 = vsel %vm541, %v4157, -inf
    %4161 = vmax.xlane.f32.xlu0 %v4160
    %v4162 = vpop.xlane.xlu0 %4161
    %v4163 = vsub.f32 %v4157, %v4162
    %v4164 = vmul.f32 %v4163, 1.442695
    %v4165 = vpow.pop %v4164
    %v4166 = vsel %vm541, %v4165, 0.0
    %4167 = vadd.xlane.f32.xlu0 %v4166
    %v4168 = vpop.xlane.xlu0 %4167
    %v4169 = vrcp.pop %v4168
    %v4170 = vmul.f32 %v4165, %v4169
    %v4172 = vsel %vm541, %v4170, 0
    %4174 = vmatprep.subr.mxu0 0.0
    %4175 = vmatpush1.msra.mxu0 %v4077
    %4176 = vmatprep.subr.mxu0 0.0
    %4177 = vmatpush1.msra.mxu0 0.0
    %4178 = vmatprep.subr.mxu0 0.0
    %4179 = vmatpush1.msra.mxu0 0.0
    %4180 = vmatprep.subr.mxu0 0.0
    %4181 = vmatpush1.msra.mxu0 0.0
    %4182 = vmatprep.subr.mxu0 0.0
    %4183 = vmatpush1.msra.mxu0 0.0
    %4184 = vmatprep.subr.mxu0 0.0
    %4185 = vmatpush1.msra.mxu0 0.0
    %4186 = vmatprep.subr.mxu0 0.0
    %4187 = vmatpush1.msra.mxu0 0.0
    %4188 = vmatprep.subr.mxu0 0.0
    %4189 = vmatpush1.msra.mxu0 0.0
    %4190 = vmatprep.subr.mxu0 0.0
    %4191 = vmatpush1.msra.mxu0 0.0
    %4192 = vmatprep.subr.mxu0 0.0
    %4193 = vmatpush1.msra.mxu0 0.0
    %4194 = vmatprep.subr.mxu0 0.0
    %4195 = vmatpush1.msra.mxu0 0.0
    %4196 = vmatprep.subr.mxu0 0.0
    %4197 = vmatpush1.msra.mxu0 0.0
    %4198 = vmatprep.subr.mxu0 0.0
    %4199 = vmatpush1.msra.mxu0 0.0
    %4200 = vmatprep.subr.mxu0 0.0
    %4201 = vmatpush1.msra.mxu0 0.0
    %4202 = vmatprep.subr.mxu0 0.0
    %4203 = vmatpush1.msra.mxu0 0.0
    %4204 = vmatprep.subr.mxu0 0.0
    %4205 = vmatpush1.msra.mxu0 0.0
    %4206 = vmatprep.subr.mxu0 0.0
    %4207 = vmatpush1.msra.mxu0 0.0
    %4208 = vmatprep.subr.mxu0 0.0
    %4209 = vmatpush1.msra.mxu0 0.0
    %4210 = vmatprep.subr.mxu0 0.0
    %4211 = vmatpush1.msra.mxu0 0.0
    %4212 = vmatprep.subr.mxu0 0.0
    %4213 = vmatpush1.msra.mxu0 0.0
    %4214 = vmatprep.subr.mxu0 0.0
    %4215 = vmatpush1.msra.mxu0 0.0
    %4216 = vmatprep.subr.mxu0 0.0
    %4217 = vmatpush1.msra.mxu0 0.0
    %4218 = vmatprep.subr.mxu0 0.0
    %4219 = vmatpush1.msra.mxu0 0.0
    %4220 = vmatprep.subr.mxu0 0.0
    %4221 = vmatpush1.msra.mxu0 0.0
    %4222 = vmatprep.subr.mxu0 0.0
    %4223 = vmatpush1.msra.mxu0 0.0
    %4224 = vmatprep.subr.mxu0 0.0
    %4225 = vmatpush1.msra.mxu0 0.0
    %4226 = vmatprep.subr.mxu0 0.0
    %4227 = vmatpush1.msra.mxu0 0.0
    %4228 = vmatprep.subr.mxu0 0.0
    %4229 = vmatpush1.msra.mxu0 0.0
    %4230 = vmatprep.subr.mxu0 0.0
    %4231 = vmatpush1.msra.mxu0 0.0
    %4232 = vmatprep.subr.mxu0 0.0
    %4233 = vmatpush1.msra.mxu0 0.0
    %4234 = vmatprep.subr.mxu0 0.0
    %4235 = vmatpush1.msra.mxu0 0.0
    %4236 = vmatprep.subr.mxu0 0.0
    %4237 = vmatpush1.msra.mxu0 0.0
    %4238 = vmatprep.mubr.f32.mxu0 0.0
    %4239 = vmatmul.mubr.f32.gmra.mrb[0].mxu0 %v4172
    %v4240 = vpop.f32.mrb[0].mxu0
    %v4241 = vadd.f32 0.0, %v4240
    %v4242 = vpop.f32.mrb[0].mxu0
    %4243 = vdwg.mxu0
    %v4245 = vsel %vm541, %v4241, 0
    %4247 = vmatprep.subr.mxu0 0.0
    %4248 = vmatpush1.msra.mxu0 %v289
    %4249 = vmatprep.subr.mxu0 0.0
    %4250 = vmatpush1.msra.mxu0 0.0
    %4251 = vmatprep.subr.mxu0 0.0
    %4252 = vmatpush1.msra.mxu0 0.0
    %4253 = vmatprep.subr.mxu0 0.0
    %4254 = vmatpush1.msra.mxu0 0.0
    %4255 = vmatprep.subr.mxu0 0.0
    %4256 = vmatpush1.msra.mxu0 0.0
    %4257 = vmatprep.subr.mxu0 0.0
    %4258 = vmatpush1.msra.mxu0 0.0
    %4259 = vmatprep.subr.mxu0 0.0
    %4260 = vmatpush1.msra.mxu0 0.0
    %4261 = vmatprep.subr.mxu0 0.0
    %4262 = vmatpush1.msra.mxu0 0.0
    %4263 = vmatprep.subr.mxu0 0.0
    %4264 = vmatpush1.msra.mxu0 0.0
    %4265 = vmatprep.subr.mxu0 0.0
    %4266 = vmatpush1.msra.mxu0 0.0
    %4267 = vmatprep.subr.mxu0 0.0
    %4268 = vmatpush1.msra.mxu0 0.0
    %4269 = vmatprep.subr.mxu0 0.0
    %4270 = vmatpush1.msra.mxu0 0.0
    %4271 = vmatprep.subr.mxu0 0.0
    %4272 = vmatpush1.msra.mxu0 0.0
    %4273 = vmatprep.subr.mxu0 0.0
    %4274 = vmatpush1.msra.mxu0 0.0
    %4275 = vmatprep.subr.mxu0 0.0
    %4276 = vmatpush1.msra.mxu0 0.0
    %4277 = vmatprep.subr.mxu0 0.0
    %4278 = vmatpush1.msra.mxu0 0.0
    %4279 = vmatprep.subr.mxu0 0.0
    %4280 = vmatpush1.msra.mxu0 0.0
    %4281 = vmatprep.subr.mxu0 0.0
    %4282 = vmatpush1.msra.mxu0 0.0
    %4283 = vmatprep.subr.mxu0 0.0
    %4284 = vmatpush1.msra.mxu0 0.0
    %4285 = vmatprep.subr.mxu0 0.0
    %4286 = vmatpush1.msra.mxu0 0.0
    %4287 = vmatprep.subr.mxu0 0.0
    %4288 = vmatpush1.msra.mxu0 0.0
    %4289 = vmatprep.subr.mxu0 0.0
    %4290 = vmatpush1.msra.mxu0 0.0
    %4291 = vmatprep.subr.mxu0 0.0
    %4292 = vmatpush1.msra.mxu0 0.0
    %4293 = vmatprep.subr.mxu0 0.0
    %4294 = vmatpush1.msra.mxu0 0.0
    %4295 = vmatprep.subr.mxu0 0.0
    %4296 = vmatpush1.msra.mxu0 0.0
    %4297 = vmatprep.subr.mxu0 0.0
    %4298 = vmatpush1.msra.mxu0 0.0
    %4299 = vmatprep.subr.mxu0 0.0
    %4300 = vmatpush1.msra.mxu0 0.0
    %4301 = vmatprep.subr.mxu0 0.0
    %4302 = vmatpush1.msra.mxu0 0.0
    %4303 = vmatprep.subr.mxu0 0.0
    %4304 = vmatpush1.msra.mxu0 0.0
    %4305 = vmatprep.subr.mxu0 0.0
    %4306 = vmatpush1.msra.mxu0 0.0
    %4307 = vmatprep.subr.mxu0 0.0
    %4308 = vmatpush1.msra.mxu0 0.0
    %4309 = vmatprep.subr.mxu0 0.0
    %4310 = vmatpush1.msra.mxu0 0.0
    %4311 = vmatprep.mubr.f32.mxu0 0.0
    %4312 = vmatmul.mubr.f32.gmra.mrb[0].mxu0 %v4245
    %v4313 = vpop.f32.mrb[0].mxu0
    %v4314 = vadd.f32 0.0, %v4313
    %v4315 = vpop.f32.mrb[0].mxu0
    %4316 = vdwg.mxu0
    %v4317 = vadd.f32 %v1730, %v4314
    %4318 = vrot.lane.b32.xlu0 %v3939, 120
    %v4319 = vpop.permute.xlu0 %4318
    %4320 = vrot.lane.b32.xlu0 %v4007, 120
    %v4321 = vpop.permute.xlu0 %4320
    %v4322 = vsel %vm541, %v4319, 0
    %v4324 = vsel %vm541, %v4321, 0
    %4326 = vmatprep.subr.mxu0 0.0
    %4327 = vmatpush1.xpose.msra.mxu0 %v4324
    %4328 = vmatprep.subr.mxu0 0.0
    %4329 = vmatpush1.xpose.msra.mxu0 0.0
    %4330 = vmatprep.subr.mxu0 0.0
    %4331 = vmatpush1.xpose.msra.mxu0 0.0
    %4332 = vmatprep.subr.mxu0 0.0
    %4333 = vmatpush1.xpose.msra.mxu0 0.0
    %4334 = vmatprep.subr.mxu0 0.0
    %4335 = vmatpush1.xpose.msra.mxu0 0.0
    %4336 = vmatprep.subr.mxu0 0.0
    %4337 = vmatpush1.xpose.msra.mxu0 0.0
    %4338 = vmatprep.subr.mxu0 0.0
    %4339 = vmatpush1.xpose.msra.mxu0 0.0
    %4340 = vmatprep.subr.mxu0 0.0
    %4341 = vmatpush1.xpose.msra.mxu0 0.0
    %4342 = vmatprep.subr.mxu0 0.0
    %4343 = vmatpush1.xpose.msra.mxu0 0.0
    %4344 = vmatprep.subr.mxu0 0.0
    %4345 = vmatpush1.xpose.msra.mxu0 0.0
    %4346 = vmatprep.subr.mxu0 0.0
    %4347 = vmatpush1.xpose.msra.mxu0 0.0
    %4348 = vmatprep.subr.mxu0 0.0
    %4349 = vmatpush1.xpose.msra.mxu0 0.0
    %4350 = vmatprep.subr.mxu0 0.0
    %4351 = vmatpush1.xpose.msra.mxu0 0.0
    %4352 = vmatprep.subr.mxu0 0.0
    %4353 = vmatpush1.xpose.msra.mxu0 0.0
    %4354 = vmatprep.subr.mxu0 0.0
    %4355 = vmatpush1.xpose.msra.mxu0 0.0
    %4356 = vmatprep.subr.mxu0 0.0
    %4357 = vmatpush1.xpose.msra.mxu0 0.0
    %4358 = vmatprep.subr.mxu0 0.0
    %4359 = vmatpush1.xpose.msra.mxu0 0.0
    %4360 = vmatprep.subr.mxu0 0.0
    %4361 = vmatpush1.xpose.msra.mxu0 0.0
    %4362 = vmatprep.subr.mxu0 0.0
    %4363 = vmatpush1.xpose.msra.mxu0 0.0
    %4364 = vmatprep.subr.mxu0 0.0
    %4365 = vmatpush1.xpose.msra.mxu0 0.0
    %4366 = vmatprep.subr.mxu0 0.0
    %4367 = vmatpush1.xpose.msra.mxu0 0.0
    %4368 = vmatprep.subr.mxu0 0.0
    %4369 = vmatpush1.xpose.msra.mxu0 0.0
    %4370 = vmatprep.subr.mxu0 0.0
    %4371 = vmatpush1.xpose.msra.mxu0 0.0
    %4372 = vmatprep.subr.mxu0 0.0
    %4373 = vmatpush1.xpose.msra.mxu0 0.0
    %4374 = vmatprep.subr.mxu0 0.0
    %4375 = vmatpush1.xpose.msra.mxu0 0.0
    %4376 = vmatprep.subr.mxu0 0.0
    %4377 = vmatpush1.xpose.msra.mxu0 0.0
    %4378 = vmatprep.subr.mxu0 0.0
    %4379 = vmatpush1.xpose.msra.mxu0 0.0
    %4380 = vmatprep.subr.mxu0 0.0
    %4381 = vmatpush1.xpose.msra.mxu0 0.0
    %4382 = vmatprep.subr.mxu0 0.0
    %4383 = vmatpush1.xpose.msra.mxu0 0.0
    %4384 = vmatprep.subr.mxu0 0.0
    %4385 = vmatpush1.xpose.msra.mxu0 0.0
    %4386 = vmatprep.subr.mxu0 0.0
    %4387 = vmatpush1.xpose.msra.mxu0 0.0
    %4388 = vmatprep.subr.mxu0 0.0
    %4389 = vmatpush1.xpose.msra.mxu0 0.0
    %4390 = vmatprep.mubr.f32.mxu0 0.0
    %4391 = vmatmul.mubr.f32.gmra.mrb[0].mxu0 %v4322
    %v4392 = vpop.f32.mrb[0].mxu0
    %v4393 = vadd.f32 %v4083, %v4392
    %v4394 = vpop.f32.mrb[0].mxu0
    %4395 = vdwg.mxu0
    %v4396 = vsel %vm541, %v4393, -inf
    %4397 = vmax.xlane.f32.xlu0 %v4396
    %v4398 = vpop.xlane.xlu0 %4397
    %v4399 = vsub.f32 %v4393, %v4398
    %v4400 = vmul.f32 %v4399, 1.442695
    %v4401 = vpow.pop %v4400
    %v4402 = vsel %vm541, %v4401, 0.0
    %4403 = vadd.xlane.f32.xlu0 %v4402
    %v4404 = vpop.xlane.xlu0 %4403
    %v4405 = vrcp.pop %v4404
    %v4406 = vmul.f32 %v4401, %v4405
    %4408 = vrot.lane.b32.xlu0 %v4077, 120
    %v4409 = vpop.permute.xlu0 %4408
    %v4412 = vsel %vm541, %v4406, 0
    %4414 = vmatprep.subr.mxu0 0.0
    %4415 = vmatpush1.msra.mxu0 %v4409
    %4416 = vmatprep.subr.mxu0 0.0
    %4417 = vmatpush1.msra.mxu0 0.0
    %4418 = vmatprep.subr.mxu0 0.0
    %4419 = vmatpush1.msra.mxu0 0.0
    %4420 = vmatprep.subr.mxu0 0.0
    %4421 = vmatpush1.msra.mxu0 0.0
    %4422 = vmatprep.subr.mxu0 0.0
    %4423 = vmatpush1.msra.mxu0 0.0
    %4424 = vmatprep.subr.mxu0 0.0
    %4425 = vmatpush1.msra.mxu0 0.0
    %4426 = vmatprep.subr.mxu0 0.0
    %4427 = vmatpush1.msra.mxu0 0.0
    %4428 = vmatprep.subr.mxu0 0.0
    %4429 = vmatpush1.msra.mxu0 0.0
    %4430 = vmatprep.subr.mxu0 0.0
    %4431 = vmatpush1.msra.mxu0 0.0
    %4432 = vmatprep.subr.mxu0 0.0
    %4433 = vmatpush1.msra.mxu0 0.0
    %4434 = vmatprep.subr.mxu0 0.0
    %4435 = vmatpush1.msra.mxu0 0.0
    %4436 = vmatprep.subr.mxu0 0.0
    %4437 = vmatpush1.msra.mxu0 0.0
    %4438 = vmatprep.subr.mxu0 0.0
    %4439 = vmatpush1.msra.mxu0 0.0
    %4440 = vmatprep.subr.mxu0 0.0
    %4441 = vmatpush1.msra.mxu0 0.0
    %4442 = vmatprep.subr.mxu0 0.0
    %4443 = vmatpush1.msra.mxu0 0.0
    %4444 = vmatprep.subr.mxu0 0.0
    %4445 = vmatpush1.msra.mxu0 0.0
    %4446 = vmatprep.subr.mxu0 0.0
    %4447 = vmatpush1.msra.mxu0 0.0
    %4448 = vmatprep.subr.mxu0 0.0
    %4449 = vmatpush1.msra.mxu0 0.0
    %4450 = vmatprep.subr.mxu0 0.0
    %4451 = vmatpush1.msra.mxu0 0.0
    %4452 = vmatprep.subr.mxu0 0.0
    %4453 = vmatpush1.msra.mxu0 0.0
    %4454 = vmatprep.subr.mxu0 0.0
    %4455 = vmatpush1.msra.mxu0 0.0
    %4456 = vmatprep.subr.mxu0 0.0
    %4457 = vmatpush1.msra.mxu0 0.0
    %4458 = vmatprep.subr.mxu0 0.0
    %4459 = vmatpush1.msra.mxu0 0.0
    %4460 = vmatprep.subr.mxu0 0.0
    %4461 = vmatpush1.msra.mxu0 0.0
    %4462 = vmatprep.subr.mxu0 0.0
    %4463 = vmatpush1.msra.mxu0 0.0
    %4464 = vmatprep.subr.mxu0 0.0
    %4465 = vmatpush1.msra.mxu0 0.0
    %4466 = vmatprep.subr.mxu0 0.0
    %4467 = vmatpush1.msra.mxu0 0.0
    %4468 = vmatprep.subr.mxu0 0.0
    %4469 = vmatpush1.msra.mxu0 0.0
    %4470 = vmatprep.subr.mxu0 0.0
    %4471 = vmatpush1.msra.mxu0 0.0
    %4472 = vmatprep.subr.mxu0 0.0
    %4473 = vmatpush1.msra.mxu0 0.0
    %4474 = vmatprep.subr.mxu0 0.0
    %4475 = vmatpush1.msra.mxu0 0.0
    %4476 = vmatprep.subr.mxu0 0.0
    %4477 = vmatpush1.msra.mxu0 0.0
    %4478 = vmatprep.mubr.f32.mxu0 0.0
    %4479 = vmatmul.mubr.f32.gmra.mrb[0].mxu0 %v4412
    %v4480 = vpop.f32.mrb[0].mxu0
    %v4481 = vadd.f32 0.0, %v4480
    %v4482 = vpop.f32.mrb[0].mxu0
    %4483 = vdwg.mxu0
    %v4485 = vsel %vm541, %v4481, 0
    %4487 = vmatprep.subr.mxu0 0.0
    %4488 = vmatpush1.msra.mxu0 %v290
    %4489 = vmatprep.subr.mxu0 0.0
    %4490 = vmatpush1.msra.mxu0 0.0
    %4491 = vmatprep.subr.mxu0 0.0
    %4492 = vmatpush1.msra.mxu0 0.0
    %4493 = vmatprep.subr.mxu0 0.0
    %4494 = vmatpush1.msra.mxu0 0.0
    %4495 = vmatprep.subr.mxu0 0.0
    %4496 = vmatpush1.msra.mxu0 0.0
    %4497 = vmatprep.subr.mxu0 0.0
    %4498 = vmatpush1.msra.mxu0 0.0
    %4499 = vmatprep.subr.mxu0 0.0
    %4500 = vmatpush1.msra.mxu0 0.0
    %4501 = vmatprep.subr.mxu0 0.0
    %4502 = vmatpush1.msra.mxu0 0.0
    %4503 = vmatprep.subr.mxu0 0.0
    %4504 = vmatpush1.msra.mxu0 0.0
    %4505 = vmatprep.subr.mxu0 0.0
    %4506 = vmatpush1.msra.mxu0 0.0
    %4507 = vmatprep.subr.mxu0 0.0
    %4508 = vmatpush1.msra.mxu0 0.0
    %4509 = vmatprep.subr.mxu0 0.0
    %4510 = vmatpush1.msra.mxu0 0.0
    %4511 = vmatprep.subr.mxu0 0.0
    %4512 = vmatpush1.msra.mxu0 0.0
    %4513 = vmatprep.subr.mxu0 0.0
    %4514 = vmatpush1.msra.mxu0 0.0
    %4515 = vmatprep.subr.mxu0 0.0
    %4516 = vmatpush1.msra.mxu0 0.0
    %4517 = vmatprep.subr.mxu0 0.0
    %4518 = vmatpush1.msra.mxu0 0.0
    %4519 = vmatprep.subr.mxu0 0.0
    %4520 = vmatpush1.msra.mxu0 0.0
    %4521 = vmatprep.subr.mxu0 0.0
    %4522 = vmatpush1.msra.mxu0 0.0
    %4523 = vmatprep.subr.mxu0 0.0
    %4524 = vmatpush1.msra.mxu0 0.0
    %4525 = vmatprep.subr.mxu0 0.0
    %4526 = vmatpush1.msra.mxu0 0.0
    %4527 = vmatprep.subr.mxu0 0.0
    %4528 = vmatpush1.msra.mxu0 0.0
    %4529 = vmatprep.subr.mxu0 0.0
    %4530 = vmatpush1.msra.mxu0 0.0
    %4531 = vmatprep.subr.mxu0 0.0
    %4532 = vmatpush1.msra.mxu0 0.0
    %4533 = vmatprep.subr.mxu0 0.0
    %4534 = vmatpush1.msra.mxu0 0.0
    %4535 = vmatprep.subr.mxu0 0.0
    %4536 = vmatpush1.msra.mxu0 0.0
    %4537 = vmatprep.subr.mxu0 0.0
    %4538 = vmatpush1.msra.mxu0 0.0
    %4539 = vmatprep.subr.mxu0 0.0
    %4540 = vmatpush1.msra.mxu0 0.0
    %4541 = vmatprep.subr.mxu0 0.0
    %4542 = vmatpush1.msra.mxu0 0.0
    %4543 = vmatprep.subr.mxu0 0.0
    %4544 = vmatpush1.msra.mxu0 0.0
    %4545 = vmatprep.subr.mxu0 0.0
    %4546 = vmatpush1.msra.mxu0 0.0
    %4547 = vmatprep.subr.mxu0 0.0
    %4548 = vmatpush1.msra.mxu0 0.0
    %4549 = vmatprep.subr.mxu0 0.0
    %4550 = vmatpush1.msra.mxu0 0.0
    %4551 = vmatprep.mubr.f32.mxu0 0.0
    %4552 = vmatmul.mubr.f32.gmra.mrb[0].mxu0 %v4485
    %v4553 = vpop.f32.mrb[0].mxu0
    %v4554 = vadd.f32 0.0, %v4553
    %v4555 = vpop.f32.mrb[0].mxu0
    %4556 = vdwg.mxu0
    %v4557 = vadd.f32 %v4317, %v4554
    %4558 = vrot.lane.b32.xlu0 %v3939, 112
    %v4559 = vpop.permute.xlu0 %4558
    %4560 = vrot.lane.b32.xlu0 %v4007, 112
    %v4561 = vpop.permute.xlu0 %4560
    %v4562 = vsel %vm541, %v4559, 0
    %v4564 = vsel %vm541, %v4561, 0
    %4566 = vmatprep.subr.mxu0 0.0
    %4567 = vmatpush1.xpose.msra.mxu0 %v4564
    %4568 = vmatprep.subr.mxu0 0.0
    %4569 = vmatpush1.xpose.msra.mxu0 0.0
    %4570 = vmatprep.subr.mxu0 0.0
    %4571 = vmatpush1.xpose.msra.mxu0 0.0
    %4572 = vmatprep.subr.mxu0 0.0
    %4573 = vmatpush1.xpose.msra.mxu0 0.0
    %4574 = vmatprep.subr.mxu0 0.0
    %4575 = vmatpush1.xpose.msra.mxu0 0.0
    %4576 = vmatprep.subr.mxu0 0.0
    %4577 = vmatpush1.xpose.msra.mxu0 0.0
    %4578 = vmatprep.subr.mxu0 0.0
    %4579 = vmatpush1.xpose.msra.mxu0 0.0
    %4580 = vmatprep.subr.mxu0 0.0
    %4581 = vmatpush1.xpose.msra.mxu0 0.0
    %4582 = vmatprep.subr.mxu0 0.0
    %4583 = vmatpush1.xpose.msra.mxu0 0.0
    %4584 = vmatprep.subr.mxu0 0.0
    %4585 = vmatpush1.xpose.msra.mxu0 0.0
    %4586 = vmatprep.subr.mxu0 0.0
    %4587 = vmatpush1.xpose.msra.mxu0 0.0
    %4588 = vmatprep.subr.mxu0 0.0
    %4589 = vmatpush1.xpose.msra.mxu0 0.0
    %4590 = vmatprep.subr.mxu0 0.0
    %4591 = vmatpush1.xpose.msra.mxu0 0.0
    %4592 = vmatprep.subr.mxu0 0.0
    %4593 = vmatpush1.xpose.msra.mxu0 0.0
    %4594 = vmatprep.subr.mxu0 0.0
    %4595 = vmatpush1.xpose.msra.mxu0 0.0
    %4596 = vmatprep.subr.mxu0 0.0
    %4597 = vmatpush1.xpose.msra.mxu0 0.0
    %4598 = vmatprep.subr.mxu0 0.0
    %4599 = vmatpush1.xpose.msra.mxu0 0.0
    %4600 = vmatprep.subr.mxu0 0.0
    %4601 = vmatpush1.xpose.msra.mxu0 0.0
    %4602 = vmatprep.subr.mxu0 0.0
    %4603 = vmatpush1.xpose.msra.mxu0 0.0
    %4604 = vmatprep.subr.mxu0 0.0
    %4605 = vmatpush1.xpose.msra.mxu0 0.0
    %4606 = vmatprep.subr.mxu0 0.0
    %4607 = vmatpush1.xpose.msra.mxu0 0.0
    %4608 = vmatprep.subr.mxu0 0.0
    %4609 = vmatpush1.xpose.msra.mxu0 0.0
    %4610 = vmatprep.subr.mxu0 0.0
    %4611 = vmatpush1.xpose.msra.mxu0 0.0
    %4612 = vmatprep.subr.mxu0 0.0
    %4613 = vmatpush1.xpose.msra.mxu0 0.0
    %4614 = vmatprep.subr.mxu0 0.0
    %4615 = vmatpush1.xpose.msra.mxu0 0.0
    %4616 = vmatprep.subr.mxu0 0.0
    %4617 = vmatpush1.xpose.msra.mxu0 0.0
    %4618 = vmatprep.subr.mxu0 0.0
    %4619 = vmatpush1.xpose.msra.mxu0 0.0
    %4620 = vmatprep.subr.mxu0 0.0
    %4621 = vmatpush1.xpose.msra.mxu0 0.0
    %4622 = vmatprep.subr.mxu0 0.0
    %4623 = vmatpush1.xpose.msra.mxu0 0.0
    %4624 = vmatprep.subr.mxu0 0.0
    %4625 = vmatpush1.xpose.msra.mxu0 0.0
    %4626 = vmatprep.subr.mxu0 0.0
    %4627 = vmatpush1.xpose.msra.mxu0 0.0
    %4628 = vmatprep.subr.mxu0 0.0
    %4629 = vmatpush1.xpose.msra.mxu0 0.0
    %4630 = vmatprep.mubr.f32.mxu0 0.0
    %4631 = vmatmul.mubr.f32.gmra.mrb[0].mxu0 %v4562
    %v4632 = vpop.f32.mrb[0].mxu0
    %v4633 = vadd.f32 %v4083, %v4632
    %v4634 = vpop.f32.mrb[0].mxu0
    %4635 = vdwg.mxu0
    %v4636 = vsel %vm541, %v4633, -inf
    %4637 = vmax.xlane.f32.xlu0 %v4636
    %v4638 = vpop.xlane.xlu0 %4637
    %v4639 = vsub.f32 %v4633, %v4638
    %v4640 = vmul.f32 %v4639, 1.442695
    %v4641 = vpow.pop %v4640
    %v4642 = vsel %vm541, %v4641, 0.0
    %4643 = vadd.xlane.f32.xlu0 %v4642
    %v4644 = vpop.xlane.xlu0 %4643
    %v4645 = vrcp.pop %v4644
    %v4646 = vmul.f32 %v4641, %v4645
    %4647 = vrot.lane.b32.xlu0 %v4077, 112
    %v4648 = vpop.permute.xlu0 %4647
    %v4651 = vsel %vm541, %v4646, 0
    %4653 = vmatprep.subr.mxu0 0.0
    %4654 = vmatpush1.msra.mxu0 %v4648
    %4655 = vmatprep.subr.mxu0 0.0
    %4656 = vmatpush1.msra.mxu0 0.0
    %4657 = vmatprep.subr.mxu0 0.0
    %4658 = vmatpush1.msra.mxu0 0.0
    %4659 = vmatprep.subr.mxu0 0.0
    %4660 = vmatpush1.msra.mxu0 0.0
    %4661 = vmatprep.subr.mxu0 0.0
    %4662 = vmatpush1.msra.mxu0 0.0
    %4663 = vmatprep.subr.mxu0 0.0
    %4664 = vmatpush1.msra.mxu0 0.0
    %4665 = vmatprep.subr.mxu0 0.0
    %4666 = vmatpush1.msra.mxu0 0.0
    %4667 = vmatprep.subr.mxu0 0.0
    %4668 = vmatpush1.msra.mxu0 0.0
    %4669 = vmatprep.subr.mxu0 0.0
    %4670 = vmatpush1.msra.mxu0 0.0
    %4671 = vmatprep.subr.mxu0 0.0
    %4672 = vmatpush1.msra.mxu0 0.0
    %4673 = vmatprep.subr.mxu0 0.0
    %4674 = vmatpush1.msra.mxu0 0.0
    %4675 = vmatprep.subr.mxu0 0.0
    %4676 = vmatpush1.msra.mxu0 0.0
    %4677 = vmatprep.subr.mxu0 0.0
    %4678 = vmatpush1.msra.mxu0 0.0
    %4679 = vmatprep.subr.mxu0 0.0
    %4680 = vmatpush1.msra.mxu0 0.0
    %4681 = vmatprep.subr.mxu0 0.0
    %4682 = vmatpush1.msra.mxu0 0.0
    %4683 = vmatprep.subr.mxu0 0.0
    %4684 = vmatpush1.msra.mxu0 0.0
    %4685 = vmatprep.subr.mxu0 0.0
    %4686 = vmatpush1.msra.mxu0 0.0
    %4687 = vmatprep.subr.mxu0 0.0
    %4688 = vmatpush1.msra.mxu0 0.0
    %4689 = vmatprep.subr.mxu0 0.0
    %4690 = vmatpush1.msra.mxu0 0.0
    %4691 = vmatprep.subr.mxu0 0.0
    %4692 = vmatpush1.msra.mxu0 0.0
    %4693 = vmatprep.subr.mxu0 0.0
    %4694 = vmatpush1.msra.mxu0 0.0
    %4695 = vmatprep.subr.mxu0 0.0
    %4696 = vmatpush1.msra.mxu0 0.0
    %4697 = vmatprep.subr.mxu0 0.0
    %4698 = vmatpush1.msra.mxu0 0.0
    %4699 = vmatprep.subr.mxu0 0.0
    %4700 = vmatpush1.msra.mxu0 0.0
    %4701 = vmatprep.subr.mxu0 0.0
    %4702 = vmatpush1.msra.mxu0 0.0
    %4703 = vmatprep.subr.mxu0 0.0
    %4704 = vmatpush1.msra.mxu0 0.0
    %4705 = vmatprep.subr.mxu0 0.0
    %4706 = vmatpush1.msra.mxu0 0.0
    %4707 = vmatprep.subr.mxu0 0.0
    %4708 = vmatpush1.msra.mxu0 0.0
    %4709 = vmatprep.subr.mxu0 0.0
    %4710 = vmatpush1.msra.mxu0 0.0
    %4711 = vmatprep.subr.mxu0 0.0
    %4712 = vmatpush1.msra.mxu0 0.0
    %4713 = vmatprep.subr.mxu0 0.0
    %4714 = vmatpush1.msra.mxu0 0.0
    %4715 = vmatprep.subr.mxu0 0.0
    %4716 = vmatpush1.msra.mxu0 0.0
    %4717 = vmatprep.mubr.f32.mxu0 0.0
    %4718 = vmatmul.mubr.f32.gmra.mrb[0].mxu0 %v4651
    %v4719 = vpop.f32.mrb[0].mxu0
    %v4720 = vadd.f32 0.0, %v4719
    %v4721 = vpop.f32.mrb[0].mxu0
    %4722 = vdwg.mxu0
    %v4724 = vsel %vm541, %v4720, 0
    %4726 = vmatprep.subr.mxu0 0.0
    %4727 = vmatpush1.msra.mxu0 %v291
    %4728 = vmatprep.subr.mxu0 0.0
    %4729 = vmatpush1.msra.mxu0 0.0
    %4730 = vmatprep.subr.mxu0 0.0
    %4731 = vmatpush1.msra.mxu0 0.0
    %4732 = vmatprep.subr.mxu0 0.0
    %4733 = vmatpush1.msra.mxu0 0.0
    %4734 = vmatprep.subr.mxu0 0.0
    %4735 = vmatpush1.msra.mxu0 0.0
    %4736 = vmatprep.subr.mxu0 0.0
    %4737 = vmatpush1.msra.mxu0 0.0
    %4738 = vmatprep.subr.mxu0 0.0
    %4739 = vmatpush1.msra.mxu0 0.0
    %4740 = vmatprep.subr.mxu0 0.0
    %4741 = vmatpush1.msra.mxu0 0.0
    %4742 = vmatprep.subr.mxu0 0.0
    %4743 = vmatpush1.msra.mxu0 0.0
    %4744 = vmatprep.subr.mxu0 0.0
    %4745 = vmatpush1.msra.mxu0 0.0
    %4746 = vmatprep.subr.mxu0 0.0
    %4747 = vmatpush1.msra.mxu0 0.0
    %4748 = vmatprep.subr.mxu0 0.0
    %4749 = vmatpush1.msra.mxu0 0.0
    %4750 = vmatprep.subr.mxu0 0.0
    %4751 = vmatpush1.msra.mxu0 0.0
    %4752 = vmatprep.subr.mxu0 0.0
    %4753 = vmatpush1.msra.mxu0 0.0
    %4754 = vmatprep.subr.mxu0 0.0
    %4755 = vmatpush1.msra.mxu0 0.0
    %4756 = vmatprep.subr.mxu0 0.0
    %4757 = vmatpush1.msra.mxu0 0.0
    %4758 = vmatprep.subr.mxu0 0.0
    %4759 = vmatpush1.msra.mxu0 0.0
    %4760 = vmatprep.subr.mxu0 0.0
    %4761 = vmatpush1.msra.mxu0 0.0
    %4762 = vmatprep.subr.mxu0 0.0
    %4763 = vmatpush1.msra.mxu0 0.0
    %4764 = vmatprep.subr.mxu0 0.0
    %4765 = vmatpush1.msra.mxu0 0.0
    %4766 = vmatprep.subr.mxu0 0.0
    %4767 = vmatpush1.msra.mxu0 0.0
    %4768 = vmatprep.subr.mxu0 0.0
    %4769 = vmatpush1.msra.mxu0 0.0
    %4770 = vmatprep.subr.mxu0 0.0
    %4771 = vmatpush1.msra.mxu0 0.0
    %4772 = vmatprep.subr.mxu0 0.0
    %4773 = vmatpush1.msra.mxu0 0.0
    %4774 = vmatprep.subr.mxu0 0.0
    %4775 = vmatpush1.msra.mxu0 0.0
    %4776 = vmatprep.subr.mxu0 0.0
    %4777 = vmatpush1.msra.mxu0 0.0
    %4778 = vmatprep.subr.mxu0 0.0
    %4779 = vmatpush1.msra.mxu0 0.0
    %4780 = vmatprep.subr.mxu0 0.0
    %4781 = vmatpush1.msra.mxu0 0.0
    %4782 = vmatprep.subr.mxu0 0.0
    %4783 = vmatpush1.msra.mxu0 0.0
    %4784 = vmatprep.subr.mxu0 0.0
    %4785 = vmatpush1.msra.mxu0 0.0
    %4786 = vmatprep.subr.mxu0 0.0
    %4787 = vmatpush1.msra.mxu0 0.0
    %4788 = vmatprep.subr.mxu0 0.0
    %4789 = vmatpush1.msra.mxu0 0.0
    %4790 = vmatprep.mubr.f32.mxu0 0.0
    %4791 = vmatmul.mubr.f32.gmra.mrb[0].mxu0 %v4724
    %v4792 = vpop.f32.mrb[0].mxu0
    %v4793 = vadd.f32 0.0, %v4792
    %v4794 = vpop.f32.mrb[0].mxu0
    %4795 = vdwg.mxu0
    %v4796 = vadd.f32 %v4557, %v4793
    %4797 = vrot.lane.b32.xlu0 %v3939, 104
    %v4798 = vpop.permute.xlu0 %4797
    %4799 = vrot.lane.b32.xlu0 %v4007, 104
    %v4800 = vpop.permute.xlu0 %4799
    %v4801 = vsel %vm541, %v4798, 0
    %v4803 = vsel %vm541, %v4800, 0
    %4805 = vmatprep.subr.mxu0 0.0
    %4806 = vmatpush1.xpose.msra.mxu0 %v4803
    %4807 = vmatprep.subr.mxu0 0.0
    %4808 = vmatpush1.xpose.msra.mxu0 0.0
    %4809 = vmatprep.subr.mxu0 0.0
    %4810 = vmatpush1.xpose.msra.mxu0 0.0
    %4811 = vmatprep.subr.mxu0 0.0
    %4812 = vmatpush1.xpose.msra.mxu0 0.0
    %4813 = vmatprep.subr.mxu0 0.0
    %4814 = vmatpush1.xpose.msra.mxu0 0.0
    %4815 = vmatprep.subr.mxu0 0.0
    %4816 = vmatpush1.xpose.msra.mxu0 0.0
    %4817 = vmatprep.subr.mxu0 0.0
    %4818 = vmatpush1.xpose.msra.mxu0 0.0
    %4819 = vmatprep.subr.mxu0 0.0
    %4820 = vmatpush1.xpose.msra.mxu0 0.0
    %4821 = vmatprep.subr.mxu0 0.0
    %4822 = vmatpush1.xpose.msra.mxu0 0.0
    %4823 = vmatprep.subr.mxu0 0.0
    %4824 = vmatpush1.xpose.msra.mxu0 0.0
    %4825 = vmatprep.subr.mxu0 0.0
    %4826 = vmatpush1.xpose.msra.mxu0 0.0
    %4827 = vmatprep.subr.mxu0 0.0
    %4828 = vmatpush1.xpose.msra.mxu0 0.0
    %4829 = vmatprep.subr.mxu0 0.0
    %4830 = vmatpush1.xpose.msra.mxu0 0.0
    %4831 = vmatprep.subr.mxu0 0.0
    %4832 = vmatpush1.xpose.msra.mxu0 0.0
    %4833 = vmatprep.subr.mxu0 0.0
    %4834 = vmatpush1.xpose.msra.mxu0 0.0
    %4835 = vmatprep.subr.mxu0 0.0
    %4836 = vmatpush1.xpose.msra.mxu0 0.0
    %4837 = vmatprep.subr.mxu0 0.0
    %4838 = vmatpush1.xpose.msra.mxu0 0.0
    %4839 = vmatprep.subr.mxu0 0.0
    %4840 = vmatpush1.xpose.msra.mxu0 0.0
    %4841 = vmatprep.subr.mxu0 0.0
    %4842 = vmatpush1.xpose.msra.mxu0 0.0
    %4843 = vmatprep.subr.mxu0 0.0
    %4844 = vmatpush1.xpose.msra.mxu0 0.0
    %4845 = vmatprep.subr.mxu0 0.0
    %4846 = vmatpush1.xpose.msra.mxu0 0.0
    %4847 = vmatprep.subr.mxu0 0.0
    %4848 = vmatpush1.xpose.msra.mxu0 0.0
    %4849 = vmatprep.subr.mxu0 0.0
    %4850 = vmatpush1.xpose.msra.mxu0 0.0
    %4851 = vmatprep.subr.mxu0 0.0
    %4852 = vmatpush1.xpose.msra.mxu0 0.0
    %4853 = vmatprep.subr.mxu0 0.0
    %4854 = vmatpush1.xpose.msra.mxu0 0.0
    %4855 = vmatprep.subr.mxu0 0.0
    %4856 = vmatpush1.xpose.msra.mxu0 0.0
    %4857 = vmatprep.subr.mxu0 0.0
    %4858 = vmatpush1.xpose.msra.mxu0 0.0
    %4859 = vmatprep.subr.mxu0 0.0
    %4860 = vmatpush1.xpose.msra.mxu0 0.0
    %4861 = vmatprep.subr.mxu0 0.0
    %4862 = vmatpush1.xpose.msra.mxu0 0.0
    %4863 = vmatprep.subr.mxu0 0.0
    %4864 = vmatpush1.xpose.msra.mxu0 0.0
    %4865 = vmatprep.subr.mxu0 0.0
    %4866 = vmatpush1.xpose.msra.mxu0 0.0
    %4867 = vmatprep.subr.mxu0 0.0
    %4868 = vmatpush1.xpose.msra.mxu0 0.0
    %4869 = vmatprep.mubr.f32.mxu0 0.0
    %4870 = vmatmul.mubr.f32.gmra.mrb[0].mxu0 %v4801
    %v4871 = vpop.f32.mrb[0].mxu0
    %v4872 = vadd.f32 %v4083, %v4871
    %v4873 = vpop.f32.mrb[0].mxu0
    %4874 = vdwg.mxu0
    %v4875 = vsel %vm541, %v4872, -inf
    %4876 = vmax.xlane.f32.xlu0 %v4875
    %v4877 = vpop.xlane.xlu0 %4876
    %v4878 = vsub.f32 %v4872, %v4877
    %v4879 = vmul.f32 %v4878, 1.442695
    %v4880 = vpow.pop %v4879
    %v4881 = vsel %vm541, %v4880, 0.0
    %4882 = vadd.xlane.f32.xlu0 %v4881
    %v4883 = vpop.xlane.xlu0 %4882
    %v4884 = vrcp.pop %v4883
    %v4885 = vmul.f32 %v4880, %v4884
    %4886 = vrot.lane.b32.xlu0 %v4077, 104
    %v4887 = vpop.permute.xlu0 %4886
    %v4890 = vsel %vm541, %v4885, 0
    %4892 = vmatprep.subr.mxu0 0.0
    %4893 = vmatpush1.msra.mxu0 %v4887
    %4894 = vmatprep.subr.mxu0 0.0
    %4895 = vmatpush1.msra.mxu0 0.0
    %4896 = vmatprep.subr.mxu0 0.0
    %4897 = vmatpush1.msra.mxu0 0.0
    %4898 = vmatprep.subr.mxu0 0.0
    %4899 = vmatpush1.msra.mxu0 0.0
    %4900 = vmatprep.subr.mxu0 0.0
    %4901 = vmatpush1.msra.mxu0 0.0
    %4902 = vmatprep.subr.mxu0 0.0
    %4903 = vmatpush1.msra.mxu0 0.0
    %4904 = vmatprep.subr.mxu0 0.0
    %4905 = vmatpush1.msra.mxu0 0.0
    %4906 = vmatprep.subr.mxu0 0.0
    %4907 = vmatpush1.msra.mxu0 0.0
    %4908 = vmatprep.subr.mxu0 0.0
    %4909 = vmatpush1.msra.mxu0 0.0
    %4910 = vmatprep.subr.mxu0 0.0
    %4911 = vmatpush1.msra.mxu0 0.0
    %4912 = vmatprep.subr.mxu0 0.0
    %4913 = vmatpush1.msra.mxu0 0.0
    %4914 = vmatprep.subr.mxu0 0.0
    %4915 = vmatpush1.msra.mxu0 0.0
    %4916 = vmatprep.subr.mxu0 0.0
    %4917 = vmatpush1.msra.mxu0 0.0
    %4918 = vmatprep.subr.mxu0 0.0
    %4919 = vmatpush1.msra.mxu0 0.0
    %4920 = vmatprep.subr.mxu0 0.0
    %4921 = vmatpush1.msra.mxu0 0.0
    %4922 = vmatprep.subr.mxu0 0.0
    %4923 = vmatpush1.msra.mxu0 0.0
    %4924 = vmatprep.subr.mxu0 0.0
    %4925 = vmatpush1.msra.mxu0 0.0
    %4926 = vmatprep.subr.mxu0 0.0
    %4927 = vmatpush1.msra.mxu0 0.0
    %4928 = vmatprep.subr.mxu0 0.0
    %4929 = vmatpush1.msra.mxu0 0.0
    %4930 = vmatprep.subr.mxu0 0.0
    %4931 = vmatpush1.msra.mxu0 0.0
    %4932 = vmatprep.subr.mxu0 0.0
    %4933 = vmatpush1.msra.mxu0 0.0
    %4934 = vmatprep.subr.mxu0 0.0
    %4935 = vmatpush1.msra.mxu0 0.0
    %4936 = vmatprep.subr.mxu0 0.0
    %4937 = vmatpush1.msra.mxu0 0.0
    %4938 = vmatprep.subr.mxu0 0.0
    %4939 = vmatpush1.msra.mxu0 0.0
    %4940 = vmatprep.subr.mxu0 0.0
    %4941 = vmatpush1.msra.mxu0 0.0
    %4942 = vmatprep.subr.mxu0 0.0
    %4943 = vmatpush1.msra.mxu0 0.0
    %4944 = vmatprep.subr.mxu0 0.0
    %4945 = vmatpush1.msra.mxu0 0.0
    %4946 = vmatprep.subr.mxu0 0.0
    %4947 = vmatpush1.msra.mxu0 0.0
    %4948 = vmatprep.subr.mxu0 0.0
    %4949 = vmatpush1.msra.mxu0 0.0
    %4950 = vmatprep.subr.mxu0 0.0
    %4951 = vmatpush1.msra.mxu0 0.0
    %4952 = vmatprep.subr.mxu0 0.0
    %4953 = vmatpush1.msra.mxu0 0.0
    %4954 = vmatprep.subr.mxu0 0.0
    %4955 = vmatpush1.msra.mxu0 0.0
    %4956 = vmatprep.mubr.f32.mxu0 0.0
    %4957 = vmatmul.mubr.f32.gmra.mrb[0].mxu0 %v4890
    %v4958 = vpop.f32.mrb[0].mxu0
    %v4959 = vadd.f32 0.0, %v4958
    %v4960 = vpop.f32.mrb[0].mxu0
    %4961 = vdwg.mxu0
    %v4963 = vsel %vm541, %v4959, 0
    %4965 = vmatprep.subr.mxu0 0.0
    %4966 = vmatpush1.msra.mxu0 %v292
    %4967 = vmatprep.subr.mxu0 0.0
    %4968 = vmatpush1.msra.mxu0 0.0
    %4969 = vmatprep.subr.mxu0 0.0
    %4970 = vmatpush1.msra.mxu0 0.0
    %4971 = vmatprep.subr.mxu0 0.0
    %4972 = vmatpush1.msra.mxu0 0.0
    %4973 = vmatprep.subr.mxu0 0.0
    %4974 = vmatpush1.msra.mxu0 0.0
    %4975 = vmatprep.subr.mxu0 0.0
    %4976 = vmatpush1.msra.mxu0 0.0
    %4977 = vmatprep.subr.mxu0 0.0
    %4978 = vmatpush1.msra.mxu0 0.0
    %4979 = vmatprep.subr.mxu0 0.0
    %4980 = vmatpush1.msra.mxu0 0.0
    %4981 = vmatprep.subr.mxu0 0.0
    %4982 = vmatpush1.msra.mxu0 0.0
    %4983 = vmatprep.subr.mxu0 0.0
    %4984 = vmatpush1.msra.mxu0 0.0
    %4985 = vmatprep.subr.mxu0 0.0
    %4986 = vmatpush1.msra.mxu0 0.0
    %4987 = vmatprep.subr.mxu0 0.0
    %4988 = vmatpush1.msra.mxu0 0.0
    %4989 = vmatprep.subr.mxu0 0.0
    %4990 = vmatpush1.msra.mxu0 0.0
    %4991 = vmatprep.subr.mxu0 0.0
    %4992 = vmatpush1.msra.mxu0 0.0
    %4993 = vmatprep.subr.mxu0 0.0
    %4994 = vmatpush1.msra.mxu0 0.0
    %4995 = vmatprep.subr.mxu0 0.0
    %4996 = vmatpush1.msra.mxu0 0.0
    %4997 = vmatprep.subr.mxu0 0.0
    %4998 = vmatpush1.msra.mxu0 0.0
    %4999 = vmatprep.subr.mxu0 0.0
    %5000 = vmatpush1.msra.mxu0 0.0
    %5001 = vmatprep.subr.mxu0 0.0
    %5002 = vmatpush1.msra.mxu0 0.0
    %5003 = vmatprep.subr.mxu0 0.0
    %5004 = vmatpush1.msra.mxu0 0.0
    %5005 = vmatprep.subr.mxu0 0.0
    %5006 = vmatpush1.msra.mxu0 0.0
    %5007 = vmatprep.subr.mxu0 0.0
    %5008 = vmatpush1.msra.mxu0 0.0
    %5009 = vmatprep.subr.mxu0 0.0
    %5010 = vmatpush1.msra.mxu0 0.0
    %5011 = vmatprep.subr.mxu0 0.0
    %5012 = vmatpush1.msra.mxu0 0.0
    %5013 = vmatprep.subr.mxu0 0.0
    %5014 = vmatpush1.msra.mxu0 0.0
    %5015 = vmatprep.subr.mxu0 0.0
    %5016 = vmatpush1.msra.mxu0 0.0
    %5017 = vmatprep.subr.mxu0 0.0
    %5018 = vmatpush1.msra.mxu0 0.0
    %5019 = vmatprep.subr.mxu0 0.0
    %5020 = vmatpush1.msra.mxu0 0.0
    %5021 = vmatprep.subr.mxu0 0.0
    %5022 = vmatpush1.msra.mxu0 0.0
    %5023 = vmatprep.subr.mxu0 0.0
    %5024 = vmatpush1.msra.mxu0 0.0
    %5025 = vmatprep.subr.mxu0 0.0
    %5026 = vmatpush1.msra.mxu0 0.0
    %5027 = vmatprep.subr.mxu0 0.0
    %5028 = vmatpush1.msra.mxu0 0.0
    %5029 = vmatprep.mubr.f32.mxu0 0.0
    %5030 = vmatmul.mubr.f32.gmra.mrb[0].mxu0 %v4963
    %v5031 = vpop.f32.mrb[0].mxu0
    %v5032 = vadd.f32 0.0, %v5031
    %v5033 = vpop.f32.mrb[0].mxu0
    %5034 = vdwg.mxu0
    %v5035 = vadd.f32 %v4796, %v5032
    %5037 = vrot.lane.b32.xlu0 %v5035, 32
    %v5038 = vpop.permute.xlu0 %5037
    %5040 = vst.msk [vmem:[%s24] sm:$0xff] %vm3867, %v5038
    %v5041 = vld [vmem:[#allocation2] sm:$0xff]
    %v5042 = vld [vmem:[#allocation2 + $0x8] sm:$0xff]
    %v5043 = vld [vmem:[%s21] sm:$0xff]
    %v5044 = vld [vmem:[%s21 + $0x8] sm:$0xff]
    %v5045 = vld [vmem:[#allocation23] sm:$0x1]
    %v5047 = vlaneseq
    %v5048 = vshrl.u32 %v5047, 7
    %v5049 = vsub.s32 0, %v5048
    %v5050 = vrot.slane %v5045, %v5049
    %vm5052 = vcmask 130048
    %v5054 = vsel %vm5052, %v5041, 0
    %v5057 = vsel %vm5052, %v5042, 0
    %5059 = vmatprep.subr.mxu0 0.0
    %5060 = vmatpush1.msra.mxu0 %v5043
    %5061 = vmatprep.subr.mxu0 0.0
    %5062 = vmatpush1.msra.mxu0 %v5044
    %5063 = vmatprep.subr.mxu0 0.0
    %5064 = vmatpush1.msra.mxu0 0.0
    %5065 = vmatprep.subr.mxu0 0.0
    %5066 = vmatpush1.msra.mxu0 0.0
    %5067 = vmatprep.subr.mxu0 0.0
    %5068 = vmatpush1.msra.mxu0 0.0
    %5069 = vmatprep.subr.mxu0 0.0
    %5070 = vmatpush1.msra.mxu0 0.0
    %5071 = vmatprep.subr.mxu0 0.0
    %5072 = vmatpush1.msra.mxu0 0.0
    %5073 = vmatprep.subr.mxu0 0.0
    %5074 = vmatpush1.msra.mxu0 0.0
    %5075 = vmatprep.subr.mxu0 0.0
    %5076 = vmatpush1.msra.mxu0 0.0
    %5077 = vmatprep.subr.mxu0 0.0
    %5078 = vmatpush1.msra.mxu0 0.0
    %5079 = vmatprep.subr.mxu0 0.0
    %5080 = vmatpush1.msra.mxu0 0.0
    %5081 = vmatprep.subr.mxu0 0.0
    %5082 = vmatpush1.msra.mxu0 0.0
    %5083 = vmatprep.subr.mxu0 0.0
    %5084 = vmatpush1.msra.mxu0 0.0
    %5085 = vmatprep.subr.mxu0 0.0
    %5086 = vmatpush1.msra.mxu0 0.0
    %5087 = vmatprep.subr.mxu0 0.0
    %5088 = vmatpush1.msra.mxu0 0.0
    %5089 = vmatprep.subr.mxu0 0.0
    %5090 = vmatpush1.msra.mxu0 0.0
    %5091 = vmatprep.subr.mxu0 0.0
    %5092 = vmatpush1.msra.mxu0 0.0
    %5093 = vmatprep.subr.mxu0 0.0
    %5094 = vmatpush1.msra.mxu0 0.0
    %5095 = vmatprep.subr.mxu0 0.0
    %5096 = vmatpush1.msra.mxu0 0.0
    %5097 = vmatprep.subr.mxu0 0.0
    %5098 = vmatpush1.msra.mxu0 0.0
    %5099 = vmatprep.subr.mxu0 0.0
    %5100 = vmatpush1.msra.mxu0 0.0
    %5101 = vmatprep.subr.mxu0 0.0
    %5102 = vmatpush1.msra.mxu0 0.0
    %5103 = vmatprep.subr.mxu0 0.0
    %5104 = vmatpush1.msra.mxu0 0.0
    %5105 = vmatprep.subr.mxu0 0.0
    %5106 = vmatpush1.msra.mxu0 0.0
    %5107 = vmatprep.subr.mxu0 0.0
    %5108 = vmatpush1.msra.mxu0 0.0
    %5109 = vmatprep.subr.mxu0 0.0
    %5110 = vmatpush1.msra.mxu0 0.0
    %5111 = vmatprep.subr.mxu0 0.0
    %5112 = vmatpush1.msra.mxu0 0.0
    %5113 = vmatprep.subr.mxu0 0.0
    %5114 = vmatpush1.msra.mxu0 0.0
    %5115 = vmatprep.subr.mxu0 0.0
    %5116 = vmatpush1.msra.mxu0 0.0
    %5117 = vmatprep.subr.mxu0 0.0
    %5118 = vmatpush1.msra.mxu0 0.0
    %5119 = vmatprep.subr.mxu0 0.0
    %5120 = vmatpush1.msra.mxu0 0.0
    %5121 = vmatprep.subr.mxu0 0.0
    %5122 = vmatpush1.msra.mxu0 0.0
    %5123 = vmatprep.mubr.f32.mxu0 0.0
    %5124 = vmatmul.mubr.f32.gmra.mrb[0].mxu0 %v5054
    %v5125 = vpop.f32.mrb[0].mxu0
    %v5126 = vadd.f32 %v5050, %v5125
    %v5127 = vpop.f32.mrb[0].mxu0
    %5128 = vmatprep.mubr.f32.mxu0 0.0
    %5129 = vmatmul.mubr.f32.gmra.mrb[0].mxu0 %v5057
    %v5130 = vpop.f32.mrb[0].mxu0
    %v5131 = vadd.f32 %v5050, %v5130
    %v5132 = vpop.f32.mrb[0].mxu0
    %5133 = vdwg.mxu0
    %5134 = vst.msk [vmem:[#allocation25] sm:$0xff] %vm300, %v5126
    %5135 = vst.msk [vmem:[#allocation25 + $0x8] sm:$0xff] %vm300, %v5131
    // Predicated region
    $region150: #{actora_forward.1} parent=1 // pred_check
      _
    $region151: #{actora_forward.1} parent=1 // pred_check_branch
      %5137 = sbr.rel (0) target = $region153
    $region152: #{actora_forward.1} parent=1 // pred_region
      _
    $region153: #{actora_forward.1} parent=1 // pred_fallthru
      _
    // Predicated region
    $region154: #{actora_forward.1} parent=1 // pred_check
      _
    $region155: #{actora_forward.1} parent=1 // pred_check_branch
      %5139 = sbr.rel (0) target = $region157
    $region156: #{actora_forward.1} parent=1 // pred_region
      _
    $region157: #{actora_forward.1} parent=1 // pred_fallthru
      _
    // Predicated region
    $region158: #{actora_forward.1} parent=1 // pred_check
      _
    $region159: #{actora_forward.1} parent=1 // pred_check_branch
      %5141 = sbr.rel (0) target = $region161
    $region160: #{actora_forward.1} parent=1 // pred_region
      %s5143 = ssub.s32 256, 256
      %5144 = vsyncadd [#allocation4], %s5143
      %s5145 = sshll.u32 [#allocation25], 4
      %s5146 = int_to_ptr.vmem [resolvable:$true] %s5145
      %5151 = dma.vmem_to_hbm [thread:$0]  %s5146, 256, %s25, [#allocation4], 128, 128, 8
    $region161: #{actora_forward.1} parent=1 // pred_fallthru
      _
    // Predicated region
    $region162: #{actora_forward.1} parent=1 // pred_check
      _
    $region163: #{actora_forward.1} parent=1 // pred_check_branch
      %5153 = sbr.rel (0) target = $region165
    $region164: #{actora_forward.1} parent=1 // pred_region
      _
    $region165: #{actora_forward.1} parent=1 // pred_fallthru
      _
    // Predicated region
    $region166: #{actora_forward.1} parent=1 // pred_check
      _
    $region167: #{actora_forward.1} parent=1 // pred_check_branch
      %5155 = sbr.rel (0) target = $region169
    $region168: #{actora_forward.1} parent=1 // pred_region
      _
    $region169: #{actora_forward.1} parent=1 // pred_fallthru
      _
    // Predicated region
    $region170: #{actora_forward.1} parent=1 // pred_check
      _
    $region171: #{actora_forward.1} parent=1 // pred_check_branch
      %5157 = sbr.rel (0) target = $region173
    $region172: #{actora_forward.1} parent=1 // pred_region
      %5158 = dma.done [#allocation4], 256
    $region173: #{actora_forward.1} parent=1 // pred_fallthru
      _
    %5159 = vsyncpa [#allocation3], 1
    %5160 = vsyncpa [#allocation6], 1
    %5161 = vsyncpa [#allocation9], 1
    %5162 = vsyncpa [#allocation12], 1
    %5163 = vsyncpa [#allocation15], 1
    %5164 = vsyncpa [#allocation18], 1
    %5165 = vsyncpa [#allocation21], 1
    %5166 = vsyncpa [#allocation24], 1
    %5167 = vsyncpa [#allocation4], 1

</llo_original>
